<compile_context>
chip_gen: v6e
topology: v6e:2x2x1
jax: 0.10.0
libtpu: 0.0.40
codegen_flags: <defaults>
</compile_context>

<pallas_src>
import functools

import numpy as np
import jax
import jax.numpy as jnp
from jax import lax
from jax.experimental import pallas as pl
from jax.experimental.pallas import tpu as pltpu

EPS = 1e-3  # BatchNorm eps from the PyTorch module


# ----------------------------------------------------------------------------
# Pallas kernels
# ----------------------------------------------------------------------------
def _stem_kernel(xp_ref, inv_ref, wx_ref, bx_ref, wp_ref, bp_ref,
                 ox_ref, op_ref, *, H, W):
    """Fused stem for one batch element.

    xp_ref : (1, H+2, W+2, Cin)  zero-padded input tile (bf16)
    inv_ref: (1, H, W, 1)        1 / avg-pool valid-element count (f32)
    wx_ref : (Cin, 224)          concat [branch0 | branch1_0 | branch2_0] 1x1
                                 weights, BN scale folded (bf16)
    bx_ref : (1, 224)            folded BN bias (f32)
    wp_ref : (Cin, 96)           branch3_1 1x1 weights, scale folded (bf16)
    bp_ref : (1, 96)             folded BN bias (f32)
    ox_ref : (H*W, 224)          [x0(96) | x1_0(64) | x2_0(64)]  (bf16)
    op_ref : (H*W, 96)           x3                               (bf16)
    """
    C = xp_ref.shape[-1]
    xp = xp_ref[...].astype(jnp.float32)                       # (1, H+2, W+2, C)

    # --- three fused 1x1 convs on the (un-padded) interior -------------------
    xf = xp[:, 1:1 + H, 1:1 + W, :].reshape(H * W, C).astype(jnp.bfloat16)
    accx = jnp.dot(xf, wx_ref[...], preferred_element_type=jnp.float32)
    ox_ref[...] = jnp.maximum(accx + bx_ref[...], 0.0).astype(ox_ref.dtype)

    # --- branch3: 3x3 avg pool (count_include_pad=False) + 1x1 conv ----------
    pooled = jnp.zeros((1, H, W, C), jnp.float32)
    for dh in range(3):
        for dw in range(3):
            pooled = pooled + xp[:, dh:dh + H, dw:dw + W, :]
    pooled = pooled * inv_ref[...]
    pf = pooled.reshape(H * W, C).astype(jnp.bfloat16)
    accp = jnp.dot(pf, wp_ref[...], preferred_element_type=jnp.float32)
    op_ref[...] = jnp.maximum(accp + bp_ref[...], 0.0).astype(op_ref.dtype)


def _conv3x3_kernel(xp_ref, w_ref, b_ref, o_ref, *, H, W):
    """3x3 stride-1 'same' conv as 9 in-kernel shifted-slice matmuls + bias + ReLU.

    xp_ref: (1, H+2, W+2, Cin) padded input tile (bf16)
    w_ref : (3, 3, Cin, Cout)  per-tap weights, BN scale folded (bf16)
    b_ref : (1, Cout)          folded BN bias (f32)
    o_ref : (H*W, Cout)        (bf16)
    """
    C = xp_ref.shape[-1]
    Cout = o_ref.shape[-1]
    xp = xp_ref[...].astype(jnp.float32)
    acc = jnp.zeros((H * W, Cout), jnp.float32)
    for dh in range(3):
        for dw in range(3):
            t = xp[:, dh:dh + H, dw:dw + W, :].reshape(H * W, C).astype(jnp.bfloat16)
            acc = acc + jnp.dot(t, w_ref[dh, dw], preferred_element_type=jnp.float32)
    o_ref[...] = jnp.maximum(acc + b_ref[...], 0.0).astype(o_ref.dtype)


# ----------------------------------------------------------------------------
# pallas_call wrappers
# ----------------------------------------------------------------------------
def _stem(xp, inv, wx, bx, wp, bp):
    N = xp.shape[0]
    H = xp.shape[1] - 2
    W = xp.shape[2] - 2
    Cin = xp.shape[3]
    Cx = wx.shape[1]
    Cp = wp.shape[1]
    kernel = functools.partial(_stem_kernel, H=H, W=W)
    return pl.pallas_call(
        kernel,
        grid=(N,),
        out_shape=(jax.ShapeDtypeStruct((N * H * W, Cx), jnp.bfloat16),
                   jax.ShapeDtypeStruct((N * H * W, Cp), jnp.bfloat16)),
        in_specs=[
            pl.BlockSpec((1, H + 2, W + 2, Cin), lambda n: (n, 0, 0, 0)),
            pl.BlockSpec((1, H, W, 1), lambda n: (0, 0, 0, 0)),
            pl.BlockSpec((Cin, Cx), lambda n: (0, 0)),
            pl.BlockSpec((1, Cx), lambda n: (0, 0)),
            pl.BlockSpec((Cin, Cp), lambda n: (0, 0)),
            pl.BlockSpec((1, Cp), lambda n: (0, 0)),
        ],
        out_specs=(pl.BlockSpec((H * W, Cx), lambda n: (n, 0)),
                   pl.BlockSpec((H * W, Cp), lambda n: (n, 0))),
        compiler_params=pltpu.CompilerParams(
            dimension_semantics=("parallel",)),
    )(xp, inv, wx, bx.reshape(1, Cx), wp, bp.reshape(1, Cp))


def _conv3x3_same(x, w, b):
    """x: (N,H,W,Cin) bf16; w: (3,3,Cin,Cout) bf16; b: (Cout,) f32 -> (N*H*W, Cout) bf16."""
    N, H, W, Cin = x.shape
    Cout = w.shape[-1]
    xp = jnp.pad(x, ((0, 0), (1, 1), (1, 1), (0, 0)))
    kernel = functools.partial(_conv3x3_kernel, H=H, W=W)
    return pl.pallas_call(
        kernel,
        grid=(N,),
        out_shape=jax.ShapeDtypeStruct((N * H * W, Cout), jnp.bfloat16),
        in_specs=[
            pl.BlockSpec((1, H + 2, W + 2, Cin), lambda n: (n, 0, 0, 0)),
            pl.BlockSpec((3, 3, Cin, Cout), lambda n: (0, 0, 0, 0)),
            pl.BlockSpec((1, Cout), lambda n: (0, 0)),
        ],
        out_specs=pl.BlockSpec((H * W, Cout), lambda n: (n, 0)),
        compiler_params=pltpu.CompilerParams(
            dimension_semantics=("parallel",)),
    )(xp, w, b.reshape(1, Cout))


# ----------------------------------------------------------------------------
# Parameter folding (BN scale into weights, bf16 cast, shared-input fusion)
# ----------------------------------------------------------------------------
def _fold_1x1(p):
    w = p["w"][:, :, 0, 0]                                    # (Cout, Cin)
    wmat = (w.T * p["scale"][None, :]).astype(jnp.bfloat16)   # (Cin, Cout)
    return wmat, p["bias"].astype(jnp.float32)


def _fold_3x3(p):
    w = jnp.transpose(p["w"], (2, 3, 1, 0))                   # (3,3,Cin,Cout)
    wtap = (w * p["scale"][None, None, None, :]).astype(jnp.bfloat16)
    return wtap, p["bias"].astype(jnp.float32)


def prepare_inception_a_params(params):
    w0, b0 = _fold_1x1(params["branch0"])        # 384 -> 96
    w10, b10 = _fold_1x1(params["branch1_0"])    # 384 -> 64
    w20, b20 = _fold_1x1(params["branch2_0"])    # 384 -> 64
    wx = jnp.concatenate([w0, w10, w20], axis=1)              # (384, 224)
    bx = jnp.concatenate([b0, b10, b20])                      # (224,)

    wp, bp = _fold_1x1(params["branch3_1"])      # 384 -> 96

    w11, b11 = _fold_3x3(params["branch1_1"])    # (3,3,64,96)
    w21, b21 = _fold_3x3(params["branch2_1"])    # (3,3,64,96)
    c1, o1 = w11.shape[2], w11.shape[3]
    c2, o2 = w21.shape[2], w21.shape[3]
    # Block-diagonal weight so both 3x3 convs run as one matmul per tap over the
    # concatenated [x1_0 | x2_0] channels without mixing them.
    wb = jnp.zeros((3, 3, c1 + c2, o1 + o2), jnp.bfloat16)
    wb = wb.at[:, :, :c1, :o1].set(w11)
    wb = wb.at[:, :, c1:, o1:].set(w21)
    bb = jnp.concatenate([b11, b21])

    w22, b22 = _fold_3x3(params["branch2_2"])    # (3,3,96,96)
    return dict(wx=wx, bx=bx, wp=wp, bp=bp, wb=wb, bb=bb, w22=w22, b22=b22)


# ----------------------------------------------------------------------------
# Inception_A forward
# ----------------------------------------------------------------------------
def inception_a_forward(prep, x_nchw):
    N, C, H, W = x_nchw.shape
    x = jnp.transpose(x_nchw, (0, 2, 3, 1)).astype(jnp.bfloat16)      # NHWC bf16
    xp = jnp.pad(x, ((0, 0), (1, 1), (1, 1), (0, 0)))

    # 1 / (valid-element count) for 3x3 avg pool with count_include_pad=False.
    ones = np.zeros((H + 2, W + 2), np.float32)
    ones[1:H + 1, 1:W + 1] = 1.0
    cnt = np.zeros((H, W), np.float32)
    for dh in range(3):
        for dw in range(3):
            cnt += ones[dh:dh + H, dw:dw + W]
    inv = jnp.asarray((1.0 / cnt).reshape(1, H, W, 1), jnp.float32)

    # Kernel 1: branch0 + branch1[0] + branch2[0] (fused 1x1s) and branch3 (pool + 1x1).
    heads, x3 = _stem(xp, inv, prep["wx"], prep["bx"], prep["wp"], prep["bp"])
    x0 = heads[:, :96]                                   # branch0 output
    mid = heads[:, 96:].reshape(N, H, W, 128)            # [x1_0(64) | x2_0(64)]

    # Kernel 2: branch1[1] and branch2[1] fused via block-diagonal 3x3 weights.
    y = _conv3x3_same(mid, prep["wb"], prep["bb"])       # (N*H*W, 192)
    x1 = y[:, :96]
    x2_1 = y[:, 96:].reshape(N, H, W, 96)

    # Kernel 3: branch2[2].
    x2 = _conv3x3_same(x2_1, prep["w22"], prep["b22"])   # (N*H*W, 96)

    out = jnp.concatenate([x0, x1, x2, x3], axis=-1).astype(jnp.float32)
    out = out.reshape(N, H, W, 4 * 96)
    return jnp.transpose(out, (0, 3, 1, 2))              # back to NCHW


# ----------------------------------------------------------------------------
# Deterministic parameter construction (synthetic; no checkpoint)
# ----------------------------------------------------------------------------
def make_bconv_params(key, cin, cout, kh, kw):
    k1, k2, k3, k4, k5 = jax.random.split(key, 5)
    w = jax.random.normal(k1, (cout, cin, kh, kw), jnp.float32) * 0.05
    gamma = 1.0 + 0.1 * jax.random.normal(k2, (cout,), jnp.float32)
    beta = 0.1 * jax.random.normal(k3, (cout,), jnp.float32)
    mean = 0.1 * jax.random.normal(k4, (cout,), jnp.float32)
    var = 1.0 + 0.1 * jax.random.uniform(k5, (cout,), jnp.float32)
    scale = gamma / jnp.sqrt(var + EPS)
    bias = beta - mean * scale
    return {"w": w, "scale": scale, "bias": bias}


def make_inception_a_params(key):
    cfg = {
        "branch0":   (384, 96, 1, 1),
        "branch1_0": (384, 64, 1, 1),
        "branch1_1": (64, 96, 3, 3),
        "branch2_0": (384, 64, 1, 1),
        "branch2_1": (64, 96, 3, 3),
        "branch2_2": (96, 96, 3, 3),
        "branch3_1": (384, 96, 1, 1),
    }
    keys = jax.random.split(key, len(cfg))
    return {name: make_bconv_params(k, *dims)
            for k, (name, dims) in zip(keys, cfg.items())}


# ----------------------------------------------------------------------------
# Pure-JAX f32 reference (sanity check of the Pallas path)
# ----------------------------------------------------------------------------
def _ref_basic_conv2d(x, p):
    w = p["w"]
    kh, kw = w.shape[2], w.shape[3]
    y = lax.conv_general_dilated(
        x, w, window_strides=(1, 1),
        padding=[((kh - 1) // 2, (kh - 1) // 2), ((kw - 1) // 2, (kw - 1) // 2)],
        dimension_numbers=("NCHW", "OIHW", "NCHW"),
        precision=lax.Precision.HIGHEST)
    y = y * p["scale"][None, :, None, None] + p["bias"][None, :, None, None]
    return jnp.maximum(y, 0.0)


def _ref_avgpool(x):
    N, C, H, W = x.shape
    pad = [(0, 0), (0, 0), (1, 1), (1, 1)]
    s = lax.reduce_window(x, 0.0, lax.add, (1, 1, 3, 3), (1, 1, 1, 1), pad)
    cnt = lax.reduce_window(jnp.ones((1, 1, H, W), jnp.float32), 0.0, lax.add,
                            (1, 1, 3, 3), (1, 1, 1, 1), pad)
    return s / cnt


def _ref_forward(params, x):
    x0 = _ref_basic_conv2d(x, params["branch0"])
    x1 = _ref_basic_conv2d(_ref_basic_conv2d(x, params["branch1_0"]),
                           params["branch1_1"])
    x2 = _ref_basic_conv2d(
        _ref_basic_conv2d(
            _ref_basic_conv2d(x, params["branch2_0"]), params["branch2_1"]),
        params["branch2_2"])
    x3 = _ref_basic_conv2d(_ref_avgpool(x), params["branch3_1"])
    return jnp.concatenate([x0, x1, x2, x3], axis=1)


# ----------------------------------------------------------------------------
if __name__ == "__main__":
    key = jax.random.PRNGKey(0)
    kx, kp = jax.random.split(key)

    # Input: NCHW; channels fixed at 384 by the module; small batch/spatial.
    N, C, H, W = 2, 384, 8, 8
    x = jax.random.normal(kx, (N, C, H, W), jnp.float32)

    params = make_inception_a_params(kp)
    prep = prepare_inception_a_params(params)

    fwd = jax.jit(inception_a_forward)
    out = jax.block_until_ready(fwd(prep, x))
    assert out.shape == (N, 384, H, W), out.shape

    # Loose tolerance: kernels use bf16 activations/weights with f32 accumulation,
    # reference is full f32.
    ref = jax.block_until_ready(_ref_forward(params, x))
    np.testing.assert_allclose(np.asarray(out), np.asarray(ref),
                               rtol=1e-1, atol=1e-1)
    print("KERNEL_OK")
</pallas_src>

<mosaic_0001>
module attributes {stable_mosaic.version = 11 : i64} {
  func.func @_stem_kernel(%arg0: i32, %arg1: memref<1x10x10x384xbf16, #tpu.memory_space<vmem>>, %arg2: memref<1x8x8x1xf32, #tpu.memory_space<vmem>>, %arg3: memref<384x224xbf16, #tpu.memory_space<vmem>>, %arg4: memref<1x224xf32, #tpu.memory_space<vmem>>, %arg5: memref<384x96xbf16, #tpu.memory_space<vmem>>, %arg6: memref<1x96xf32, #tpu.memory_space<vmem>>, %arg7: memref<64x224xbf16, #tpu.memory_space<vmem>>, %arg8: memref<64x96xbf16, #tpu.memory_space<vmem>>) attributes {dimension_semantics = [#tpu.dimension_semantics<parallel>], iteration_bounds = array<i64: 2>, scalar_prefetch = 0 : i64, scratch_operands = 0 : i64, tpu.core_type = #tpu.core_type<tc>, window_params = [{transform_indices = @transform_0, window_bounds = array<i64: 1, 10, 10, 384>}, {pipeline_mode = #tpu.pipeline_mode<synchronous>, transform_indices = @transform_1, window_bounds = array<i64: 1, 8, 8, 1>}, {pipeline_mode = #tpu.pipeline_mode<synchronous>, transform_indices = @transform_2, window_bounds = array<i64: 384, 224>}, {pipeline_mode = #tpu.pipeline_mode<synchronous>, transform_indices = @transform_3, window_bounds = array<i64: 1, 224>}, {pipeline_mode = #tpu.pipeline_mode<synchronous>, transform_indices = @transform_4, window_bounds = array<i64: 384, 96>}, {pipeline_mode = #tpu.pipeline_mode<synchronous>, transform_indices = @transform_5, window_bounds = array<i64: 1, 96>}, {transform_indices = @transform_6, window_bounds = array<i64: 64, 224>}, {transform_indices = @transform_7, window_bounds = array<i64: 64, 96>}]} {
    %c0 = arith.constant 0 : index
    %c0_0 = arith.constant 0 : index
    %c0_1 = arith.constant 0 : index
    %c0_2 = arith.constant 0 : index
    %0 = vector.load %arg1[%c0, %c0_0, %c0_1, %c0_2] : memref<1x10x10x384xbf16, #tpu.memory_space<vmem>>, vector<1x10x10x384xbf16>
    %1 = arith.extf %0 : vector<1x10x10x384xbf16> to vector<1x10x10x384xf32>
    %2 = vector.extract_strided_slice %1 {offsets = [0, 1, 1, 0], sizes = [1, 8, 8, 384], strides = [1, 1, 1, 1]} : vector<1x10x10x384xf32> to vector<1x8x8x384xf32>
    %3 = vector.shape_cast %2 : vector<1x8x8x384xf32> to vector<64x384xf32>
    %4 = arith.truncf %3 : vector<64x384xf32> to vector<64x384xbf16>
    %c0_3 = arith.constant 0 : index
    %c0_4 = arith.constant 0 : index
    %5 = vector.load %arg3[%c0_3, %c0_4] : memref<384x224xbf16, #tpu.memory_space<vmem>>, vector<384x224xbf16>
    %cst = arith.constant dense<0.000000e+00> : vector<64x224xf32>
    %6 = tpu.matmul %4, %5, %cst {dimension_numbers = #tpu.dot_dimension_numbers<[1], [0], [0], [1], [0, 0, 1, 1], [], []>} : vector<64x384xbf16>, vector<384x224xbf16>, vector<64x224xf32> -> vector<64x224xf32>
    %c0_5 = arith.constant 0 : index
    %c0_6 = arith.constant 0 : index
    %7 = vector.load %arg4[%c0_5, %c0_6] : memref<1x224xf32, #tpu.memory_space<vmem>>, vector<1x224xf32>
    %8 = vector.broadcast %7 : vector<1x224xf32> to vector<64x224xf32>
    %9 = arith.addf %6, %8 : vector<64x224xf32>
    %cst_7 = arith.constant 0.000000e+00 : f32
    %10 = vector.broadcast %cst_7 : f32 to vector<64x224xf32>
    %11 = arith.maximumf %9, %10 : vector<64x224xf32>
    %12 = arith.truncf %11 : vector<64x224xf32> to vector<64x224xbf16>
    %c0_8 = arith.constant 0 : index
    %c0_9 = arith.constant 0 : index
    %13 = vector.load %arg7[%c0_8, %c0_9] : memref<64x224xbf16, #tpu.memory_space<vmem>>, vector<64x224xbf16>
    tpu.vector_store %arg7[%c0_8, %c0_9], %12 {strides = array<i32>} : memref<64x224xbf16, #tpu.memory_space<vmem>>, vector<64x224xbf16>,
    %cst_10 = arith.constant 0.000000e+00 : f32
    %14 = vector.broadcast %cst_10 : f32 to vector<1x8x8x384xf32>
    %15 = vector.extract_strided_slice %1 {offsets = [0, 0, 0, 0], sizes = [1, 8, 8, 384], strides = [1, 1, 1, 1]} : vector<1x10x10x384xf32> to vector<1x8x8x384xf32>
    %16 = arith.addf %14, %15 : vector<1x8x8x384xf32>
    %17 = vector.extract_strided_slice %1 {offsets = [0, 0, 1, 0], sizes = [1, 8, 8, 384], strides = [1, 1, 1, 1]} : vector<1x10x10x384xf32> to vector<1x8x8x384xf32>
    %18 = arith.addf %16, %17 : vector<1x8x8x384xf32>
    %19 = vector.extract_strided_slice %1 {offsets = [0, 0, 2, 0], sizes = [1, 8, 8, 384], strides = [1, 1, 1, 1]} : vector<1x10x10x384xf32> to vector<1x8x8x384xf32>
    %20 = arith.addf %18, %19 : vector<1x8x8x384xf32>
    %21 = vector.extract_strided_slice %1 {offsets = [0, 1, 0, 0], sizes = [1, 8, 8, 384], strides = [1, 1, 1, 1]} : vector<1x10x10x384xf32> to vector<1x8x8x384xf32>
    %22 = arith.addf %20, %21 : vector<1x8x8x384xf32>
    %23 = vector.extract_strided_slice %1 {offsets = [0, 1, 1, 0], sizes = [1, 8, 8, 384], strides = [1, 1, 1, 1]} : vector<1x10x10x384xf32> to vector<1x8x8x384xf32>
    %24 = arith.addf %22, %23 : vector<1x8x8x384xf32>
    %25 = vector.extract_strided_slice %1 {offsets = [0, 1, 2, 0], sizes = [1, 8, 8, 384], strides = [1, 1, 1, 1]} : vector<1x10x10x384xf32> to vector<1x8x8x384xf32>
    %26 = arith.addf %24, %25 : vector<1x8x8x384xf32>
    %27 = vector.extract_strided_slice %1 {offsets = [0, 2, 0, 0], sizes = [1, 8, 8, 384], strides = [1, 1, 1, 1]} : vector<1x10x10x384xf32> to vector<1x8x8x384xf32>
    %28 = arith.addf %26, %27 : vector<1x8x8x384xf32>
    %29 = vector.extract_strided_slice %1 {offsets = [0, 2, 1, 0], sizes = [1, 8, 8, 384], strides = [1, 1, 1, 1]} : vector<1x10x10x384xf32> to vector<1x8x8x384xf32>
    %30 = arith.addf %28, %29 : vector<1x8x8x384xf32>
    %31 = vector.extract_strided_slice %1 {offsets = [0, 2, 2, 0], sizes = [1, 8, 8, 384], strides = [1, 1, 1, 1]} : vector<1x10x10x384xf32> to vector<1x8x8x384xf32>
    %32 = arith.addf %30, %31 : vector<1x8x8x384xf32>
    %c0_11 = arith.constant 0 : index
    %c0_12 = arith.constant 0 : index
    %c0_13 = arith.constant 0 : index
    %c0_14 = arith.constant 0 : index
    %33 = vector.load %arg2[%c0_11, %c0_12, %c0_13, %c0_14] : memref<1x8x8x1xf32, #tpu.memory_space<vmem>>, vector<1x8x8x1xf32>
    %34 = vector.broadcast %33 : vector<1x8x8x1xf32> to vector<1x8x8x384xf32>
    %35 = arith.mulf %32, %34 : vector<1x8x8x384xf32>
    %36 = vector.shape_cast %35 : vector<1x8x8x384xf32> to vector<64x384xf32>
    %37 = arith.truncf %36 : vector<64x384xf32> to vector<64x384xbf16>
    %c0_15 = arith.constant 0 : index
    %c0_16 = arith.constant 0 : index
    %38 = vector.load %arg5[%c0_15, %c0_16] : memref<384x96xbf16, #tpu.memory_space<vmem>>, vector<384x96xbf16>
    %cst_17 = arith.constant dense<0.000000e+00> : vector<64x96xf32>
    %39 = tpu.matmul %37, %38, %cst_17 {dimension_numbers = #tpu.dot_dimension_numbers<[1], [0], [0], [1], [0, 0, 1, 1], [], []>} : vector<64x384xbf16>, vector<384x96xbf16>, vector<64x96xf32> -> vector<64x96xf32>
    %c0_18 = arith.constant 0 : index
    %c0_19 = arith.constant 0 : index
    %40 = vector.load %arg6[%c0_18, %c0_19] : memref<1x96xf32, #tpu.memory_space<vmem>>, vector<1x96xf32>
    %41 = vector.broadcast %40 : vector<1x96xf32> to vector<64x96xf32>
    %42 = arith.addf %39, %41 : vector<64x96xf32>
    %cst_20 = arith.constant 0.000000e+00 : f32
    %43 = vector.broadcast %cst_20 : f32 to vector<64x96xf32>
    %44 = arith.maximumf %42, %43 : vector<64x96xf32>
    %45 = arith.truncf %44 : vector<64x96xf32> to vector<64x96xbf16>
    %c0_21 = arith.constant 0 : index
    %c0_22 = arith.constant 0 : index
    %46 = vector.load %arg8[%c0_21, %c0_22] : memref<64x96xbf16, #tpu.memory_space<vmem>>, vector<64x96xbf16>
    tpu.vector_store %arg8[%c0_21, %c0_22], %45 {strides = array<i32>} : memref<64x96xbf16, #tpu.memory_space<vmem>>, vector<64x96xbf16>,
    return
  }
  func.func @transform_0(%arg0: i32) -> (i32, i32, i32, i32) {
    %c0_i32 = arith.constant 0 : i32
    %c0_i32_0 = arith.constant 0 : i32
    %c0_i32_1 = arith.constant 0 : i32
    %c0_i32_2 = arith.constant 0 : i32
    return %arg0, %c0_i32, %c0_i32_0, %c0_i32_1 : i32, i32, i32, i32
  }
  func.func @transform_1(%arg0: i32) -> (i32, i32, i32, i32) {
    %c0_i32 = arith.constant 0 : i32
    %c0_i32_0 = arith.constant 0 : i32
    %c0_i32_1 = arith.constant 0 : i32
    %c0_i32_2 = arith.constant 0 : i32
    %c0_i32_3 = arith.constant 0 : i32
    return %c0_i32, %c0_i32_0, %c0_i32_1, %c0_i32_2 : i32, i32, i32, i32
  }
  func.func @transform_2(%arg0: i32) -> (i32, i32) {
    %c0_i32 = arith.constant 0 : i32
    %c0_i32_0 = arith.constant 0 : i32
    %c0_i32_1 = arith.constant 0 : i32
    return %c0_i32, %c0_i32_0 : i32, i32
  }
  func.func @transform_3(%arg0: i32) -> (i32, i32) {
    %c0_i32 = arith.constant 0 : i32
    %c0_i32_0 = arith.constant 0 : i32
    %c0_i32_1 = arith.constant 0 : i32
    return %c0_i32, %c0_i32_0 : i32, i32
  }
  func.func @transform_4(%arg0: i32) -> (i32, i32) {
    %c0_i32 = arith.constant 0 : i32
    %c0_i32_0 = arith.constant 0 : i32
    %c0_i32_1 = arith.constant 0 : i32
    return %c0_i32, %c0_i32_0 : i32, i32
  }
  func.func @transform_5(%arg0: i32) -> (i32, i32) {
    %c0_i32 = arith.constant 0 : i32
    %c0_i32_0 = arith.constant 0 : i32
    %c0_i32_1 = arith.constant 0 : i32
    return %c0_i32, %c0_i32_0 : i32, i32
  }
  func.func @transform_6(%arg0: i32) -> (i32, i32) {
    %c0_i32 = arith.constant 0 : i32
    %c0_i32_0 = arith.constant 0 : i32
    return %arg0, %c0_i32 : i32, i32
  }
  func.func @transform_7(%arg0: i32) -> (i32, i32) {
    %c0_i32 = arith.constant 0 : i32
    %c0_i32_0 = arith.constant 0 : i32
    return %arg0, %c0_i32 : i32, i32
  }
}

module attributes {stable_mosaic.version = 11 : i64} {
  func.func @_conv3x3_kernel(%arg0: i32, %arg1: memref<1x10x10x128xbf16, #tpu.memory_space<vmem>>, %arg2: memref<3x3x128x192xbf16, #tpu.memory_space<vmem>>, %arg3: memref<1x192xf32, #tpu.memory_space<vmem>>, %arg4: memref<64x192xbf16, #tpu.memory_space<vmem>>) attributes {dimension_semantics = [#tpu.dimension_semantics<parallel>], iteration_bounds = array<i64: 2>, scalar_prefetch = 0 : i64, scratch_operands = 0 : i64, tpu.core_type = #tpu.core_type<tc>, window_params = [{transform_indices = @transform_0, window_bounds = array<i64: 1, 10, 10, 128>}, {pipeline_mode = #tpu.pipeline_mode<synchronous>, transform_indices = @transform_1, window_bounds = array<i64: 3, 3, 128, 192>}, {pipeline_mode = #tpu.pipeline_mode<synchronous>, transform_indices = @transform_2, window_bounds = array<i64: 1, 192>}, {transform_indices = @transform_3, window_bounds = array<i64: 64, 192>}]} {
    %c0 = arith.constant 0 : index
    %c0_0 = arith.constant 0 : index
    %c0_1 = arith.constant 0 : index
    %c0_2 = arith.constant 0 : index
    %0 = vector.load %arg1[%c0, %c0_0, %c0_1, %c0_2] : memref<1x10x10x128xbf16, #tpu.memory_space<vmem>>, vector<1x10x10x128xbf16>
    %1 = arith.extf %0 : vector<1x10x10x128xbf16> to vector<1x10x10x128xf32>
    %cst = arith.constant 0.000000e+00 : f32
    %2 = vector.broadcast %cst : f32 to vector<64x192xf32>
    %3 = vector.extract_strided_slice %1 {offsets = [0, 0, 0, 0], sizes = [1, 8, 8, 128], strides = [1, 1, 1, 1]} : vector<1x10x10x128xf32> to vector<1x8x8x128xf32>
    %4 = vector.shape_cast %3 : vector<1x8x8x128xf32> to vector<64x128xf32>
    %5 = arith.truncf %4 : vector<64x128xf32> to vector<64x128xbf16>
    %c0_3 = arith.constant 0 : index
    %c0_4 = arith.constant 0 : index
    %c0_5 = arith.constant 0 : index
    %c0_6 = arith.constant 0 : index
    %6 = vector.load %arg2[%c0_3, %c0_4, %c0_5, %c0_6] : memref<3x3x128x192xbf16, #tpu.memory_space<vmem>>, vector<1x1x128x192xbf16>
    %7 = vector.shape_cast %6 : vector<1x1x128x192xbf16> to vector<128x192xbf16>
    %cst_7 = arith.constant dense<0.000000e+00> : vector<64x192xf32>
    %8 = tpu.matmul %5, %7, %cst_7 {dimension_numbers = #tpu.dot_dimension_numbers<[1], [0], [0], [1], [0, 0, 1, 1], [], []>} : vector<64x128xbf16>, vector<128x192xbf16>, vector<64x192xf32> -> vector<64x192xf32>
    %9 = arith.addf %2, %8 : vector<64x192xf32>
    %10 = vector.extract_strided_slice %1 {offsets = [0, 0, 1, 0], sizes = [1, 8, 8, 128], strides = [1, 1, 1, 1]} : vector<1x10x10x128xf32> to vector<1x8x8x128xf32>
    %11 = vector.shape_cast %10 : vector<1x8x8x128xf32> to vector<64x128xf32>
    %12 = arith.truncf %11 : vector<64x128xf32> to vector<64x128xbf16>
    %c0_8 = arith.constant 0 : index
    %c1 = arith.constant 1 : index
    %c0_9 = arith.constant 0 : index
    %c0_10 = arith.constant 0 : index
    %13 = vector.load %arg2[%c0_8, %c1, %c0_9, %c0_10] : memref<3x3x128x192xbf16, #tpu.memory_space<vmem>>, vector<1x1x128x192xbf16>
    %14 = vector.shape_cast %13 : vector<1x1x128x192xbf16> to vector<128x192xbf16>
    %cst_11 = arith.constant dense<0.000000e+00> : vector<64x192xf32>
    %15 = tpu.matmul %12, %14, %cst_11 {dimension_numbers = #tpu.dot_dimension_numbers<[1], [0], [0], [1], [0, 0, 1, 1], [], []>} : vector<64x128xbf16>, vector<128x192xbf16>, vector<64x192xf32> -> vector<64x192xf32>
    %16 = arith.addf %9, %15 : vector<64x192xf32>
    %17 = vector.extract_strided_slice %1 {offsets = [0, 0, 2, 0], sizes = [1, 8, 8, 128], strides = [1, 1, 1, 1]} : vector<1x10x10x128xf32> to vector<1x8x8x128xf32>
    %18 = vector.shape_cast %17 : vector<1x8x8x128xf32> to vector<64x128xf32>
    %19 = arith.truncf %18 : vector<64x128xf32> to vector<64x128xbf16>
    %c0_12 = arith.constant 0 : index
    %c2 = arith.constant 2 : index
    %c0_13 = arith.constant 0 : index
    %c0_14 = arith.constant 0 : index
    %20 = vector.load %arg2[%c0_12, %c2, %c0_13, %c0_14] : memref<3x3x128x192xbf16, #tpu.memory_space<vmem>>, vector<1x1x128x192xbf16>
    %21 = vector.shape_cast %20 : vector<1x1x128x192xbf16> to vector<128x192xbf16>
    %cst_15 = arith.constant dense<0.000000e+00> : vector<64x192xf32>
    %22 = tpu.matmul %19, %21, %cst_15 {dimension_numbers = #tpu.dot_dimension_numbers<[1], [0], [0], [1], [0, 0, 1, 1], [], []>} : vector<64x128xbf16>, vector<128x192xbf16>, vector<64x192xf32> -> vector<64x192xf32>
    %23 = arith.addf %16, %22 : vector<64x192xf32>
    %24 = vector.extract_strided_slice %1 {offsets = [0, 1, 0, 0], sizes = [1, 8, 8, 128], strides = [1, 1, 1, 1]} : vector<1x10x10x128xf32> to vector<1x8x8x128xf32>
    %25 = vector.shape_cast %24 : vector<1x8x8x128xf32> to vector<64x128xf32>
    %26 = arith.truncf %25 : vector<64x128xf32> to vector<64x128xbf16>
    %c1_16 = arith.constant 1 : index
    %c0_17 = arith.constant 0 : index
    %c0_18 = arith.constant 0 : index
    %c0_19 = arith.constant 0 : index
    %27 = vector.load %arg2[%c1_16, %c0_17, %c0_18, %c0_19] : memref<3x3x128x192xbf16, #tpu.memory_space<vmem>>, vector<1x1x128x192xbf16>
    %28 = vector.shape_cast %27 : vector<1x1x128x192xbf16> to vector<128x192xbf16>
    %cst_20 = arith.constant dense<0.000000e+00> : vector<64x192xf32>
    %29 = tpu.matmul %26, %28, %cst_20 {dimension_numbers = #tpu.dot_dimension_numbers<[1], [0], [0], [1], [0, 0, 1, 1], [], []>} : vector<64x128xbf16>, vector<128x192xbf16>, vector<64x192xf32> -> vector<64x192xf32>
    %30 = arith.addf %23, %29 : vector<64x192xf32>
    %31 = vector.extract_strided_slice %1 {offsets = [0, 1, 1, 0], sizes = [1, 8, 8, 128], strides = [1, 1, 1, 1]} : vector<1x10x10x128xf32> to vector<1x8x8x128xf32>
    %32 = vector.shape_cast %31 : vector<1x8x8x128xf32> to vector<64x128xf32>
    %33 = arith.truncf %32 : vector<64x128xf32> to vector<64x128xbf16>
    %c1_21 = arith.constant 1 : index
    %c1_22 = arith.constant 1 : index
    %c0_23 = arith.constant 0 : index
    %c0_24 = arith.constant 0 : index
    %34 = vector.load %arg2[%c1_21, %c1_22, %c0_23, %c0_24] : memref<3x3x128x192xbf16, #tpu.memory_space<vmem>>, vector<1x1x128x192xbf16>
    %35 = vector.shape_cast %34 : vector<1x1x128x192xbf16> to vector<128x192xbf16>
    %cst_25 = arith.constant dense<0.000000e+00> : vector<64x192xf32>
    %36 = tpu.matmul %33, %35, %cst_25 {dimension_numbers = #tpu.dot_dimension_numbers<[1], [0], [0], [1], [0, 0, 1, 1], [], []>} : vector<64x128xbf16>, vector<128x192xbf16>, vector<64x192xf32> -> vector<64x192xf32>
    %37 = arith.addf %30, %36 : vector<64x192xf32>
    %38 = vector.extract_strided_slice %1 {offsets = [0, 1, 2, 0], sizes = [1, 8, 8, 128], strides = [1, 1, 1, 1]} : vector<1x10x10x128xf32> to vector<1x8x8x128xf32>
    %39 = vector.shape_cast %38 : vector<1x8x8x128xf32> to vector<64x128xf32>
    %40 = arith.truncf %39 : vector<64x128xf32> to vector<64x128xbf16>
    %c1_26 = arith.constant 1 : index
    %c2_27 = arith.constant 2 : index
    %c0_28 = arith.constant 0 : index
    %c0_29 = arith.constant 0 : index
    %41 = vector.load %arg2[%c1_26, %c2_27, %c0_28, %c0_29] : memref<3x3x128x192xbf16, #tpu.memory_space<vmem>>, vector<1x1x128x192xbf16>
    %42 = vector.shape_cast %41 : vector<1x1x128x192xbf16> to vector<128x192xbf16>
    %cst_30 = arith.constant dense<0.000000e+00> : vector<64x192xf32>
    %43 = tpu.matmul %40, %42, %cst_30 {dimension_numbers = #tpu.dot_dimension_numbers<[1], [0], [0], [1], [0, 0, 1, 1], [], []>} : vector<64x128xbf16>, vector<128x192xbf16>, vector<64x192xf32> -> vector<64x192xf32>
    %44 = arith.addf %37, %43 : vector<64x192xf32>
    %45 = vector.extract_strided_slice %1 {offsets = [0, 2, 0, 0], sizes = [1, 8, 8, 128], strides = [1, 1, 1, 1]} : vector<1x10x10x128xf32> to vector<1x8x8x128xf32>
    %46 = vector.shape_cast %45 : vector<1x8x8x128xf32> to vector<64x128xf32>
    %47 = arith.truncf %46 : vector<64x128xf32> to vector<64x128xbf16>
    %c2_31 = arith.constant 2 : index
    %c0_32 = arith.constant 0 : index
    %c0_33 = arith.constant 0 : index
    %c0_34 = arith.constant 0 : index
    %48 = vector.load %arg2[%c2_31, %c0_32, %c0_33, %c0_34] : memref<3x3x128x192xbf16, #tpu.memory_space<vmem>>, vector<1x1x128x192xbf16>
    %49 = vector.shape_cast %48 : vector<1x1x128x192xbf16> to vector<128x192xbf16>
    %cst_35 = arith.constant dense<0.000000e+00> : vector<64x192xf32>
    %50 = tpu.matmul %47, %49, %cst_35 {dimension_numbers = #tpu.dot_dimension_numbers<[1], [0], [0], [1], [0, 0, 1, 1], [], []>} : vector<64x128xbf16>, vector<128x192xbf16>, vector<64x192xf32> -> vector<64x192xf32>
    %51 = arith.addf %44, %50 : vector<64x192xf32>
    %52 = vector.extract_strided_slice %1 {offsets = [0, 2, 1, 0], sizes = [1, 8, 8, 128], strides = [1, 1, 1, 1]} : vector<1x10x10x128xf32> to vector<1x8x8x128xf32>
    %53 = vector.shape_cast %52 : vector<1x8x8x128xf32> to vector<64x128xf32>
    %54 = arith.truncf %53 : vector<64x128xf32> to vector<64x128xbf16>
    %c2_36 = arith.constant 2 : index
    %c1_37 = arith.constant 1 : index
    %c0_38 = arith.constant 0 : index
    %c0_39 = arith.constant 0 : index
    %55 = vector.load %arg2[%c2_36, %c1_37, %c0_38, %c0_39] : memref<3x3x128x192xbf16, #tpu.memory_space<vmem>>, vector<1x1x128x192xbf16>
    %56 = vector.shape_cast %55 : vector<1x1x128x192xbf16> to vector<128x192xbf16>
    %cst_40 = arith.constant dense<0.000000e+00> : vector<64x192xf32>
    %57 = tpu.matmul %54, %56, %cst_40 {dimension_numbers = #tpu.dot_dimension_numbers<[1], [0], [0], [1], [0, 0, 1, 1], [], []>} : vector<64x128xbf16>, vector<128x192xbf16>, vector<64x192xf32> -> vector<64x192xf32>
    %58 = arith.addf %51, %57 : vector<64x192xf32>
    %59 = vector.extract_strided_slice %1 {offsets = [0, 2, 2, 0], sizes = [1, 8, 8, 128], strides = [1, 1, 1, 1]} : vector<1x10x10x128xf32> to vector<1x8x8x128xf32>
    %60 = vector.shape_cast %59 : vector<1x8x8x128xf32> to vector<64x128xf32>
    %61 = arith.truncf %60 : vector<64x128xf32> to vector<64x128xbf16>
    %c2_41 = arith.constant 2 : index
    %c2_42 = arith.constant 2 : index
    %c0_43 = arith.constant 0 : index
    %c0_44 = arith.constant 0 : index
    %62 = vector.load %arg2[%c2_41, %c2_42, %c0_43, %c0_44] : memref<3x3x128x192xbf16, #tpu.memory_space<vmem>>, vector<1x1x128x192xbf16>
    %63 = vector.shape_cast %62 : vector<1x1x128x192xbf16> to vector<128x192xbf16>
    %cst_45 = arith.constant dense<0.000000e+00> : vector<64x192xf32>
    %64 = tpu.matmul %61, %63, %cst_45 {dimension_numbers = #tpu.dot_dimension_numbers<[1], [0], [0], [1], [0, 0, 1, 1], [], []>} : vector<64x128xbf16>, vector<128x192xbf16>, vector<64x192xf32> -> vector<64x192xf32>
    %65 = arith.addf %58, %64 : vector<64x192xf32>
    %c0_46 = arith.constant 0 : index
    %c0_47 = arith.constant 0 : index
    %66 = vector.load %arg3[%c0_46, %c0_47] : memref<1x192xf32, #tpu.memory_space<vmem>>, vector<1x192xf32>
    %67 = vector.broadcast %66 : vector<1x192xf32> to vector<64x192xf32>
    %68 = arith.addf %65, %67 : vector<64x192xf32>
    %cst_48 = arith.constant 0.000000e+00 : f32
    %69 = vector.broadcast %cst_48 : f32 to vector<64x192xf32>
    %70 = arith.maximumf %68, %69 : vector<64x192xf32>
    %71 = arith.truncf %70 : vector<64x192xf32> to vector<64x192xbf16>
    %c0_49 = arith.constant 0 : index
    %c0_50 = arith.constant 0 : index
    %72 = vector.load %arg4[%c0_49, %c0_50] : memref<64x192xbf16, #tpu.memory_space<vmem>>, vector<64x192xbf16>
    tpu.vector_store %arg4[%c0_49, %c0_50], %71 {strides = array<i32>} : memref<64x192xbf16, #tpu.memory_space<vmem>>, vector<64x192xbf16>,
    return
  }
  func.func @transform_0(%arg0: i32) -> (i32, i32, i32, i32) {
    %c0_i32 = arith.constant 0 : i32
    %c0_i32_0 = arith.constant 0 : i32
    %c0_i32_1 = arith.constant 0 : i32
    %c0_i32_2 = arith.constant 0 : i32
    return %arg0, %c0_i32, %c0_i32_0, %c0_i32_1 : i32, i32, i32, i32
  }
  func.func @transform_1(%arg0: i32) -> (i32, i32, i32, i32) {
    %c0_i32 = arith.constant 0 : i32
    %c0_i32_0 = arith.constant 0 : i32
    %c0_i32_1 = arith.constant 0 : i32
    %c0_i32_2 = arith.constant 0 : i32
    %c0_i32_3 = arith.constant 0 : i32
    return %c0_i32, %c0_i32_0, %c0_i32_1, %c0_i32_2 : i32, i32, i32, i32
  }
  func.func @transform_2(%arg0: i32) -> (i32, i32) {
    %c0_i32 = arith.constant 0 : i32
    %c0_i32_0 = arith.constant 0 : i32
    %c0_i32_1 = arith.constant 0 : i32
    return %c0_i32, %c0_i32_0 : i32, i32
  }
  func.func @transform_3(%arg0: i32) -> (i32, i32) {
    %c0_i32 = arith.constant 0 : i32
    %c0_i32_0 = arith.constant 0 : i32
    return %arg0, %c0_i32 : i32, i32
  }
}

module attributes {stable_mosaic.version = 11 : i64} {
  func.func @_conv3x3_kernel(%arg0: i32, %arg1: memref<1x10x10x96xbf16, #tpu.memory_space<vmem>>, %arg2: memref<3x3x96x96xbf16, #tpu.memory_space<vmem>>, %arg3: memref<1x96xf32, #tpu.memory_space<vmem>>, %arg4: memref<64x96xbf16, #tpu.memory_space<vmem>>) attributes {dimension_semantics = [#tpu.dimension_semantics<parallel>], iteration_bounds = array<i64: 2>, scalar_prefetch = 0 : i64, scratch_operands = 0 : i64, tpu.core_type = #tpu.core_type<tc>, window_params = [{transform_indices = @transform_0, window_bounds = array<i64: 1, 10, 10, 96>}, {pipeline_mode = #tpu.pipeline_mode<synchronous>, transform_indices = @transform_1, window_bounds = array<i64: 3, 3, 96, 96>}, {pipeline_mode = #tpu.pipeline_mode<synchronous>, transform_indices = @transform_2, window_bounds = array<i64: 1, 96>}, {transform_indices = @transform_3, window_bounds = array<i64: 64, 96>}]} {
    %c0 = arith.constant 0 : index
    %c0_0 = arith.constant 0 : index
    %c0_1 = arith.constant 0 : index
    %c0_2 = arith.constant 0 : index
    %0 = vector.load %arg1[%c0, %c0_0, %c0_1, %c0_2] : memref<1x10x10x96xbf16, #tpu.memory_space<vmem>>, vector<1x10x10x96xbf16>
    %1 = arith.extf %0 : vector<1x10x10x96xbf16> to vector<1x10x10x96xf32>
    %cst = arith.constant 0.000000e+00 : f32
    %2 = vector.broadcast %cst : f32 to vector<64x96xf32>
    %3 = vector.extract_strided_slice %1 {offsets = [0, 0, 0, 0], sizes = [1, 8, 8, 96], strides = [1, 1, 1, 1]} : vector<1x10x10x96xf32> to vector<1x8x8x96xf32>
    %4 = vector.shape_cast %3 : vector<1x8x8x96xf32> to vector<64x96xf32>
    %5 = arith.truncf %4 : vector<64x96xf32> to vector<64x96xbf16>
    %c0_3 = arith.constant 0 : index
    %c0_4 = arith.constant 0 : index
    %c0_5 = arith.constant 0 : index
    %c0_6 = arith.constant 0 : index
    %6 = vector.load %arg2[%c0_3, %c0_4, %c0_5, %c0_6] : memref<3x3x96x96xbf16, #tpu.memory_space<vmem>>, vector<1x1x96x96xbf16>
    %7 = vector.shape_cast %6 : vector<1x1x96x96xbf16> to vector<96x96xbf16>
    %cst_7 = arith.constant dense<0.000000e+00> : vector<64x96xf32>
    %8 = tpu.matmul %5, %7, %cst_7 {dimension_numbers = #tpu.dot_dimension_numbers<[1], [0], [0], [1], [0, 0, 1, 1], [], []>} : vector<64x96xbf16>, vector<96x96xbf16>, vector<64x96xf32> -> vector<64x96xf32>
    %9 = arith.addf %2, %8 : vector<64x96xf32>
    %10 = vector.extract_strided_slice %1 {offsets = [0, 0, 1, 0], sizes = [1, 8, 8, 96], strides = [1, 1, 1, 1]} : vector<1x10x10x96xf32> to vector<1x8x8x96xf32>
    %11 = vector.shape_cast %10 : vector<1x8x8x96xf32> to vector<64x96xf32>
    %12 = arith.truncf %11 : vector<64x96xf32> to vector<64x96xbf16>
    %c0_8 = arith.constant 0 : index
    %c1 = arith.constant 1 : index
    %c0_9 = arith.constant 0 : index
    %c0_10 = arith.constant 0 : index
    %13 = vector.load %arg2[%c0_8, %c1, %c0_9, %c0_10] : memref<3x3x96x96xbf16, #tpu.memory_space<vmem>>, vector<1x1x96x96xbf16>
    %14 = vector.shape_cast %13 : vector<1x1x96x96xbf16> to vector<96x96xbf16>
    %cst_11 = arith.constant dense<0.000000e+00> : vector<64x96xf32>
    %15 = tpu.matmul %12, %14, %cst_11 {dimension_numbers = #tpu.dot_dimension_numbers<[1], [0], [0], [1], [0, 0, 1, 1], [], []>} : vector<64x96xbf16>, vector<96x96xbf16>, vector<64x96xf32> -> vector<64x96xf32>
    %16 = arith.addf %9, %15 : vector<64x96xf32>
    %17 = vector.extract_strided_slice %1 {offsets = [0, 0, 2, 0], sizes = [1, 8, 8, 96], strides = [1, 1, 1, 1]} : vector<1x10x10x96xf32> to vector<1x8x8x96xf32>
    %18 = vector.shape_cast %17 : vector<1x8x8x96xf32> to vector<64x96xf32>
    %19 = arith.truncf %18 : vector<64x96xf32> to vector<64x96xbf16>
    %c0_12 = arith.constant 0 : index
    %c2 = arith.constant 2 : index
    %c0_13 = arith.constant 0 : index
    %c0_14 = arith.constant 0 : index
    %20 = vector.load %arg2[%c0_12, %c2, %c0_13, %c0_14] : memref<3x3x96x96xbf16, #tpu.memory_space<vmem>>, vector<1x1x96x96xbf16>
    %21 = vector.shape_cast %20 : vector<1x1x96x96xbf16> to vector<96x96xbf16>
    %cst_15 = arith.constant dense<0.000000e+00> : vector<64x96xf32>
    %22 = tpu.matmul %19, %21, %cst_15 {dimension_numbers = #tpu.dot_dimension_numbers<[1], [0], [0], [1], [0, 0, 1, 1], [], []>} : vector<64x96xbf16>, vector<96x96xbf16>, vector<64x96xf32> -> vector<64x96xf32>
    %23 = arith.addf %16, %22 : vector<64x96xf32>
    %24 = vector.extract_strided_slice %1 {offsets = [0, 1, 0, 0], sizes = [1, 8, 8, 96], strides = [1, 1, 1, 1]} : vector<1x10x10x96xf32> to vector<1x8x8x96xf32>
    %25 = vector.shape_cast %24 : vector<1x8x8x96xf32> to vector<64x96xf32>
    %26 = arith.truncf %25 : vector<64x96xf32> to vector<64x96xbf16>
    %c1_16 = arith.constant 1 : index
    %c0_17 = arith.constant 0 : index
    %c0_18 = arith.constant 0 : index
    %c0_19 = arith.constant 0 : index
    %27 = vector.load %arg2[%c1_16, %c0_17, %c0_18, %c0_19] : memref<3x3x96x96xbf16, #tpu.memory_space<vmem>>, vector<1x1x96x96xbf16>
    %28 = vector.shape_cast %27 : vector<1x1x96x96xbf16> to vector<96x96xbf16>
    %cst_20 = arith.constant dense<0.000000e+00> : vector<64x96xf32>
    %29 = tpu.matmul %26, %28, %cst_20 {dimension_numbers = #tpu.dot_dimension_numbers<[1], [0], [0], [1], [0, 0, 1, 1], [], []>} : vector<64x96xbf16>, vector<96x96xbf16>, vector<64x96xf32> -> vector<64x96xf32>
    %30 = arith.addf %23, %29 : vector<64x96xf32>
    %31 = vector.extract_strided_slice %1 {offsets = [0, 1, 1, 0], sizes = [1, 8, 8, 96], strides = [1, 1, 1, 1]} : vector<1x10x10x96xf32> to vector<1x8x8x96xf32>
    %32 = vector.shape_cast %31 : vector<1x8x8x96xf32> to vector<64x96xf32>
    %33 = arith.truncf %32 : vector<64x96xf32> to vector<64x96xbf16>
    %c1_21 = arith.constant 1 : index
    %c1_22 = arith.constant 1 : index
    %c0_23 = arith.constant 0 : index
    %c0_24 = arith.constant 0 : index
    %34 = vector.load %arg2[%c1_21, %c1_22, %c0_23, %c0_24] : memref<3x3x96x96xbf16, #tpu.memory_space<vmem>>, vector<1x1x96x96xbf16>
    %35 = vector.shape_cast %34 : vector<1x1x96x96xbf16> to vector<96x96xbf16>
    %cst_25 = arith.constant dense<0.000000e+00> : vector<64x96xf32>
    %36 = tpu.matmul %33, %35, %cst_25 {dimension_numbers = #tpu.dot_dimension_numbers<[1], [0], [0], [1], [0, 0, 1, 1], [], []>} : vector<64x96xbf16>, vector<96x96xbf16>, vector<64x96xf32> -> vector<64x96xf32>
    %37 = arith.addf %30, %36 : vector<64x96xf32>
    %38 = vector.extract_strided_slice %1 {offsets = [0, 1, 2, 0], sizes = [1, 8, 8, 96], strides = [1, 1, 1, 1]} : vector<1x10x10x96xf32> to vector<1x8x8x96xf32>
    %39 = vector.shape_cast %38 : vector<1x8x8x96xf32> to vector<64x96xf32>
    %40 = arith.truncf %39 : vector<64x96xf32> to vector<64x96xbf16>
    %c1_26 = arith.constant 1 : index
    %c2_27 = arith.constant 2 : index
    %c0_28 = arith.constant 0 : index
    %c0_29 = arith.constant 0 : index
    %41 = vector.load %arg2[%c1_26, %c2_27, %c0_28, %c0_29] : memref<3x3x96x96xbf16, #tpu.memory_space<vmem>>, vector<1x1x96x96xbf16>
    %42 = vector.shape_cast %41 : vector<1x1x96x96xbf16> to vector<96x96xbf16>
    %cst_30 = arith.constant dense<0.000000e+00> : vector<64x96xf32>
    %43 = tpu.matmul %40, %42, %cst_30 {dimension_numbers = #tpu.dot_dimension_numbers<[1], [0], [0], [1], [0, 0, 1, 1], [], []>} : vector<64x96xbf16>, vector<96x96xbf16>, vector<64x96xf32> -> vector<64x96xf32>
    %44 = arith.addf %37, %43 : vector<64x96xf32>
    %45 = vector.extract_strided_slice %1 {offsets = [0, 2, 0, 0], sizes = [1, 8, 8, 96], strides = [1, 1, 1, 1]} : vector<1x10x10x96xf32> to vector<1x8x8x96xf32>
    %46 = vector.shape_cast %45 : vector<1x8x8x96xf32> to vector<64x96xf32>
    %47 = arith.truncf %46 : vector<64x96xf32> to vector<64x96xbf16>
    %c2_31 = arith.constant 2 : index
    %c0_32 = arith.constant 0 : index
    %c0_33 = arith.constant 0 : index
    %c0_34 = arith.constant 0 : index
    %48 = vector.load %arg2[%c2_31, %c0_32, %c0_33, %c0_34] : memref<3x3x96x96xbf16, #tpu.memory_space<vmem>>, vector<1x1x96x96xbf16>
    %49 = vector.shape_cast %48 : vector<1x1x96x96xbf16> to vector<96x96xbf16>
    %cst_35 = arith.constant dense<0.000000e+00> : vector<64x96xf32>
    %50 = tpu.matmul %47, %49, %cst_35 {dimension_numbers = #tpu.dot_dimension_numbers<[1], [0], [0], [1], [0, 0, 1, 1], [], []>} : vector<64x96xbf16>, vector<96x96xbf16>, vector<64x96xf32> -> vector<64x96xf32>
    %51 = arith.addf %44, %50 : vector<64x96xf32>
    %52 = vector.extract_strided_slice %1 {offsets = [0, 2, 1, 0], sizes = [1, 8, 8, 96], strides = [1, 1, 1, 1]} : vector<1x10x10x96xf32> to vector<1x8x8x96xf32>
    %53 = vector.shape_cast %52 : vector<1x8x8x96xf32> to vector<64x96xf32>
    %54 = arith.truncf %53 : vector<64x96xf32> to vector<64x96xbf16>
    %c2_36 = arith.constant 2 : index
    %c1_37 = arith.constant 1 : index
    %c0_38 = arith.constant 0 : index
    %c0_39 = arith.constant 0 : index
    %55 = vector.load %arg2[%c2_36, %c1_37, %c0_38, %c0_39] : memref<3x3x96x96xbf16, #tpu.memory_space<vmem>>, vector<1x1x96x96xbf16>
    %56 = vector.shape_cast %55 : vector<1x1x96x96xbf16> to vector<96x96xbf16>
    %cst_40 = arith.constant dense<0.000000e+00> : vector<64x96xf32>
    %57 = tpu.matmul %54, %56, %cst_40 {dimension_numbers = #tpu.dot_dimension_numbers<[1], [0], [0], [1], [0, 0, 1, 1], [], []>} : vector<64x96xbf16>, vector<96x96xbf16>, vector<64x96xf32> -> vector<64x96xf32>
    %58 = arith.addf %51, %57 : vector<64x96xf32>
    %59 = vector.extract_strided_slice %1 {offsets = [0, 2, 2, 0], sizes = [1, 8, 8, 96], strides = [1, 1, 1, 1]} : vector<1x10x10x96xf32> to vector<1x8x8x96xf32>
    %60 = vector.shape_cast %59 : vector<1x8x8x96xf32> to vector<64x96xf32>
    %61 = arith.truncf %60 : vector<64x96xf32> to vector<64x96xbf16>
    %c2_41 = arith.constant 2 : index
    %c2_42 = arith.constant 2 : index
    %c0_43 = arith.constant 0 : index
    %c0_44 = arith.constant 0 : index
    %62 = vector.load %arg2[%c2_41, %c2_42, %c0_43, %c0_44] : memref<3x3x96x96xbf16, #tpu.memory_space<vmem>>, vector<1x1x96x96xbf16>
    %63 = vector.shape_cast %62 : vector<1x1x96x96xbf16> to vector<96x96xbf16>
    %cst_45 = arith.constant dense<0.000000e+00> : vector<64x96xf32>
    %64 = tpu.matmul %61, %63, %cst_45 {dimension_numbers = #tpu.dot_dimension_numbers<[1], [0], [0], [1], [0, 0, 1, 1], [], []>} : vector<64x96xbf16>, vector<96x96xbf16>, vector<64x96xf32> -> vector<64x96xf32>
    %65 = arith.addf %58, %64 : vector<64x96xf32>
    %c0_46 = arith.constant 0 : index
    %c0_47 = arith.constant 0 : index
    %66 = vector.load %arg3[%c0_46, %c0_47] : memref<1x96xf32, #tpu.memory_space<vmem>>, vector<1x96xf32>
    %67 = vector.broadcast %66 : vector<1x96xf32> to vector<64x96xf32>
    %68 = arith.addf %65, %67 : vector<64x96xf32>
    %cst_48 = arith.constant 0.000000e+00 : f32
    %69 = vector.broadcast %cst_48 : f32 to vector<64x96xf32>
    %70 = arith.maximumf %68, %69 : vector<64x96xf32>
    %71 = arith.truncf %70 : vector<64x96xf32> to vector<64x96xbf16>
    %c0_49 = arith.constant 0 : index
    %c0_50 = arith.constant 0 : index
    %72 = vector.load %arg4[%c0_49, %c0_50] : memref<64x96xbf16, #tpu.memory_space<vmem>>, vector<64x96xbf16>
    tpu.vector_store %arg4[%c0_49, %c0_50], %71 {strides = array<i32>} : memref<64x96xbf16, #tpu.memory_space<vmem>>, vector<64x96xbf16>,
    return
  }
  func.func @transform_0(%arg0: i32) -> (i32, i32, i32, i32) {
    %c0_i32 = arith.constant 0 : i32
    %c0_i32_0 = arith.constant 0 : i32
    %c0_i32_1 = arith.constant 0 : i32
    %c0_i32_2 = arith.constant 0 : i32
    return %arg0, %c0_i32, %c0_i32_0, %c0_i32_1 : i32, i32, i32, i32
  }
  func.func @transform_1(%arg0: i32) -> (i32, i32, i32, i32) {
    %c0_i32 = arith.constant 0 : i32
    %c0_i32_0 = arith.constant 0 : i32
    %c0_i32_1 = arith.constant 0 : i32
    %c0_i32_2 = arith.constant 0 : i32
    %c0_i32_3 = arith.constant 0 : i32
    return %c0_i32, %c0_i32_0, %c0_i32_1, %c0_i32_2 : i32, i32, i32, i32
  }
  func.func @transform_2(%arg0: i32) -> (i32, i32) {
    %c0_i32 = arith.constant 0 : i32
    %c0_i32_0 = arith.constant 0 : i32
    %c0_i32_1 = arith.constant 0 : i32
    return %c0_i32, %c0_i32_0 : i32, i32
  }
  func.func @transform_3(%arg0: i32) -> (i32, i32) {
    %c0_i32 = arith.constant 0 : i32
    %c0_i32_0 = arith.constant 0 : i32
    return %arg0, %c0_i32 : i32, i32
  }
}

</mosaic_0001>

<llo_original>
// kernel: inception_a_forward.5
$region0: #{inception_a_forward.5}
  #allocation0 [shape = 'u32[]', space=smem, size = 0x4, offset = 0x4, fixed_abs, tag = 'smem constant byte address 0x4 - core index']
  #allocation1 [shape = 'u32[144,128]{1,0:T(1,128)}', space=vmem, size = 0x12000, scoped, tag = 'internal scratch']
  %s0 = inlined_call_operand.vmem [shape: bf16[2,10,10,96], index: 0, kind: input, shape index: {}]
  %s1 = inlined_call_operand.vmem [shape: bf16[3,3,96,96], index: 1, kind: input, shape index: {}]
  %s2 = inlined_call_operand.vmem [shape: f32[1,96], index: 2, kind: input, shape index: {}]
  %s3 = inlined_call_operand.vmem [shape: bf16[128,96], index: 3, kind: output, shape index: {}]
  %s4 = sld [smem:[#allocation0]]
  $region45: #{inception_a_forward.5} parent=0
    _
  %s6 = ssub.s32 1, %s4
  %s7 = scalar_select 0, %s6, %s4
  loop: start=0, step=1, limit=4
  $region2: #{inception_a_forward.5} parent=0 // loop_pre_header
    _
  $region3: #{inception_a_forward.5} parent=0 // loop_header
    %s9 = sphi 0, %s13
    %p10 = scmp.ge.s32.totalorder %s9, 4
    %s19 = sphi 0, %s21
    %s22 = sphi 0, %s19
    %s23 = sphi 0, %s22
    %s39 = sphi 0, %s23
    %s43 = sphi 0, %s43
    %s45 = sphi 0, %s43
    %s46 = sphi 0, %s45
    %s60 = sphi 0, %s46
    %s64 = sphi 0, %s64
    %s66 = sphi 0, %s64
    %s67 = sphi 0, %s66
    %s81 = sphi 0, %s67
    %s87 = sphi 0, %s89
    %s90 = sphi 0, %s87
    %s91 = sphi 0, %s90
    %s107 = sphi 0, %s91
  $region4: #{inception_a_forward.5} parent=0 // loop_header_branch
    %12 = sbr.rel (%p10) target = $region8
  $region5: #{inception_a_forward.5} parent=0 // loop_body
    %s14 = ssub.s32 %s9, 1
    %s15 = ssub.s32 %s9, 2
    %s16 = sadd.s32 %s9, 1
    %s17 = ssub.s32 %s9, %s16
    %p18 = scmp.eq.s32.totalorder %s17, 0
    %s20 = sadd.s32 %s19, 1
    %s21 = scalar_select %p18, %s19, %s20
    %p24 = pneg %p18
    %p25 = scmp.eq.s32.totalorder %s9, 1
    %p26 = por %p24, %p25
    %p27 = scmp.ne.s32.totalorder %s19, %s22
    %p28 = scmp.eq.s32.totalorder %s9, 0
    %p29 = por %p27, %p28
    %p30 = scmp.ne.s32.totalorder %s19, %s22
    %p31 = scmp.eq.s32.totalorder %s14, 1
    %p32 = por %p30, %p31
    %p33 = scmp.ne.s32.totalorder %s22, %s23
    %p34 = scmp.eq.s32.totalorder %s14, 0
    %p35 = por %p33, %p34
    %p36 = scmp.ne.s32.totalorder %s22, %s23
    %p37 = scmp.eq.s32.totalorder %s15, 1
    %p38 = por %p36, %p37
    %p40 = scmp.ne.s32.totalorder %s23, %s39
    %p41 = scmp.eq.s32.totalorder %s15, 0
    %p42 = por %p40, %p41
    %s44 = sadd.s32 %s43, 1
    %p47 = scmp.eq.s32.totalorder %s9, 1
    %p48 = scmp.ne.s32.totalorder %s43, %s45
    %p49 = scmp.eq.s32.totalorder %s9, 0
    %p50 = por %p48, %p49
    %p51 = scmp.ne.s32.totalorder %s43, %s45
    %p52 = scmp.eq.s32.totalorder %s14, 1
    %p53 = por %p51, %p52
    %p54 = scmp.ne.s32.totalorder %s45, %s46
    %p55 = scmp.eq.s32.totalorder %s14, 0
    %p56 = por %p54, %p55
    %p57 = scmp.ne.s32.totalorder %s45, %s46
    %p58 = scmp.eq.s32.totalorder %s15, 1
    %p59 = por %p57, %p58
    %p61 = scmp.ne.s32.totalorder %s46, %s60
    %p62 = scmp.eq.s32.totalorder %s15, 0
    %p63 = por %p61, %p62
    %s65 = sadd.s32 %s64, 1
    %p68 = scmp.eq.s32.totalorder %s9, 1
    %p69 = scmp.ne.s32.totalorder %s64, %s66
    %p70 = scmp.eq.s32.totalorder %s9, 0
    %p71 = por %p69, %p70
    %p72 = scmp.ne.s32.totalorder %s64, %s66
    %p73 = scmp.eq.s32.totalorder %s14, 1
    %p74 = por %p72, %p73
    %p75 = scmp.ne.s32.totalorder %s66, %s67
    %p76 = scmp.eq.s32.totalorder %s14, 0
    %p77 = por %p75, %p76
    %p78 = scmp.ne.s32.totalorder %s66, %s67
    %p79 = scmp.eq.s32.totalorder %s15, 1
    %p80 = por %p78, %p79
    %p82 = scmp.ne.s32.totalorder %s67, %s81
    %p83 = scmp.eq.s32.totalorder %s15, 0
    %p84 = por %p82, %p83
    %s85 = ssub.s32 %s9, %s16
    %p86 = scmp.eq.s32.totalorder %s85, 0
    %s88 = sadd.s32 %s87, 1
    %s89 = scalar_select %p86, %s87, %s88
    %p92 = pneg %p86
    %p93 = scmp.eq.s32.totalorder %s9, 1
    %p94 = por %p92, %p93
    %p95 = scmp.ne.s32.totalorder %s87, %s90
    %p96 = scmp.eq.s32.totalorder %s9, 0
    %p97 = por %p95, %p96
    %p98 = scmp.ne.s32.totalorder %s87, %s90
    %p99 = scmp.eq.s32.totalorder %s14, 1
    %p100 = por %p98, %p99
    %p101 = scmp.ne.s32.totalorder %s90, %s91
    %p102 = scmp.eq.s32.totalorder %s14, 0
    %p103 = por %p101, %p102
    %p104 = scmp.ne.s32.totalorder %s90, %s91
    %p105 = scmp.eq.s32.totalorder %s15, 1
    %p106 = por %p104, %p105
    %p108 = scmp.ne.s32.totalorder %s91, %s107
    %p109 = scmp.eq.s32.totalorder %s15, 0
    %p110 = por %p108, %p109
    %p111 = scmp.le.s32.totalorder 1, %s9
    %p112 = scmp.lt.s32.totalorder %s9, 3
    %p113 = pnand %p111, %p112
    %p114 = pneg %p113
    // Predicated region
    $region9: #{inception_a_forward.5} parent=5 // pred_check
      _
    $region10: #{inception_a_forward.5} parent=5 // pred_check_branch
      %116 = sbr.rel (%p113) target = $region12
    $region11: #{inception_a_forward.5} parent=5 // pred_region
      %s117 = ssub.s32 %s9, 1
      // Predicated region
      $region13: #{inception_a_forward.5} parent=11 // pred_check
        %p118 = pneg %p56
      $region14: #{inception_a_forward.5} parent=11 // pred_check_branch
        %120 = sbr.rel (%p118) target = $region16
      $region15: #{inception_a_forward.5} parent=11 // pred_region
        _
      $region16: #{inception_a_forward.5} parent=11 // pred_fallthru
        _
      // Predicated region
      $region17: #{inception_a_forward.5} parent=11 // pred_check
        %p121 = pneg %p77
      $region18: #{inception_a_forward.5} parent=11 // pred_check_branch
        %123 = sbr.rel (%p121) target = $region20
      $region19: #{inception_a_forward.5} parent=11 // pred_region
        _
      $region20: #{inception_a_forward.5} parent=11 // pred_fallthru
        _
    $region12: #{inception_a_forward.5} parent=5 // pred_fallthru
      _
    %p124 = scmp.lt.s32.totalorder %s9, 2
    // Predicated region
    $region21: #{inception_a_forward.5} parent=5 // pred_check
      %p125 = pneg %p124
    $region22: #{inception_a_forward.5} parent=5 // pred_check_branch
      %127 = sbr.rel (%p125) target = $region24
    $region23: #{inception_a_forward.5} parent=5 // pred_region
      // Predicated region
      $region25: #{inception_a_forward.5} parent=23 // pred_check
        %p128 = pneg %p29
      $region26: #{inception_a_forward.5} parent=23 // pred_check_branch
        %130 = sbr.rel (%p128) target = $region28
      $region27: #{inception_a_forward.5} parent=23 // pred_region
        %p131 = scmp.lt.s32.totalorder %s9, 1
        %s132 = scalar_select %p131, %s9, 1
        %s133 = smul.addr %s132, 20
        %s134 = smul.addr %s133, 4
        %s135 = scalar_lea.vmem %s0, %s134
      $region28: #{inception_a_forward.5} parent=23 // pred_fallthru
        _
    $region24: #{inception_a_forward.5} parent=5 // pred_fallthru
      _
    %p136 = scmp.le.s32.totalorder 1, %s9
    %p137 = scmp.lt.s32.totalorder %s9, 3
    %p138 = pnand %p136, %p137
    %p139 = pneg %p138
    // Predicated region
    $region29: #{inception_a_forward.5} parent=5 // pred_check
      _
    $region30: #{inception_a_forward.5} parent=5 // pred_check_branch
      %141 = sbr.rel (%p138) target = $region32
    $region31: #{inception_a_forward.5} parent=5 // pred_region
      %s142 = ssub.s32 %s9, 1
      %p143 = scmp.lt.s32.totalorder %s14, 1
      %s144 = scalar_select %p143, %s14, 1
      %s145 = smul.addr %s144, 20
      %s146 = smul.addr %s145, 4
      %s147 = scalar_lea.vmem %s0, %s146
      %p148 = pneg %p35
      %p149 = pneg %p32
      %p150 = pneg %p56
      %p151 = pneg %p53
      %p152 = pneg %p77
      %p153 = pneg %p74
      %p154 = pneg %p103
      %p155 = pneg %p100
      %s156 = smul.u32 8, %s14
      %p157 = scmp.lt.s32.totalorder %s156, 15
      %s158 = scalar_select %p157, %s156, 15
      %s159 = smul.addr %s158, 4
      %s160 = scalar_lea.vmem %s3, %s159
      %p161 = scmp.lt.s32.totalorder %s14, 1
      %s162 = scalar_select %p161, %s14, 1
      %s163 = smul.addr %s162, 20
      %s164 = smul.addr %s163, 4
      %s165 = scalar_lea.vmem %s0, %s164
      %s166 = smul.u32 8, %s14
      %p167 = scmp.lt.s32.totalorder %s166, 15
      %s168 = scalar_select %p167, %s166, 15
      %s169 = smul.addr %s168, 4
      %s170 = scalar_lea.vmem %s3, %s169
      %s171 = smul.u32 8, %s14
      %v173 = vld [vmem:[%s165] sm:$0xf]
      %v174 = vld [vmem:[%s165 + $0x4] sm:$0x1]
      %v175 = vld [vmem:[%s165 + $0x8] sm:$0xf]
      %v176 = vld [vmem:[%s165 + $0xc] sm:$0x1]
      %v177 = vld [vmem:[%s165 + $0x10] sm:$0xf]
      %v178 = vld [vmem:[%s165 + $0x14] sm:$0x1]
      %v179 = vld [vmem:[%s165 + $0x18] sm:$0xf]
      %v180 = vld [vmem:[%s165 + $0x1c] sm:$0x1]
      %v181 = vld [vmem:[%s165 + $0x20] sm:$0xf]
      %v182 = vld [vmem:[%s165 + $0x24] sm:$0x1]
      %v183 = vld [vmem:[%s165 + $0x28] sm:$0xf]
      %v184 = vld [vmem:[%s165 + $0x2c] sm:$0x1]
      %v185 = vld [vmem:[%s165 + $0x30] sm:$0xf]
      %v186 = vld [vmem:[%s165 + $0x34] sm:$0x1]
      %v187 = vld [vmem:[%s165 + $0x38] sm:$0xf]
      %v188 = vld [vmem:[%s165 + $0x3c] sm:$0x1]
      %v189 = vld [vmem:[%s165 + $0x40] sm:$0xf]
      %v190 = vld [vmem:[%s165 + $0x44] sm:$0x1]
      %v191 = vld [vmem:[%s165 + $0x48] sm:$0xf]
      %v192 = vld [vmem:[%s165 + $0x4c] sm:$0x1]
      %v193 = vunpack.c.l.bf16 %v173
      %v194 = vunpack.c.l.bf16 %v174
      %v195 = vunpack.c.l.bf16 %v175
      %v196 = vunpack.c.l.bf16 %v176
      %v197 = vunpack.c.l.bf16 %v177
      %v198 = vunpack.c.l.bf16 %v178
      %v199 = vunpack.c.l.bf16 %v179
      %v200 = vunpack.c.l.bf16 %v180
      %v201 = vunpack.c.l.bf16 %v181
      %v202 = vunpack.c.l.bf16 %v182
      %v203 = vunpack.c.l.bf16 %v183
      %v204 = vunpack.c.l.bf16 %v184
      %v205 = vunpack.c.l.bf16 %v185
      %v206 = vunpack.c.l.bf16 %v186
      %v207 = vunpack.c.l.bf16 %v187
      %v208 = vunpack.c.l.bf16 %v188
      %v209 = vunpack.c.l.bf16 %v189
      %v210 = vunpack.c.l.bf16 %v190
      %v211 = vunpack.c.l.bf16 %v191
      %v212 = vunpack.c.l.bf16 %v192
      %v213 = vpack.c.bf16 %v195, %v193
      %v214 = vpack.c.bf16 %v199, %v197
      %v215 = vpack.c.bf16 %v203, %v201
      %v216 = vpack.c.bf16 %v207, %v205
      %v217 = vld [vmem:[%s1] sm:$0xf]
      %v218 = vld [vmem:[%s1 + $0x4] sm:$0xf]
      %v219 = vld [vmem:[%s1 + $0x8] sm:$0xf]
      %v220 = vld [vmem:[%s1 + $0xc] sm:$0xf]
      %v221 = vld [vmem:[%s1 + $0x10] sm:$0xf]
      %v222 = vld [vmem:[%s1 + $0x14] sm:$0xf]
      %v223 = vld [vmem:[%s1 + $0x18] sm:$0xf]
      %v224 = vld [vmem:[%s1 + $0x1c] sm:$0xf]
      %v225 = vld [vmem:[%s1 + $0x20] sm:$0xf]
      %v226 = vld [vmem:[%s1 + $0x24] sm:$0xf]
      %v227 = vld [vmem:[%s1 + $0x28] sm:$0xf]
      %v228 = vld [vmem:[%s1 + $0x2c] sm:$0xf]
      %vm245 = vcmask 1046528
      %v246 = vrot.slane %v193, 1
      %v247 = vrot.slane %v194, 1
      %v248 = vsel %vm245, %v246, %v247
      %v249 = vrot.slane %v195, 1
      %v250 = vrot.slane %v196, 1
      %v251 = vsel %vm245, %v249, %v250
      %v252 = vrot.slane %v197, 1
      %v253 = vrot.slane %v198, 1
      %v254 = vsel %vm245, %v252, %v253
      %v255 = vrot.slane %v199, 1
      %v256 = vrot.slane %v200, 1
      %v257 = vsel %vm245, %v255, %v256
      %v258 = vrot.slane %v201, 1
      %v259 = vrot.slane %v202, 1
      %v260 = vsel %vm245, %v258, %v259
      %v261 = vrot.slane %v203, 1
      %v262 = vrot.slane %v204, 1
      %v263 = vsel %vm245, %v261, %v262
      %v264 = vrot.slane %v205, 1
      %v265 = vrot.slane %v206, 1
      %v266 = vsel %vm245, %v264, %v265
      %v267 = vrot.slane %v207, 1
      %v268 = vrot.slane %v208, 1
      %v269 = vsel %vm245, %v267, %v268
      %v278 = vpack.c.bf16 %v251, %v248
      %v279 = vpack.c.bf16 %v257, %v254
      %v280 = vpack.c.bf16 %v263, %v260
      %v281 = vpack.c.bf16 %v269, %v266
      %s282 = scalar_lea.vmem %s1, 48
      %v283 = vld [vmem:[%s282] sm:$0xf]
      %v284 = vld [vmem:[%s282 + $0x4] sm:$0xf]
      %v285 = vld [vmem:[%s282 + $0x8] sm:$0xf]
      %v286 = vld [vmem:[%s282 + $0xc] sm:$0xf]
      %v287 = vld [vmem:[%s282 + $0x10] sm:$0xf]
      %v288 = vld [vmem:[%s282 + $0x14] sm:$0xf]
      %v289 = vld [vmem:[%s282 + $0x18] sm:$0xf]
      %v290 = vld [vmem:[%s282 + $0x1c] sm:$0xf]
      %v291 = vld [vmem:[%s282 + $0x20] sm:$0xf]
      %v292 = vld [vmem:[%s282 + $0x24] sm:$0xf]
      %v293 = vld [vmem:[%s282 + $0x28] sm:$0xf]
      %v294 = vld [vmem:[%s282 + $0x2c] sm:$0xf]
      %v307 = vunpack.c.l.b16 %v283
      %v308 = vunpack.c.l.b16 %v284
      %v309 = vunpack.c.l.b16 %v285
      %v310 = vunpack.c.l.b16 %v286
      %v311 = vunpack.c.l.b16 %v287
      %v312 = vunpack.c.l.b16 %v288
      %v313 = vunpack.c.l.b16 %v289
      %v314 = vunpack.c.l.b16 %v290
      %v315 = vunpack.c.l.b16 %v291
      %v316 = vunpack.c.l.b16 %v292
      %v317 = vunpack.c.l.b16 %v293
      %v318 = vunpack.c.l.b16 %v294
      %v319 = vpack.c.b16 %v308, %v307
      %v320 = vpack.c.b16 %v310, %v309
      %v321 = vpack.c.b16 %v312, %v311
      %v322 = vpack.c.b16 %v314, %v313
      %v323 = vpack.c.b16 %v316, %v315
      %v324 = vpack.c.b16 %v318, %v317
      %vm331 = vcmask 785408
      %v333 = vsel %vm331, %v278, 0
      %v336 = vsel %vm331, %v279, 0
      %v339 = vsel %vm331, %v280, 0
      %v342 = vsel %vm331, %v281, 0
      %344 = vmatprep.subr.bf16.mxu0 0
      %345 = vmatpush1.bf16.msra.mxu0 0
      %346 = vmatprep.subr.bf16.mxu0 0
      %347 = vmatpush1.bf16.msra.mxu0 0
      %348 = vmatprep.subr.bf16.mxu0 0
      %349 = vmatpush1.bf16.msra.mxu0 %v324
      %350 = vmatprep.subr.bf16.mxu0 0
      %351 = vmatpush1.bf16.msra.mxu0 %v323
      %352 = vmatprep.subr.bf16.mxu0 0
      %353 = vmatpush1.bf16.msra.mxu0 %v322
      %354 = vmatprep.subr.bf16.mxu0 0
      %355 = vmatpush1.bf16.msra.mxu0 %v321
      %356 = vmatprep.subr.bf16.mxu0 0
      %357 = vmatpush1.bf16.msra.mxu0 %v320
      %358 = vmatprep.subr.bf16.mxu0 0
      %359 = vmatpush1.bf16.msra.mxu0 %v319
      %360 = vmatprep.subr.bf16.mxu0 0
      %361 = vmatpush2.bf16.msra.mxu0 0
      %362 = vmatprep.subr.bf16.mxu0 0
      %363 = vmatpush2.bf16.msra.mxu0 0
      %364 = vmatprep.subr.bf16.mxu0 0
      %365 = vmatpush2.bf16.msra.mxu0 0
      %366 = vmatprep.subr.bf16.mxu0 0
      %367 = vmatpush2.bf16.msra.mxu0 0
      %368 = vmatprep.subr.bf16.mxu0 0
      %369 = vmatpush2.bf16.msra.mxu0 0
      %370 = vmatprep.subr.bf16.mxu0 0
      %371 = vmatpush2.bf16.msra.mxu0 0
      %372 = vmatprep.subr.bf16.mxu0 0
      %373 = vmatpush2.bf16.msra.mxu0 0
      %374 = vmatprep.subr.bf16.mxu0 0
      %375 = vmatpush2.bf16.msra.mxu0 0
      %376 = vmatprep.mubr.bf16.mxu0 0
      %377 = vmatmul.mubr.bf16.gmra.mxu0 %v333
      %v378 = vpop.f32.mrf.mxu0
      %v379 = vadd.f32 0.0, %v378
      %v380 = vpop.f32.mrf.mxu0
      %v381 = vpop.f32.mrf.mxu0
      %v382 = vadd.f32 0.0, %v381
      %v383 = vpop.f32.mrf.mxu0
      %384 = vmatprep.mubr.bf16.mxu0 0
      %385 = vmatmul.mubr.bf16.gmra.mxu0 %v336
      %v386 = vpop.f32.mrf.mxu0
      %v387 = vadd.f32 0.0, %v386
      %v388 = vpop.f32.mrf.mxu0
      %v389 = vpop.f32.mrf.mxu0
      %v390 = vadd.f32 0.0, %v389
      %v391 = vpop.f32.mrf.mxu0
      %392 = vmatprep.mubr.bf16.mxu0 0
      %393 = vmatmul.mubr.bf16.gmra.mxu0 %v339
      %v394 = vpop.f32.mrf.mxu0
      %v395 = vadd.f32 0.0, %v394
      %v396 = vpop.f32.mrf.mxu0
      %v397 = vpop.f32.mrf.mxu0
      %v398 = vadd.f32 0.0, %v397
      %v399 = vpop.f32.mrf.mxu0
      %400 = vmatprep.mubr.bf16.mxu0 0
      %401 = vmatmul.mubr.bf16.gmra.mxu0 %v342
      %v402 = vpop.f32.mrf.mxu0
      %v403 = vadd.f32 0.0, %v402
      %v404 = vpop.f32.mrf.mxu0
      %v405 = vpop.f32.mrf.mxu0
      %v406 = vadd.f32 0.0, %v405
      %v407 = vpop.f32.mrf.mxu0
      %408 = vdwg.mxu0
      %v421 = vunpack.c.l.b16 %v217
      %v422 = vunpack.c.l.b16 %v218
      %v423 = vunpack.c.l.b16 %v219
      %v424 = vunpack.c.l.b16 %v220
      %v425 = vunpack.c.l.b16 %v221
      %v426 = vunpack.c.l.b16 %v222
      %v427 = vunpack.c.l.b16 %v223
      %v428 = vunpack.c.l.b16 %v224
      %v429 = vunpack.c.l.b16 %v225
      %v430 = vunpack.c.l.b16 %v226
      %v431 = vunpack.c.l.b16 %v227
      %v432 = vunpack.c.l.b16 %v228
      %v433 = vpack.c.b16 %v422, %v421
      %v434 = vpack.c.b16 %v424, %v423
      %v435 = vpack.c.b16 %v426, %v425
      %v436 = vpack.c.b16 %v428, %v427
      %v437 = vpack.c.b16 %v430, %v429
      %v438 = vpack.c.b16 %v432, %v431
      %v446 = vsel %vm331, %v213, 0
      %v449 = vsel %vm331, %v214, 0
      %v452 = vsel %vm331, %v215, 0
      %v455 = vsel %vm331, %v216, 0
      %457 = vmatprep.subr.bf16.mxu0 0
      %458 = vmatpush1.bf16.msra.mxu0 0
      %459 = vmatprep.subr.bf16.mxu0 0
      %460 = vmatpush1.bf16.msra.mxu0 0
      %461 = vmatprep.subr.bf16.mxu0 0
      %462 = vmatpush1.bf16.msra.mxu0 %v438
      %463 = vmatprep.subr.bf16.mxu0 0
      %464 = vmatpush1.bf16.msra.mxu0 %v437
      %465 = vmatprep.subr.bf16.mxu0 0
      %466 = vmatpush1.bf16.msra.mxu0 %v436
      %467 = vmatprep.subr.bf16.mxu0 0
      %468 = vmatpush1.bf16.msra.mxu0 %v435
      %469 = vmatprep.subr.bf16.mxu0 0
      %470 = vmatpush1.bf16.msra.mxu0 %v434
      %471 = vmatprep.subr.bf16.mxu0 0
      %472 = vmatpush1.bf16.msra.mxu0 %v433
      %473 = vmatprep.subr.bf16.mxu0 0
      %474 = vmatpush2.bf16.msra.mxu0 0
      %475 = vmatprep.subr.bf16.mxu0 0
      %476 = vmatpush2.bf16.msra.mxu0 0
      %477 = vmatprep.subr.bf16.mxu0 0
      %478 = vmatpush2.bf16.msra.mxu0 0
      %479 = vmatprep.subr.bf16.mxu0 0
      %480 = vmatpush2.bf16.msra.mxu0 0
      %481 = vmatprep.subr.bf16.mxu0 0
      %482 = vmatpush2.bf16.msra.mxu0 0
      %483 = vmatprep.subr.bf16.mxu0 0
      %484 = vmatpush2.bf16.msra.mxu0 0
      %485 = vmatprep.subr.bf16.mxu0 0
      %486 = vmatpush2.bf16.msra.mxu0 0
      %487 = vmatprep.subr.bf16.mxu0 0
      %488 = vmatpush2.bf16.msra.mxu0 0
      %489 = vmatprep.mubr.bf16.mxu0 0
      %490 = vmatmul.mubr.bf16.gmra.mxu0 %v446
      %v491 = vpop.f32.mrf.mxu0
      %v492 = vadd.f32 %v379, %v491
      %v493 = vpop.f32.mrf.mxu0
      %v494 = vpop.f32.mrf.mxu0
      %v495 = vadd.f32 %v382, %v494
      %v496 = vpop.f32.mrf.mxu0
      %497 = vmatprep.mubr.bf16.mxu0 0
      %498 = vmatmul.mubr.bf16.gmra.mxu0 %v449
      %v499 = vpop.f32.mrf.mxu0
      %v500 = vadd.f32 %v387, %v499
      %v501 = vpop.f32.mrf.mxu0
      %v502 = vpop.f32.mrf.mxu0
      %v503 = vadd.f32 %v390, %v502
      %v504 = vpop.f32.mrf.mxu0
      %505 = vmatprep.mubr.bf16.mxu0 0
      %506 = vmatmul.mubr.bf16.gmra.mxu0 %v452
      %v507 = vpop.f32.mrf.mxu0
      %v508 = vadd.f32 %v395, %v507
      %v509 = vpop.f32.mrf.mxu0
      %v510 = vpop.f32.mrf.mxu0
      %v511 = vadd.f32 %v398, %v510
      %v512 = vpop.f32.mrf.mxu0
      %513 = vmatprep.mubr.bf16.mxu0 0
      %514 = vmatmul.mubr.bf16.gmra.mxu0 %v455
      %v515 = vpop.f32.mrf.mxu0
      %v516 = vadd.f32 %v403, %v515
      %v517 = vpop.f32.mrf.mxu0
      %v518 = vpop.f32.mrf.mxu0
      %v519 = vadd.f32 %v406, %v518
      %v520 = vpop.f32.mrf.mxu0
      %521 = vdwg.mxu0
      %vm522 = vcmask 1045504
      %v523 = vrot.slane %v193, 2
      %v524 = vrot.slane %v194, 2
      %v525 = vsel %vm522, %v523, %v524
      %v526 = vrot.slane %v195, 2
      %v527 = vrot.slane %v196, 2
      %v528 = vsel %vm522, %v526, %v527
      %v529 = vrot.slane %v197, 2
      %v530 = vrot.slane %v198, 2
      %v531 = vsel %vm522, %v529, %v530
      %v532 = vrot.slane %v199, 2
      %v533 = vrot.slane %v200, 2
      %v534 = vsel %vm522, %v532, %v533
      %v535 = vrot.slane %v201, 2
      %v536 = vrot.slane %v202, 2
      %v537 = vsel %vm522, %v535, %v536
      %v538 = vrot.slane %v203, 2
      %v539 = vrot.slane %v204, 2
      %v540 = vsel %vm522, %v538, %v539
      %v541 = vrot.slane %v205, 2
      %v542 = vrot.slane %v206, 2
      %v543 = vsel %vm522, %v541, %v542
      %v544 = vrot.slane %v207, 2
      %v545 = vrot.slane %v208, 2
      %v546 = vsel %vm522, %v544, %v545
      %v555 = vpack.c.bf16 %v528, %v525
      %v556 = vpack.c.bf16 %v534, %v531
      %v557 = vpack.c.bf16 %v540, %v537
      %v558 = vpack.c.bf16 %v546, %v543
      %s559 = scalar_lea.vmem %s1, 96
      %v560 = vld [vmem:[%s559] sm:$0xf]
      %v561 = vld [vmem:[%s559 + $0x4] sm:$0xf]
      %v562 = vld [vmem:[%s559 + $0x8] sm:$0xf]
      %v563 = vld [vmem:[%s559 + $0xc] sm:$0xf]
      %v564 = vld [vmem:[%s559 + $0x10] sm:$0xf]
      %v565 = vld [vmem:[%s559 + $0x14] sm:$0xf]
      %v566 = vld [vmem:[%s559 + $0x18] sm:$0xf]
      %v567 = vld [vmem:[%s559 + $0x1c] sm:$0xf]
      %v568 = vld [vmem:[%s559 + $0x20] sm:$0xf]
      %v569 = vld [vmem:[%s559 + $0x24] sm:$0xf]
      %v570 = vld [vmem:[%s559 + $0x28] sm:$0xf]
      %v571 = vld [vmem:[%s559 + $0x2c] sm:$0xf]
      %v584 = vunpack.c.l.b16 %v560
      %v585 = vunpack.c.l.b16 %v561
      %v586 = vunpack.c.l.b16 %v562
      %v587 = vunpack.c.l.b16 %v563
      %v588 = vunpack.c.l.b16 %v564
      %v589 = vunpack.c.l.b16 %v565
      %v590 = vunpack.c.l.b16 %v566
      %v591 = vunpack.c.l.b16 %v567
      %v592 = vunpack.c.l.b16 %v568
      %v593 = vunpack.c.l.b16 %v569
      %v594 = vunpack.c.l.b16 %v570
      %v595 = vunpack.c.l.b16 %v571
      %v596 = vpack.c.b16 %v585, %v584
      %v597 = vpack.c.b16 %v587, %v586
      %v598 = vpack.c.b16 %v589, %v588
      %v599 = vpack.c.b16 %v591, %v590
      %v600 = vpack.c.b16 %v593, %v592
      %v601 = vpack.c.b16 %v595, %v594
      %v609 = vsel %vm331, %v555, 0
      %v612 = vsel %vm331, %v556, 0
      %v615 = vsel %vm331, %v557, 0
      %v618 = vsel %vm331, %v558, 0
      %620 = vmatprep.subr.bf16.mxu0 0
      %621 = vmatpush1.bf16.msra.mxu0 0
      %622 = vmatprep.subr.bf16.mxu0 0
      %623 = vmatpush1.bf16.msra.mxu0 0
      %624 = vmatprep.subr.bf16.mxu0 0
      %625 = vmatpush1.bf16.msra.mxu0 %v601
      %626 = vmatprep.subr.bf16.mxu0 0
      %627 = vmatpush1.bf16.msra.mxu0 %v600
      %628 = vmatprep.subr.bf16.mxu0 0
      %629 = vmatpush1.bf16.msra.mxu0 %v599
      %630 = vmatprep.subr.bf16.mxu0 0
      %631 = vmatpush1.bf16.msra.mxu0 %v598
      %632 = vmatprep.subr.bf16.mxu0 0
      %633 = vmatpush1.bf16.msra.mxu0 %v597
      %634 = vmatprep.subr.bf16.mxu0 0
      %635 = vmatpush1.bf16.msra.mxu0 %v596
      %636 = vmatprep.subr.bf16.mxu0 0
      %637 = vmatpush2.bf16.msra.mxu0 0
      %638 = vmatprep.subr.bf16.mxu0 0
      %639 = vmatpush2.bf16.msra.mxu0 0
      %640 = vmatprep.subr.bf16.mxu0 0
      %641 = vmatpush2.bf16.msra.mxu0 0
      %642 = vmatprep.subr.bf16.mxu0 0
      %643 = vmatpush2.bf16.msra.mxu0 0
      %644 = vmatprep.subr.bf16.mxu0 0
      %645 = vmatpush2.bf16.msra.mxu0 0
      %646 = vmatprep.subr.bf16.mxu0 0
      %647 = vmatpush2.bf16.msra.mxu0 0
      %648 = vmatprep.subr.bf16.mxu0 0
      %649 = vmatpush2.bf16.msra.mxu0 0
      %650 = vmatprep.subr.bf16.mxu0 0
      %651 = vmatpush2.bf16.msra.mxu0 0
      %652 = vmatprep.mubr.bf16.mxu0 0
      %653 = vmatmul.mubr.bf16.gmra.mxu0 %v609
      %v654 = vpop.f32.mrf.mxu0
      %v655 = vadd.f32 0.0, %v654
      %v656 = vpop.f32.mrf.mxu0
      %v657 = vpop.f32.mrf.mxu0
      %v658 = vadd.f32 0.0, %v657
      %v659 = vpop.f32.mrf.mxu0
      %660 = vmatprep.mubr.bf16.mxu0 0
      %661 = vmatmul.mubr.bf16.gmra.mxu0 %v612
      %v662 = vpop.f32.mrf.mxu0
      %v663 = vadd.f32 0.0, %v662
      %v664 = vpop.f32.mrf.mxu0
      %v665 = vpop.f32.mrf.mxu0
      %v666 = vadd.f32 0.0, %v665
      %v667 = vpop.f32.mrf.mxu0
      %668 = vmatprep.mubr.bf16.mxu0 0
      %669 = vmatmul.mubr.bf16.gmra.mxu0 %v615
      %v670 = vpop.f32.mrf.mxu0
      %v671 = vadd.f32 0.0, %v670
      %v672 = vpop.f32.mrf.mxu0
      %v673 = vpop.f32.mrf.mxu0
      %v674 = vadd.f32 0.0, %v673
      %v675 = vpop.f32.mrf.mxu0
      %676 = vmatprep.mubr.bf16.mxu0 0
      %677 = vmatmul.mubr.bf16.gmra.mxu0 %v618
      %v678 = vpop.f32.mrf.mxu0
      %v679 = vadd.f32 0.0, %v678
      %v680 = vpop.f32.mrf.mxu0
      %v681 = vpop.f32.mrf.mxu0
      %v682 = vadd.f32 0.0, %v681
      %v683 = vpop.f32.mrf.mxu0
      %684 = vdwg.mxu0
      %v685 = vadd.f32 %v492, %v655
      %v686 = vadd.f32 %v495, %v658
      %v687 = vadd.f32 %v500, %v663
      %v688 = vadd.f32 %v503, %v666
      %v689 = vadd.f32 %v508, %v671
      %v690 = vadd.f32 %v511, %v674
      %v691 = vadd.f32 %v516, %v679
      %v692 = vadd.f32 %v519, %v682
      %v693 = vpack.c.bf16 %v197, %v195
      %v694 = vpack.c.bf16 %v201, %v199
      %v695 = vpack.c.bf16 %v205, %v203
      %v696 = vpack.c.bf16 %v209, %v207
      %s697 = scalar_lea.vmem %s1, 144
      %v698 = vld [vmem:[%s697] sm:$0xf]
      %v699 = vld [vmem:[%s697 + $0x4] sm:$0xf]
      %v700 = vld [vmem:[%s697 + $0x8] sm:$0xf]
      %v701 = vld [vmem:[%s697 + $0xc] sm:$0xf]
      %v702 = vld [vmem:[%s697 + $0x10] sm:$0xf]
      %v703 = vld [vmem:[%s697 + $0x14] sm:$0xf]
      %v704 = vld [vmem:[%s697 + $0x18] sm:$0xf]
      %v705 = vld [vmem:[%s697 + $0x1c] sm:$0xf]
      %v706 = vld [vmem:[%s697 + $0x20] sm:$0xf]
      %v707 = vld [vmem:[%s697 + $0x24] sm:$0xf]
      %v708 = vld [vmem:[%s697 + $0x28] sm:$0xf]
      %v709 = vld [vmem:[%s697 + $0x2c] sm:$0xf]
      %v722 = vunpack.c.l.b16 %v698
      %v723 = vunpack.c.l.b16 %v699
      %v724 = vunpack.c.l.b16 %v700
      %v725 = vunpack.c.l.b16 %v701
      %v726 = vunpack.c.l.b16 %v702
      %v727 = vunpack.c.l.b16 %v703
      %v728 = vunpack.c.l.b16 %v704
      %v729 = vunpack.c.l.b16 %v705
      %v730 = vunpack.c.l.b16 %v706
      %v731 = vunpack.c.l.b16 %v707
      %v732 = vunpack.c.l.b16 %v708
      %v733 = vunpack.c.l.b16 %v709
      %v734 = vpack.c.b16 %v723, %v722
      %v735 = vpack.c.b16 %v725, %v724
      %v736 = vpack.c.b16 %v727, %v726
      %v737 = vpack.c.b16 %v729, %v728
      %v738 = vpack.c.b16 %v731, %v730
      %v739 = vpack.c.b16 %v733, %v732
      %v747 = vsel %vm331, %v693, 0
      %v750 = vsel %vm331, %v694, 0
      %v753 = vsel %vm331, %v695, 0
      %v756 = vsel %vm331, %v696, 0
      %758 = vmatprep.subr.bf16.mxu0 0
      %759 = vmatpush1.bf16.msra.mxu0 0
      %760 = vmatprep.subr.bf16.mxu0 0
      %761 = vmatpush1.bf16.msra.mxu0 0
      %762 = vmatprep.subr.bf16.mxu0 0
      %763 = vmatpush1.bf16.msra.mxu0 %v739
      %764 = vmatprep.subr.bf16.mxu0 0
      %765 = vmatpush1.bf16.msra.mxu0 %v738
      %766 = vmatprep.subr.bf16.mxu0 0
      %767 = vmatpush1.bf16.msra.mxu0 %v737
      %768 = vmatprep.subr.bf16.mxu0 0
      %769 = vmatpush1.bf16.msra.mxu0 %v736
      %770 = vmatprep.subr.bf16.mxu0 0
      %771 = vmatpush1.bf16.msra.mxu0 %v735
      %772 = vmatprep.subr.bf16.mxu0 0
      %773 = vmatpush1.bf16.msra.mxu0 %v734
      %774 = vmatprep.subr.bf16.mxu0 0
      %775 = vmatpush2.bf16.msra.mxu0 0
      %776 = vmatprep.subr.bf16.mxu0 0
      %777 = vmatpush2.bf16.msra.mxu0 0
      %778 = vmatprep.subr.bf16.mxu0 0
      %779 = vmatpush2.bf16.msra.mxu0 0
      %780 = vmatprep.subr.bf16.mxu0 0
      %781 = vmatpush2.bf16.msra.mxu0 0
      %782 = vmatprep.subr.bf16.mxu0 0
      %783 = vmatpush2.bf16.msra.mxu0 0
      %784 = vmatprep.subr.bf16.mxu0 0
      %785 = vmatpush2.bf16.msra.mxu0 0
      %786 = vmatprep.subr.bf16.mxu0 0
      %787 = vmatpush2.bf16.msra.mxu0 0
      %788 = vmatprep.subr.bf16.mxu0 0
      %789 = vmatpush2.bf16.msra.mxu0 0
      %790 = vmatprep.mubr.bf16.mxu0 0
      %791 = vmatmul.mubr.bf16.gmra.mxu0 %v747
      %v792 = vpop.f32.mrf.mxu0
      %v793 = vadd.f32 0.0, %v792
      %v794 = vpop.f32.mrf.mxu0
      %v795 = vpop.f32.mrf.mxu0
      %v796 = vadd.f32 0.0, %v795
      %v797 = vpop.f32.mrf.mxu0
      %798 = vmatprep.mubr.bf16.mxu0 0
      %799 = vmatmul.mubr.bf16.gmra.mxu0 %v750
      %v800 = vpop.f32.mrf.mxu0
      %v801 = vadd.f32 0.0, %v800
      %v802 = vpop.f32.mrf.mxu0
      %v803 = vpop.f32.mrf.mxu0
      %v804 = vadd.f32 0.0, %v803
      %v805 = vpop.f32.mrf.mxu0
      %806 = vmatprep.mubr.bf16.mxu0 0
      %807 = vmatmul.mubr.bf16.gmra.mxu0 %v753
      %v808 = vpop.f32.mrf.mxu0
      %v809 = vadd.f32 0.0, %v808
      %v810 = vpop.f32.mrf.mxu0
      %v811 = vpop.f32.mrf.mxu0
      %v812 = vadd.f32 0.0, %v811
      %v813 = vpop.f32.mrf.mxu0
      %814 = vmatprep.mubr.bf16.mxu0 0
      %815 = vmatmul.mubr.bf16.gmra.mxu0 %v756
      %v816 = vpop.f32.mrf.mxu0
      %v817 = vadd.f32 0.0, %v816
      %v818 = vpop.f32.mrf.mxu0
      %v819 = vpop.f32.mrf.mxu0
      %v820 = vadd.f32 0.0, %v819
      %v821 = vpop.f32.mrf.mxu0
      %822 = vdwg.mxu0
      %v823 = vadd.f32 %v685, %v793
      %v824 = vadd.f32 %v686, %v796
      %v825 = vadd.f32 %v687, %v801
      %v826 = vadd.f32 %v688, %v804
      %v827 = vadd.f32 %v689, %v809
      %v828 = vadd.f32 %v690, %v812
      %v829 = vadd.f32 %v691, %v817
      %v830 = vadd.f32 %v692, %v820
      %v833 = vrot.slane %v209, 1
      %v834 = vrot.slane %v210, 1
      %v835 = vsel %vm245, %v833, %v834
      %v837 = vpack.c.bf16 %v254, %v251
      %v838 = vpack.c.bf16 %v260, %v257
      %v839 = vpack.c.bf16 %v266, %v263
      %v840 = vpack.c.bf16 %v835, %v269
      %s841 = scalar_lea.vmem %s1, 192
      %v842 = vld [vmem:[%s841] sm:$0xf]
      %v843 = vld [vmem:[%s841 + $0x4] sm:$0xf]
      %v844 = vld [vmem:[%s841 + $0x8] sm:$0xf]
      %v845 = vld [vmem:[%s841 + $0xc] sm:$0xf]
      %v846 = vld [vmem:[%s841 + $0x10] sm:$0xf]
      %v847 = vld [vmem:[%s841 + $0x14] sm:$0xf]
      %v848 = vld [vmem:[%s841 + $0x18] sm:$0xf]
      %v849 = vld [vmem:[%s841 + $0x1c] sm:$0xf]
      %v850 = vld [vmem:[%s841 + $0x20] sm:$0xf]
      %v851 = vld [vmem:[%s841 + $0x24] sm:$0xf]
      %v852 = vld [vmem:[%s841 + $0x28] sm:$0xf]
      %v853 = vld [vmem:[%s841 + $0x2c] sm:$0xf]
      %v866 = vunpack.c.l.b16 %v842
      %v867 = vunpack.c.l.b16 %v843
      %v868 = vunpack.c.l.b16 %v844
      %v869 = vunpack.c.l.b16 %v845
      %v870 = vunpack.c.l.b16 %v846
      %v871 = vunpack.c.l.b16 %v847
      %v872 = vunpack.c.l.b16 %v848
      %v873 = vunpack.c.l.b16 %v849
      %v874 = vunpack.c.l.b16 %v850
      %v875 = vunpack.c.l.b16 %v851
      %v876 = vunpack.c.l.b16 %v852
      %v877 = vunpack.c.l.b16 %v853
      %v878 = vpack.c.b16 %v867, %v866
      %v879 = vpack.c.b16 %v869, %v868
      %v880 = vpack.c.b16 %v871, %v870
      %v881 = vpack.c.b16 %v873, %v872
      %v882 = vpack.c.b16 %v875, %v874
      %v883 = vpack.c.b16 %v877, %v876
      %v891 = vsel %vm331, %v837, 0
      %v894 = vsel %vm331, %v838, 0
      %v897 = vsel %vm331, %v839, 0
      %v900 = vsel %vm331, %v840, 0
      %902 = vmatprep.subr.bf16.mxu0 0
      %903 = vmatpush1.bf16.msra.mxu0 0
      %904 = vmatprep.subr.bf16.mxu0 0
      %905 = vmatpush1.bf16.msra.mxu0 0
      %906 = vmatprep.subr.bf16.mxu0 0
      %907 = vmatpush1.bf16.msra.mxu0 %v883
      %908 = vmatprep.subr.bf16.mxu0 0
      %909 = vmatpush1.bf16.msra.mxu0 %v882
      %910 = vmatprep.subr.bf16.mxu0 0
      %911 = vmatpush1.bf16.msra.mxu0 %v881
      %912 = vmatprep.subr.bf16.mxu0 0
      %913 = vmatpush1.bf16.msra.mxu0 %v880
      %914 = vmatprep.subr.bf16.mxu0 0
      %915 = vmatpush1.bf16.msra.mxu0 %v879
      %916 = vmatprep.subr.bf16.mxu0 0
      %917 = vmatpush1.bf16.msra.mxu0 %v878
      %918 = vmatprep.subr.bf16.mxu0 0
      %919 = vmatpush2.bf16.msra.mxu0 0
      %920 = vmatprep.subr.bf16.mxu0 0
      %921 = vmatpush2.bf16.msra.mxu0 0
      %922 = vmatprep.subr.bf16.mxu0 0
      %923 = vmatpush2.bf16.msra.mxu0 0
      %924 = vmatprep.subr.bf16.mxu0 0
      %925 = vmatpush2.bf16.msra.mxu0 0
      %926 = vmatprep.subr.bf16.mxu0 0
      %927 = vmatpush2.bf16.msra.mxu0 0
      %928 = vmatprep.subr.bf16.mxu0 0
      %929 = vmatpush2.bf16.msra.mxu0 0
      %930 = vmatprep.subr.bf16.mxu0 0
      %931 = vmatpush2.bf16.msra.mxu0 0
      %932 = vmatprep.subr.bf16.mxu0 0
      %933 = vmatpush2.bf16.msra.mxu0 0
      %934 = vmatprep.mubr.bf16.mxu0 0
      %935 = vmatmul.mubr.bf16.gmra.mxu0 %v891
      %v936 = vpop.f32.mrf.mxu0
      %v937 = vadd.f32 0.0, %v936
      %v938 = vpop.f32.mrf.mxu0
      %v939 = vpop.f32.mrf.mxu0
      %v940 = vadd.f32 0.0, %v939
      %v941 = vpop.f32.mrf.mxu0
      %942 = vmatprep.mubr.bf16.mxu0 0
      %943 = vmatmul.mubr.bf16.gmra.mxu0 %v894
      %v944 = vpop.f32.mrf.mxu0
      %v945 = vadd.f32 0.0, %v944
      %v946 = vpop.f32.mrf.mxu0
      %v947 = vpop.f32.mrf.mxu0
      %v948 = vadd.f32 0.0, %v947
      %v949 = vpop.f32.mrf.mxu0
      %950 = vmatprep.mubr.bf16.mxu0 0
      %951 = vmatmul.mubr.bf16.gmra.mxu0 %v897
      %v952 = vpop.f32.mrf.mxu0
      %v953 = vadd.f32 0.0, %v952
      %v954 = vpop.f32.mrf.mxu0
      %v955 = vpop.f32.mrf.mxu0
      %v956 = vadd.f32 0.0, %v955
      %v957 = vpop.f32.mrf.mxu0
      %958 = vmatprep.mubr.bf16.mxu0 0
      %959 = vmatmul.mubr.bf16.gmra.mxu0 %v900
      %v960 = vpop.f32.mrf.mxu0
      %v961 = vadd.f32 0.0, %v960
      %v962 = vpop.f32.mrf.mxu0
      %v963 = vpop.f32.mrf.mxu0
      %v964 = vadd.f32 0.0, %v963
      %v965 = vpop.f32.mrf.mxu0
      %966 = vdwg.mxu0
      %v967 = vadd.f32 %v823, %v937
      %v968 = vadd.f32 %v824, %v940
      %v969 = vadd.f32 %v825, %v945
      %v970 = vadd.f32 %v826, %v948
      %v971 = vadd.f32 %v827, %v953
      %v972 = vadd.f32 %v828, %v956
      %v973 = vadd.f32 %v829, %v961
      %v974 = vadd.f32 %v830, %v964
      %v975 = vrot.slane %v209, 2
      %v976 = vrot.slane %v210, 2
      %v977 = vsel %vm522, %v975, %v976
      %v979 = vpack.c.bf16 %v531, %v528
      %v980 = vpack.c.bf16 %v537, %v534
      %v981 = vpack.c.bf16 %v543, %v540
      %v982 = vpack.c.bf16 %v977, %v546
      %s983 = scalar_lea.vmem %s1, 240
      %v984 = vld [vmem:[%s983] sm:$0xf]
      %v985 = vld [vmem:[%s983 + $0x4] sm:$0xf]
      %v986 = vld [vmem:[%s983 + $0x8] sm:$0xf]
      %v987 = vld [vmem:[%s983 + $0xc] sm:$0xf]
      %v988 = vld [vmem:[%s983 + $0x10] sm:$0xf]
      %v989 = vld [vmem:[%s983 + $0x14] sm:$0xf]
      %v990 = vld [vmem:[%s983 + $0x18] sm:$0xf]
      %v991 = vld [vmem:[%s983 + $0x1c] sm:$0xf]
      %v992 = vld [vmem:[%s983 + $0x20] sm:$0xf]
      %v993 = vld [vmem:[%s983 + $0x24] sm:$0xf]
      %v994 = vld [vmem:[%s983 + $0x28] sm:$0xf]
      %v995 = vld [vmem:[%s983 + $0x2c] sm:$0xf]
      %v1008 = vunpack.c.l.b16 %v984
      %v1009 = vunpack.c.l.b16 %v985
      %v1010 = vunpack.c.l.b16 %v986
      %v1011 = vunpack.c.l.b16 %v987
      %v1012 = vunpack.c.l.b16 %v988
      %v1013 = vunpack.c.l.b16 %v989
      %v1014 = vunpack.c.l.b16 %v990
      %v1015 = vunpack.c.l.b16 %v991
      %v1016 = vunpack.c.l.b16 %v992
      %v1017 = vunpack.c.l.b16 %v993
      %v1018 = vunpack.c.l.b16 %v994
      %v1019 = vunpack.c.l.b16 %v995
      %v1020 = vpack.c.b16 %v1009, %v1008
      %v1021 = vpack.c.b16 %v1011, %v1010
      %v1022 = vpack.c.b16 %v1013, %v1012
      %v1023 = vpack.c.b16 %v1015, %v1014
      %v1024 = vpack.c.b16 %v1017, %v1016
      %v1025 = vpack.c.b16 %v1019, %v1018
      %v1033 = vsel %vm331, %v979, 0
      %v1036 = vsel %vm331, %v980, 0
      %v1039 = vsel %vm331, %v981, 0
      %v1042 = vsel %vm331, %v982, 0
      %1044 = vmatprep.subr.bf16.mxu0 0
      %1045 = vmatpush1.bf16.msra.mxu0 0
      %1046 = vmatprep.subr.bf16.mxu0 0
      %1047 = vmatpush1.bf16.msra.mxu0 0
      %1048 = vmatprep.subr.bf16.mxu0 0
      %1049 = vmatpush1.bf16.msra.mxu0 %v1025
      %1050 = vmatprep.subr.bf16.mxu0 0
      %1051 = vmatpush1.bf16.msra.mxu0 %v1024
      %1052 = vmatprep.subr.bf16.mxu0 0
      %1053 = vmatpush1.bf16.msra.mxu0 %v1023
      %1054 = vmatprep.subr.bf16.mxu0 0
      %1055 = vmatpush1.bf16.msra.mxu0 %v1022
      %1056 = vmatprep.subr.bf16.mxu0 0
      %1057 = vmatpush1.bf16.msra.mxu0 %v1021
      %1058 = vmatprep.subr.bf16.mxu0 0
      %1059 = vmatpush1.bf16.msra.mxu0 %v1020
      %1060 = vmatprep.subr.bf16.mxu0 0
      %1061 = vmatpush2.bf16.msra.mxu0 0
      %1062 = vmatprep.subr.bf16.mxu0 0
      %1063 = vmatpush2.bf16.msra.mxu0 0
      %1064 = vmatprep.subr.bf16.mxu0 0
      %1065 = vmatpush2.bf16.msra.mxu0 0
      %1066 = vmatprep.subr.bf16.mxu0 0
      %1067 = vmatpush2.bf16.msra.mxu0 0
      %1068 = vmatprep.subr.bf16.mxu0 0
      %1069 = vmatpush2.bf16.msra.mxu0 0
      %1070 = vmatprep.subr.bf16.mxu0 0
      %1071 = vmatpush2.bf16.msra.mxu0 0
      %1072 = vmatprep.subr.bf16.mxu0 0
      %1073 = vmatpush2.bf16.msra.mxu0 0
      %1074 = vmatprep.subr.bf16.mxu0 0
      %1075 = vmatpush2.bf16.msra.mxu0 0
      %1076 = vmatprep.mubr.bf16.mxu0 0
      %1077 = vmatmul.mubr.bf16.gmra.mxu0 %v1033
      %v1078 = vpop.f32.mrf.mxu0
      %v1079 = vadd.f32 0.0, %v1078
      %v1080 = vpop.f32.mrf.mxu0
      %v1081 = vpop.f32.mrf.mxu0
      %v1082 = vadd.f32 0.0, %v1081
      %v1083 = vpop.f32.mrf.mxu0
      %1084 = vmatprep.mubr.bf16.mxu0 0
      %1085 = vmatmul.mubr.bf16.gmra.mxu0 %v1036
      %v1086 = vpop.f32.mrf.mxu0
      %v1087 = vadd.f32 0.0, %v1086
      %v1088 = vpop.f32.mrf.mxu0
      %v1089 = vpop.f32.mrf.mxu0
      %v1090 = vadd.f32 0.0, %v1089
      %v1091 = vpop.f32.mrf.mxu0
      %1092 = vmatprep.mubr.bf16.mxu0 0
      %1093 = vmatmul.mubr.bf16.gmra.mxu0 %v1039
      %v1094 = vpop.f32.mrf.mxu0
      %v1095 = vadd.f32 0.0, %v1094
      %v1096 = vpop.f32.mrf.mxu0
      %v1097 = vpop.f32.mrf.mxu0
      %v1098 = vadd.f32 0.0, %v1097
      %v1099 = vpop.f32.mrf.mxu0
      %1100 = vmatprep.mubr.bf16.mxu0 0
      %1101 = vmatmul.mubr.bf16.gmra.mxu0 %v1042
      %v1102 = vpop.f32.mrf.mxu0
      %v1103 = vadd.f32 0.0, %v1102
      %v1104 = vpop.f32.mrf.mxu0
      %v1105 = vpop.f32.mrf.mxu0
      %v1106 = vadd.f32 0.0, %v1105
      %v1107 = vpop.f32.mrf.mxu0
      %1108 = vdwg.mxu0
      %v1109 = vadd.f32 %v967, %v1079
      %v1110 = vadd.f32 %v968, %v1082
      %v1111 = vadd.f32 %v969, %v1087
      %v1112 = vadd.f32 %v970, %v1090
      %v1113 = vadd.f32 %v971, %v1095
      %v1114 = vadd.f32 %v972, %v1098
      %v1115 = vadd.f32 %v973, %v1103
      %v1116 = vadd.f32 %v974, %v1106
      %v1117 = vpack.c.bf16 %v211, %v209
      %s1118 = scalar_lea.vmem %s1, 288
      %v1119 = vld [vmem:[%s1118] sm:$0xf]
      %v1120 = vld [vmem:[%s1118 + $0x4] sm:$0xf]
      %v1121 = vld [vmem:[%s1118 + $0x8] sm:$0xf]
      %v1122 = vld [vmem:[%s1118 + $0xc] sm:$0xf]
      %v1123 = vld [vmem:[%s1118 + $0x10] sm:$0xf]
      %v1124 = vld [vmem:[%s1118 + $0x14] sm:$0xf]
      %v1125 = vld [vmem:[%s1118 + $0x18] sm:$0xf]
      %v1126 = vld [vmem:[%s1118 + $0x1c] sm:$0xf]
      %v1127 = vld [vmem:[%s1118 + $0x20] sm:$0xf]
      %v1128 = vld [vmem:[%s1118 + $0x24] sm:$0xf]
      %v1129 = vld [vmem:[%s1118 + $0x28] sm:$0xf]
      %v1130 = vld [vmem:[%s1118 + $0x2c] sm:$0xf]
      %v1143 = vunpack.c.l.b16 %v1119
      %v1144 = vunpack.c.l.b16 %v1120
      %v1145 = vunpack.c.l.b16 %v1121
      %v1146 = vunpack.c.l.b16 %v1122
      %v1147 = vunpack.c.l.b16 %v1123
      %v1148 = vunpack.c.l.b16 %v1124
      %v1149 = vunpack.c.l.b16 %v1125
      %v1150 = vunpack.c.l.b16 %v1126
      %v1151 = vunpack.c.l.b16 %v1127
      %v1152 = vunpack.c.l.b16 %v1128
      %v1153 = vunpack.c.l.b16 %v1129
      %v1154 = vunpack.c.l.b16 %v1130
      %v1155 = vpack.c.b16 %v1144, %v1143
      %v1156 = vpack.c.b16 %v1146, %v1145
      %v1157 = vpack.c.b16 %v1148, %v1147
      %v1158 = vpack.c.b16 %v1150, %v1149
      %v1159 = vpack.c.b16 %v1152, %v1151
      %v1160 = vpack.c.b16 %v1154, %v1153
      %v1168 = vsel %vm331, %v1117, 0
      %1170 = vmatprep.subr.bf16.mxu0 0
      %1171 = vmatpush1.bf16.msra.mxu0 0
      %1172 = vmatprep.subr.bf16.mxu0 0
      %1173 = vmatpush1.bf16.msra.mxu0 0
      %1174 = vmatprep.subr.bf16.mxu0 0
      %1175 = vmatpush1.bf16.msra.mxu0 %v1160
      %1176 = vmatprep.subr.bf16.mxu0 0
      %1177 = vmatpush1.bf16.msra.mxu0 %v1159
      %1178 = vmatprep.subr.bf16.mxu0 0
      %1179 = vmatpush1.bf16.msra.mxu0 %v1158
      %1180 = vmatprep.subr.bf16.mxu0 0
      %1181 = vmatpush1.bf16.msra.mxu0 %v1157
      %1182 = vmatprep.subr.bf16.mxu0 0
      %1183 = vmatpush1.bf16.msra.mxu0 %v1156
      %1184 = vmatprep.subr.bf16.mxu0 0
      %1185 = vmatpush1.bf16.msra.mxu0 %v1155
      %1186 = vmatprep.subr.bf16.mxu0 0
      %1187 = vmatpush2.bf16.msra.mxu0 0
      %1188 = vmatprep.subr.bf16.mxu0 0
      %1189 = vmatpush2.bf16.msra.mxu0 0
      %1190 = vmatprep.subr.bf16.mxu0 0
      %1191 = vmatpush2.bf16.msra.mxu0 0
      %1192 = vmatprep.subr.bf16.mxu0 0
      %1193 = vmatpush2.bf16.msra.mxu0 0
      %1194 = vmatprep.subr.bf16.mxu0 0
      %1195 = vmatpush2.bf16.msra.mxu0 0
      %1196 = vmatprep.subr.bf16.mxu0 0
      %1197 = vmatpush2.bf16.msra.mxu0 0
      %1198 = vmatprep.subr.bf16.mxu0 0
      %1199 = vmatpush2.bf16.msra.mxu0 0
      %1200 = vmatprep.subr.bf16.mxu0 0
      %1201 = vmatpush2.bf16.msra.mxu0 0
      %1202 = vmatprep.mubr.bf16.mxu0 0
      %1203 = vmatmul.mubr.bf16.gmra.mxu0 %v449
      %v1204 = vpop.f32.mrf.mxu0
      %v1205 = vadd.f32 0.0, %v1204
      %v1206 = vpop.f32.mrf.mxu0
      %v1207 = vpop.f32.mrf.mxu0
      %v1208 = vadd.f32 0.0, %v1207
      %v1209 = vpop.f32.mrf.mxu0
      %1210 = vmatprep.mubr.bf16.mxu0 0
      %1211 = vmatmul.mubr.bf16.gmra.mxu0 %v452
      %v1212 = vpop.f32.mrf.mxu0
      %v1213 = vadd.f32 0.0, %v1212
      %v1214 = vpop.f32.mrf.mxu0
      %v1215 = vpop.f32.mrf.mxu0
      %v1216 = vadd.f32 0.0, %v1215
      %v1217 = vpop.f32.mrf.mxu0
      %1218 = vmatprep.mubr.bf16.mxu0 0
      %1219 = vmatmul.mubr.bf16.gmra.mxu0 %v455
      %v1220 = vpop.f32.mrf.mxu0
      %v1221 = vadd.f32 0.0, %v1220
      %v1222 = vpop.f32.mrf.mxu0
      %v1223 = vpop.f32.mrf.mxu0
      %v1224 = vadd.f32 0.0, %v1223
      %v1225 = vpop.f32.mrf.mxu0
      %1226 = vmatprep.mubr.bf16.mxu0 0
      %1227 = vmatmul.mubr.bf16.gmra.mxu0 %v1168
      %v1228 = vpop.f32.mrf.mxu0
      %v1229 = vadd.f32 0.0, %v1228
      %v1230 = vpop.f32.mrf.mxu0
      %v1231 = vpop.f32.mrf.mxu0
      %v1232 = vadd.f32 0.0, %v1231
      %v1233 = vpop.f32.mrf.mxu0
      %1234 = vdwg.mxu0
      %v1235 = vadd.f32 %v1109, %v1205
      %v1236 = vadd.f32 %v1110, %v1208
      %v1237 = vadd.f32 %v1111, %v1213
      %v1238 = vadd.f32 %v1112, %v1216
      %v1239 = vadd.f32 %v1113, %v1221
      %v1240 = vadd.f32 %v1114, %v1224
      %v1241 = vadd.f32 %v1115, %v1229
      %v1242 = vadd.f32 %v1116, %v1232
      %v1245 = vrot.slane %v211, 1
      %v1246 = vrot.slane %v212, 1
      %v1247 = vsel %vm245, %v1245, %v1246
      %v1249 = vpack.c.bf16 %v1247, %v835
      %s1250 = scalar_lea.vmem %s1, 336
      %v1251 = vld [vmem:[%s1250] sm:$0xf]
      %v1252 = vld [vmem:[%s1250 + $0x4] sm:$0xf]
      %v1253 = vld [vmem:[%s1250 + $0x8] sm:$0xf]
      %v1254 = vld [vmem:[%s1250 + $0xc] sm:$0xf]
      %v1255 = vld [vmem:[%s1250 + $0x10] sm:$0xf]
      %v1256 = vld [vmem:[%s1250 + $0x14] sm:$0xf]
      %v1257 = vld [vmem:[%s1250 + $0x18] sm:$0xf]
      %v1258 = vld [vmem:[%s1250 + $0x1c] sm:$0xf]
      %v1259 = vld [vmem:[%s1250 + $0x20] sm:$0xf]
      %v1260 = vld [vmem:[%s1250 + $0x24] sm:$0xf]
      %v1261 = vld [vmem:[%s1250 + $0x28] sm:$0xf]
      %v1262 = vld [vmem:[%s1250 + $0x2c] sm:$0xf]
      %v1275 = vunpack.c.l.b16 %v1251
      %v1276 = vunpack.c.l.b16 %v1252
      %v1277 = vunpack.c.l.b16 %v1253
      %v1278 = vunpack.c.l.b16 %v1254
      %v1279 = vunpack.c.l.b16 %v1255
      %v1280 = vunpack.c.l.b16 %v1256
      %v1281 = vunpack.c.l.b16 %v1257
      %v1282 = vunpack.c.l.b16 %v1258
      %v1283 = vunpack.c.l.b16 %v1259
      %v1284 = vunpack.c.l.b16 %v1260
      %v1285 = vunpack.c.l.b16 %v1261
      %v1286 = vunpack.c.l.b16 %v1262
      %v1287 = vpack.c.b16 %v1276, %v1275
      %v1288 = vpack.c.b16 %v1278, %v1277
      %v1289 = vpack.c.b16 %v1280, %v1279
      %v1290 = vpack.c.b16 %v1282, %v1281
      %v1291 = vpack.c.b16 %v1284, %v1283
      %v1292 = vpack.c.b16 %v1286, %v1285
      %v1300 = vsel %vm331, %v1249, 0
      %1302 = vmatprep.subr.bf16.mxu0 0
      %1303 = vmatpush1.bf16.msra.mxu0 0
      %1304 = vmatprep.subr.bf16.mxu0 0
      %1305 = vmatpush1.bf16.msra.mxu0 0
      %1306 = vmatprep.subr.bf16.mxu0 0
      %1307 = vmatpush1.bf16.msra.mxu0 %v1292
      %1308 = vmatprep.subr.bf16.mxu0 0
      %1309 = vmatpush1.bf16.msra.mxu0 %v1291
      %1310 = vmatprep.subr.bf16.mxu0 0
      %1311 = vmatpush1.bf16.msra.mxu0 %v1290
      %1312 = vmatprep.subr.bf16.mxu0 0
      %1313 = vmatpush1.bf16.msra.mxu0 %v1289
      %1314 = vmatprep.subr.bf16.mxu0 0
      %1315 = vmatpush1.bf16.msra.mxu0 %v1288
      %1316 = vmatprep.subr.bf16.mxu0 0
      %1317 = vmatpush1.bf16.msra.mxu0 %v1287
      %1318 = vmatprep.subr.bf16.mxu0 0
      %1319 = vmatpush2.bf16.msra.mxu0 0
      %1320 = vmatprep.subr.bf16.mxu0 0
      %1321 = vmatpush2.bf16.msra.mxu0 0
      %1322 = vmatprep.subr.bf16.mxu0 0
      %1323 = vmatpush2.bf16.msra.mxu0 0
      %1324 = vmatprep.subr.bf16.mxu0 0
      %1325 = vmatpush2.bf16.msra.mxu0 0
      %1326 = vmatprep.subr.bf16.mxu0 0
      %1327 = vmatpush2.bf16.msra.mxu0 0
      %1328 = vmatprep.subr.bf16.mxu0 0
      %1329 = vmatpush2.bf16.msra.mxu0 0
      %1330 = vmatprep.subr.bf16.mxu0 0
      %1331 = vmatpush2.bf16.msra.mxu0 0
      %1332 = vmatprep.subr.bf16.mxu0 0
      %1333 = vmatpush2.bf16.msra.mxu0 0
      %1334 = vmatprep.mubr.bf16.mxu0 0
      %1335 = vmatmul.mubr.bf16.gmra.mxu0 %v336
      %v1336 = vpop.f32.mrf.mxu0
      %v1337 = vadd.f32 0.0, %v1336
      %v1338 = vpop.f32.mrf.mxu0
      %v1339 = vpop.f32.mrf.mxu0
      %v1340 = vadd.f32 0.0, %v1339
      %v1341 = vpop.f32.mrf.mxu0
      %1342 = vmatprep.mubr.bf16.mxu0 0
      %1343 = vmatmul.mubr.bf16.gmra.mxu0 %v339
      %v1344 = vpop.f32.mrf.mxu0
      %v1345 = vadd.f32 0.0, %v1344
      %v1346 = vpop.f32.mrf.mxu0
      %v1347 = vpop.f32.mrf.mxu0
      %v1348 = vadd.f32 0.0, %v1347
      %v1349 = vpop.f32.mrf.mxu0
      %1350 = vmatprep.mubr.bf16.mxu0 0
      %1351 = vmatmul.mubr.bf16.gmra.mxu0 %v342
      %v1352 = vpop.f32.mrf.mxu0
      %v1353 = vadd.f32 0.0, %v1352
      %v1354 = vpop.f32.mrf.mxu0
      %v1355 = vpop.f32.mrf.mxu0
      %v1356 = vadd.f32 0.0, %v1355
      %v1357 = vpop.f32.mrf.mxu0
      %1358 = vmatprep.mubr.bf16.mxu0 0
      %1359 = vmatmul.mubr.bf16.gmra.mxu0 %v1300
      %v1360 = vpop.f32.mrf.mxu0
      %v1361 = vadd.f32 0.0, %v1360
      %v1362 = vpop.f32.mrf.mxu0
      %v1363 = vpop.f32.mrf.mxu0
      %v1364 = vadd.f32 0.0, %v1363
      %v1365 = vpop.f32.mrf.mxu0
      %1366 = vdwg.mxu0
      %v1367 = vadd.f32 %v1235, %v1337
      %v1368 = vadd.f32 %v1236, %v1340
      %v1369 = vadd.f32 %v1237, %v1345
      %v1370 = vadd.f32 %v1238, %v1348
      %v1371 = vadd.f32 %v1239, %v1353
      %v1372 = vadd.f32 %v1240, %v1356
      %v1373 = vadd.f32 %v1241, %v1361
      %v1374 = vadd.f32 %v1242, %v1364
      %v1375 = vrot.slane %v211, 2
      %v1376 = vrot.slane %v212, 2
      %v1377 = vsel %vm522, %v1375, %v1376
      %v1379 = vpack.c.bf16 %v1377, %v977
      %s1380 = scalar_lea.vmem %s1, 384
      %v1381 = vld [vmem:[%s1380] sm:$0xf]
      %v1382 = vld [vmem:[%s1380 + $0x4] sm:$0xf]
      %v1383 = vld [vmem:[%s1380 + $0x8] sm:$0xf]
      %v1384 = vld [vmem:[%s1380 + $0xc] sm:$0xf]
      %v1385 = vld [vmem:[%s1380 + $0x10] sm:$0xf]
      %v1386 = vld [vmem:[%s1380 + $0x14] sm:$0xf]
      %v1387 = vld [vmem:[%s1380 + $0x18] sm:$0xf]
      %v1388 = vld [vmem:[%s1380 + $0x1c] sm:$0xf]
      %v1389 = vld [vmem:[%s1380 + $0x20] sm:$0xf]
      %v1390 = vld [vmem:[%s1380 + $0x24] sm:$0xf]
      %v1391 = vld [vmem:[%s1380 + $0x28] sm:$0xf]
      %v1392 = vld [vmem:[%s1380 + $0x2c] sm:$0xf]
      %v1405 = vunpack.c.l.b16 %v1381
      %v1406 = vunpack.c.l.b16 %v1382
      %v1407 = vunpack.c.l.b16 %v1383
      %v1408 = vunpack.c.l.b16 %v1384
      %v1409 = vunpack.c.l.b16 %v1385
      %v1410 = vunpack.c.l.b16 %v1386
      %v1411 = vunpack.c.l.b16 %v1387
      %v1412 = vunpack.c.l.b16 %v1388
      %v1413 = vunpack.c.l.b16 %v1389
      %v1414 = vunpack.c.l.b16 %v1390
      %v1415 = vunpack.c.l.b16 %v1391
      %v1416 = vunpack.c.l.b16 %v1392
      %v1417 = vpack.c.b16 %v1406, %v1405
      %v1418 = vpack.c.b16 %v1408, %v1407
      %v1419 = vpack.c.b16 %v1410, %v1409
      %v1420 = vpack.c.b16 %v1412, %v1411
      %v1421 = vpack.c.b16 %v1414, %v1413
      %v1422 = vpack.c.b16 %v1416, %v1415
      %v1430 = vsel %vm331, %v1379, 0
      %1432 = vmatprep.subr.bf16.mxu0 0
      %1433 = vmatpush1.bf16.msra.mxu0 0
      %1434 = vmatprep.subr.bf16.mxu0 0
      %1435 = vmatpush1.bf16.msra.mxu0 0
      %1436 = vmatprep.subr.bf16.mxu0 0
      %1437 = vmatpush1.bf16.msra.mxu0 %v1422
      %1438 = vmatprep.subr.bf16.mxu0 0
      %1439 = vmatpush1.bf16.msra.mxu0 %v1421
      %1440 = vmatprep.subr.bf16.mxu0 0
      %1441 = vmatpush1.bf16.msra.mxu0 %v1420
      %1442 = vmatprep.subr.bf16.mxu0 0
      %1443 = vmatpush1.bf16.msra.mxu0 %v1419
      %1444 = vmatprep.subr.bf16.mxu0 0
      %1445 = vmatpush1.bf16.msra.mxu0 %v1418
      %1446 = vmatprep.subr.bf16.mxu0 0
      %1447 = vmatpush1.bf16.msra.mxu0 %v1417
      %1448 = vmatprep.subr.bf16.mxu0 0
      %1449 = vmatpush2.bf16.msra.mxu0 0
      %1450 = vmatprep.subr.bf16.mxu0 0
      %1451 = vmatpush2.bf16.msra.mxu0 0
      %1452 = vmatprep.subr.bf16.mxu0 0
      %1453 = vmatpush2.bf16.msra.mxu0 0
      %1454 = vmatprep.subr.bf16.mxu0 0
      %1455 = vmatpush2.bf16.msra.mxu0 0
      %1456 = vmatprep.subr.bf16.mxu0 0
      %1457 = vmatpush2.bf16.msra.mxu0 0
      %1458 = vmatprep.subr.bf16.mxu0 0
      %1459 = vmatpush2.bf16.msra.mxu0 0
      %1460 = vmatprep.subr.bf16.mxu0 0
      %1461 = vmatpush2.bf16.msra.mxu0 0
      %1462 = vmatprep.subr.bf16.mxu0 0
      %1463 = vmatpush2.bf16.msra.mxu0 0
      %1464 = vmatprep.mubr.bf16.mxu0 0
      %1465 = vmatmul.mubr.bf16.gmra.mxu0 %v612
      %v1466 = vpop.f32.mrf.mxu0
      %v1467 = vadd.f32 0.0, %v1466
      %v1468 = vpop.f32.mrf.mxu0
      %v1469 = vpop.f32.mrf.mxu0
      %v1470 = vadd.f32 0.0, %v1469
      %v1471 = vpop.f32.mrf.mxu0
      %1472 = vmatprep.mubr.bf16.mxu0 0
      %1473 = vmatmul.mubr.bf16.gmra.mxu0 %v615
      %v1474 = vpop.f32.mrf.mxu0
      %v1475 = vadd.f32 0.0, %v1474
      %v1476 = vpop.f32.mrf.mxu0
      %v1477 = vpop.f32.mrf.mxu0
      %v1478 = vadd.f32 0.0, %v1477
      %v1479 = vpop.f32.mrf.mxu0
      %1480 = vmatprep.mubr.bf16.mxu0 0
      %1481 = vmatmul.mubr.bf16.gmra.mxu0 %v618
      %v1482 = vpop.f32.mrf.mxu0
      %v1483 = vadd.f32 0.0, %v1482
      %v1484 = vpop.f32.mrf.mxu0
      %v1485 = vpop.f32.mrf.mxu0
      %v1486 = vadd.f32 0.0, %v1485
      %v1487 = vpop.f32.mrf.mxu0
      %1488 = vmatprep.mubr.bf16.mxu0 0
      %1489 = vmatmul.mubr.bf16.gmra.mxu0 %v1430
      %v1490 = vpop.f32.mrf.mxu0
      %v1491 = vadd.f32 0.0, %v1490
      %v1492 = vpop.f32.mrf.mxu0
      %v1493 = vpop.f32.mrf.mxu0
      %v1494 = vadd.f32 0.0, %v1493
      %v1495 = vpop.f32.mrf.mxu0
      %1496 = vdwg.mxu0
      %v1497 = vadd.f32 %v1367, %v1467
      %v1498 = vadd.f32 %v1368, %v1470
      %v1499 = vadd.f32 %v1369, %v1475
      %v1500 = vadd.f32 %v1370, %v1478
      %v1501 = vadd.f32 %v1371, %v1483
      %v1502 = vadd.f32 %v1372, %v1486
      %v1503 = vadd.f32 %v1373, %v1491
      %v1504 = vadd.f32 %v1374, %v1494
      %v1505 = vld [vmem:[%s2] sm:$0x1]
      %v1507 = vlaneseq
      %v1508 = vshrl.u32 %v1507, 7
      %v1509 = vsub.s32 0, %v1508
      %v1510 = vrot.slane %v1505, %v1509
      %v1512 = vadd.f32 %v1497, %v1510
      %v1513 = vadd.f32 %v1498, %v1510
      %v1514 = vadd.f32 %v1499, %v1510
      %v1515 = vadd.f32 %v1500, %v1510
      %v1516 = vadd.f32 %v1501, %v1510
      %v1517 = vadd.f32 %v1502, %v1510
      %v1518 = vadd.f32 %v1503, %v1510
      %v1519 = vadd.f32 %v1504, %v1510
      %v1520 = vmax.f32 %v1512, 0.0
      %v1521 = vmax.f32 %v1513, 0.0
      %v1522 = vmax.f32 %v1514, 0.0
      %v1523 = vmax.f32 %v1515, 0.0
      %v1524 = vmax.f32 %v1516, 0.0
      %v1525 = vmax.f32 %v1517, 0.0
      %v1526 = vmax.f32 %v1518, 0.0
      %v1527 = vmax.f32 %v1519, 0.0
      %v1528 = vpack.c.bf16 %v1521, %v1520
      %v1529 = vpack.c.bf16 %v1523, %v1522
      %v1530 = vpack.c.bf16 %v1525, %v1524
      %v1531 = vpack.c.bf16 %v1527, %v1526
      %v1536 = vunpack.c.l.b16 %v1528
      %v1537 = vunpack.c.h.b16 %v1528
      %v1538 = vunpack.c.l.b16 %v1529
      %v1539 = vunpack.c.h.b16 %v1529
      %v1540 = vunpack.c.l.b16 %v1530
      %v1541 = vunpack.c.h.b16 %v1530
      %v1542 = vunpack.c.l.b16 %v1531
      %v1543 = vunpack.c.h.b16 %v1531
      %v1544 = vpack.c.b16 %v1536, %v1536
      %v1545 = vpack.c.b16 %v1537, %v1537
      %v1546 = vpack.c.b16 %v1538, %v1538
      %v1547 = vpack.c.b16 %v1539, %v1539
      %v1548 = vpack.c.b16 %v1540, %v1540
      %v1549 = vpack.c.b16 %v1541, %v1541
      %v1550 = vpack.c.b16 %v1542, %v1542
      %v1551 = vpack.c.b16 %v1543, %v1543
      %vm1560 = vcmask 781312
      %1561 = vst.msk [vmem:[%s170] sm:$0xf] %vm1560, %v1544
      %1562 = vst.msk [vmem:[%s170 + $0x4] sm:$0xf] %vm1560, %v1545
      %1563 = vst.msk [vmem:[%s170 + $0x8] sm:$0xf] %vm1560, %v1546
      %1564 = vst.msk [vmem:[%s170 + $0xc] sm:$0xf] %vm1560, %v1547
      %1565 = vst.msk [vmem:[%s170 + $0x10] sm:$0xf] %vm1560, %v1548
      %1566 = vst.msk [vmem:[%s170 + $0x14] sm:$0xf] %vm1560, %v1549
      %1567 = vst.msk [vmem:[%s170 + $0x18] sm:$0xf] %vm1560, %v1550
      %1568 = vst.msk [vmem:[%s170 + $0x1c] sm:$0xf] %vm1560, %v1551
      %s1569 = smul.u32 8, %s14
      %p1570 = scmp.lt.s32.totalorder %s1569, 15
      %s1571 = scalar_select %p1570, %s1569, 15
      %s1572 = smul.addr %s1571, 4
      %s1573 = scalar_lea.vmem %s3, %s1572
      // Predicated region
      $region33: #{inception_a_forward.5} parent=31 // pred_check
        %p1574 = pneg %p100
      $region34: #{inception_a_forward.5} parent=31 // pred_check_branch
        %1576 = sbr.rel (%p1574) target = $region36
      $region35: #{inception_a_forward.5} parent=31 // pred_region
        %s1577 = smul.u32 8, %s14
      $region36: #{inception_a_forward.5} parent=31 // pred_fallthru
        _
    $region32: #{inception_a_forward.5} parent=5 // pred_fallthru
      _
    %p1578 = scmp.le.s32.totalorder 2, %s9
    // Predicated region
    $region37: #{inception_a_forward.5} parent=5 // pred_check
      %p1579 = pneg %p1578
    $region38: #{inception_a_forward.5} parent=5 // pred_check_branch
      %1581 = sbr.rel (%p1579) target = $region40
    $region39: #{inception_a_forward.5} parent=5 // pred_region
      %s1582 = ssub.s32 %s9, 2
      // Predicated region
      $region41: #{inception_a_forward.5} parent=39 // pred_check
        %p1583 = pneg %p106
      $region42: #{inception_a_forward.5} parent=39 // pred_check_branch
        %1585 = sbr.rel (%p1583) target = $region44
      $region43: #{inception_a_forward.5} parent=39 // pred_region
        %s1586 = smul.u32 8, %s15
        %p1587 = scmp.lt.s32.totalorder %s1586, 15
        %s1588 = scalar_select %p1587, %s1586, 15
        %s1589 = smul.addr %s1588, 4
        %s1590 = scalar_lea.vmem %s3, %s1589
      $region44: #{inception_a_forward.5} parent=39 // pred_fallthru
        _
    $region40: #{inception_a_forward.5} parent=5 // pred_fallthru
      _
  $region6: #{inception_a_forward.5} parent=0 // loop_footer
    %s13 = sadd.s32 1, %s9
  $region7: #{inception_a_forward.5} parent=0 // loop_footer_branch
    %8 = sbr.rel target = $region3
  $region8: #{inception_a_forward.5} parent=0 // loop_exit
    _

// kernel: inception_a_forward.4
$region0: #{inception_a_forward.4}
  #allocation0 [shape = 'u32[]', space=smem, size = 0x4, offset = 0x4, fixed_abs, tag = 'smem constant byte address 0x4 - core index']
  #allocation1 [shape = 'u32[144,128]{1,0:T(1,128)}', space=vmem, size = 0x12000, scoped, tag = 'internal scratch']
  %s0 = inlined_call_operand.vmem [shape: bf16[2,10,10,128], index: 0, kind: input, shape index: {}]
  %s1 = inlined_call_operand.vmem [shape: bf16[3,3,128,192], index: 1, kind: input, shape index: {}]
  %s2 = inlined_call_operand.vmem [shape: f32[1,192], index: 2, kind: input, shape index: {}]
  %s3 = inlined_call_operand.vmem [shape: bf16[128,192], index: 3, kind: output, shape index: {}]
  %s4 = sld [smem:[#allocation0]]
  $region45: #{inception_a_forward.4} parent=0
    _
  %s6 = ssub.s32 1, %s4
  %s7 = scalar_select 0, %s6, %s4
  loop: start=0, step=1, limit=4
  $region2: #{inception_a_forward.4} parent=0 // loop_pre_header
    _
  $region3: #{inception_a_forward.4} parent=0 // loop_header
    %s9 = sphi 0, %s13
    %p10 = scmp.ge.s32.totalorder %s9, 4
    %s19 = sphi 0, %s21
    %s22 = sphi 0, %s19
    %s23 = sphi 0, %s22
    %s39 = sphi 0, %s23
    %s43 = sphi 0, %s43
    %s45 = sphi 0, %s43
    %s46 = sphi 0, %s45
    %s60 = sphi 0, %s46
    %s64 = sphi 0, %s64
    %s66 = sphi 0, %s64
    %s67 = sphi 0, %s66
    %s81 = sphi 0, %s67
    %s87 = sphi 0, %s89
    %s90 = sphi 0, %s87
    %s91 = sphi 0, %s90
    %s107 = sphi 0, %s91
  $region4: #{inception_a_forward.4} parent=0 // loop_header_branch
    %12 = sbr.rel (%p10) target = $region8
  $region5: #{inception_a_forward.4} parent=0 // loop_body
    %s14 = ssub.s32 %s9, 1
    %s15 = ssub.s32 %s9, 2
    %s16 = sadd.s32 %s9, 1
    %s17 = ssub.s32 %s9, %s16
    %p18 = scmp.eq.s32.totalorder %s17, 0
    %s20 = sadd.s32 %s19, 1
    %s21 = scalar_select %p18, %s19, %s20
    %p24 = pneg %p18
    %p25 = scmp.eq.s32.totalorder %s9, 1
    %p26 = por %p24, %p25
    %p27 = scmp.ne.s32.totalorder %s19, %s22
    %p28 = scmp.eq.s32.totalorder %s9, 0
    %p29 = por %p27, %p28
    %p30 = scmp.ne.s32.totalorder %s19, %s22
    %p31 = scmp.eq.s32.totalorder %s14, 1
    %p32 = por %p30, %p31
    %p33 = scmp.ne.s32.totalorder %s22, %s23
    %p34 = scmp.eq.s32.totalorder %s14, 0
    %p35 = por %p33, %p34
    %p36 = scmp.ne.s32.totalorder %s22, %s23
    %p37 = scmp.eq.s32.totalorder %s15, 1
    %p38 = por %p36, %p37
    %p40 = scmp.ne.s32.totalorder %s23, %s39
    %p41 = scmp.eq.s32.totalorder %s15, 0
    %p42 = por %p40, %p41
    %s44 = sadd.s32 %s43, 1
    %p47 = scmp.eq.s32.totalorder %s9, 1
    %p48 = scmp.ne.s32.totalorder %s43, %s45
    %p49 = scmp.eq.s32.totalorder %s9, 0
    %p50 = por %p48, %p49
    %p51 = scmp.ne.s32.totalorder %s43, %s45
    %p52 = scmp.eq.s32.totalorder %s14, 1
    %p53 = por %p51, %p52
    %p54 = scmp.ne.s32.totalorder %s45, %s46
    %p55 = scmp.eq.s32.totalorder %s14, 0
    %p56 = por %p54, %p55
    %p57 = scmp.ne.s32.totalorder %s45, %s46
    %p58 = scmp.eq.s32.totalorder %s15, 1
    %p59 = por %p57, %p58
    %p61 = scmp.ne.s32.totalorder %s46, %s60
    %p62 = scmp.eq.s32.totalorder %s15, 0
    %p63 = por %p61, %p62
    %s65 = sadd.s32 %s64, 1
    %p68 = scmp.eq.s32.totalorder %s9, 1
    %p69 = scmp.ne.s32.totalorder %s64, %s66
    %p70 = scmp.eq.s32.totalorder %s9, 0
    %p71 = por %p69, %p70
    %p72 = scmp.ne.s32.totalorder %s64, %s66
    %p73 = scmp.eq.s32.totalorder %s14, 1
    %p74 = por %p72, %p73
    %p75 = scmp.ne.s32.totalorder %s66, %s67
    %p76 = scmp.eq.s32.totalorder %s14, 0
    %p77 = por %p75, %p76
    %p78 = scmp.ne.s32.totalorder %s66, %s67
    %p79 = scmp.eq.s32.totalorder %s15, 1
    %p80 = por %p78, %p79
    %p82 = scmp.ne.s32.totalorder %s67, %s81
    %p83 = scmp.eq.s32.totalorder %s15, 0
    %p84 = por %p82, %p83
    %s85 = ssub.s32 %s9, %s16
    %p86 = scmp.eq.s32.totalorder %s85, 0
    %s88 = sadd.s32 %s87, 1
    %s89 = scalar_select %p86, %s87, %s88
    %p92 = pneg %p86
    %p93 = scmp.eq.s32.totalorder %s9, 1
    %p94 = por %p92, %p93
    %p95 = scmp.ne.s32.totalorder %s87, %s90
    %p96 = scmp.eq.s32.totalorder %s9, 0
    %p97 = por %p95, %p96
    %p98 = scmp.ne.s32.totalorder %s87, %s90
    %p99 = scmp.eq.s32.totalorder %s14, 1
    %p100 = por %p98, %p99
    %p101 = scmp.ne.s32.totalorder %s90, %s91
    %p102 = scmp.eq.s32.totalorder %s14, 0
    %p103 = por %p101, %p102
    %p104 = scmp.ne.s32.totalorder %s90, %s91
    %p105 = scmp.eq.s32.totalorder %s15, 1
    %p106 = por %p104, %p105
    %p108 = scmp.ne.s32.totalorder %s91, %s107
    %p109 = scmp.eq.s32.totalorder %s15, 0
    %p110 = por %p108, %p109
    %p111 = scmp.le.s32.totalorder 1, %s9
    %p112 = scmp.lt.s32.totalorder %s9, 3
    %p113 = pnand %p111, %p112
    %p114 = pneg %p113
    // Predicated region
    $region9: #{inception_a_forward.4} parent=5 // pred_check
      _
    $region10: #{inception_a_forward.4} parent=5 // pred_check_branch
      %116 = sbr.rel (%p113) target = $region12
    $region11: #{inception_a_forward.4} parent=5 // pred_region
      %s117 = ssub.s32 %s9, 1
      // Predicated region
      $region13: #{inception_a_forward.4} parent=11 // pred_check
        %p118 = pneg %p56
      $region14: #{inception_a_forward.4} parent=11 // pred_check_branch
        %120 = sbr.rel (%p118) target = $region16
      $region15: #{inception_a_forward.4} parent=11 // pred_region
        _
      $region16: #{inception_a_forward.4} parent=11 // pred_fallthru
        _
      // Predicated region
      $region17: #{inception_a_forward.4} parent=11 // pred_check
        %p121 = pneg %p77
      $region18: #{inception_a_forward.4} parent=11 // pred_check_branch
        %123 = sbr.rel (%p121) target = $region20
      $region19: #{inception_a_forward.4} parent=11 // pred_region
        _
      $region20: #{inception_a_forward.4} parent=11 // pred_fallthru
        _
    $region12: #{inception_a_forward.4} parent=5 // pred_fallthru
      _
    %p124 = scmp.lt.s32.totalorder %s9, 2
    // Predicated region
    $region21: #{inception_a_forward.4} parent=5 // pred_check
      %p125 = pneg %p124
    $region22: #{inception_a_forward.4} parent=5 // pred_check_branch
      %127 = sbr.rel (%p125) target = $region24
    $region23: #{inception_a_forward.4} parent=5 // pred_region
      // Predicated region
      $region25: #{inception_a_forward.4} parent=23 // pred_check
        %p128 = pneg %p29
      $region26: #{inception_a_forward.4} parent=23 // pred_check_branch
        %130 = sbr.rel (%p128) target = $region28
      $region27: #{inception_a_forward.4} parent=23 // pred_region
        %p131 = scmp.lt.s32.totalorder %s9, 1
        %s132 = scalar_select %p131, %s9, 1
        %s133 = smul.addr %s132, 20
        %s134 = smul.addr %s133, 4
        %s135 = scalar_lea.vmem %s0, %s134
      $region28: #{inception_a_forward.4} parent=23 // pred_fallthru
        _
    $region24: #{inception_a_forward.4} parent=5 // pred_fallthru
      _
    %p136 = scmp.le.s32.totalorder 1, %s9
    %p137 = scmp.lt.s32.totalorder %s9, 3
    %p138 = pnand %p136, %p137
    %p139 = pneg %p138
    // Predicated region
    $region29: #{inception_a_forward.4} parent=5 // pred_check
      _
    $region30: #{inception_a_forward.4} parent=5 // pred_check_branch
      %141 = sbr.rel (%p138) target = $region32
    $region31: #{inception_a_forward.4} parent=5 // pred_region
      %s142 = ssub.s32 %s9, 1
      %p143 = scmp.lt.s32.totalorder %s14, 1
      %s144 = scalar_select %p143, %s14, 1
      %s145 = smul.addr %s144, 20
      %s146 = smul.addr %s145, 4
      %s147 = scalar_lea.vmem %s0, %s146
      %p148 = pneg %p35
      %p149 = pneg %p32
      %p150 = pneg %p56
      %p151 = pneg %p53
      %p152 = pneg %p77
      %p153 = pneg %p74
      %p154 = pneg %p103
      %p155 = pneg %p100
      %s156 = smul.u32 8, %s14
      %p157 = scmp.lt.s32.totalorder %s156, 15
      %s158 = scalar_select %p157, %s156, 15
      %s159 = smul.addr %s158, 2
      %s160 = smul.addr %s159, 4
      %s161 = scalar_lea.vmem %s3, %s160
      %p162 = scmp.lt.s32.totalorder %s14, 1
      %s163 = scalar_select %p162, %s14, 1
      %s164 = smul.addr %s163, 20
      %s165 = smul.addr %s164, 4
      %s166 = scalar_lea.vmem %s0, %s165
      %s167 = smul.u32 8, %s14
      %p168 = scmp.lt.s32.totalorder %s167, 15
      %s169 = scalar_select %p168, %s167, 15
      %s170 = smul.addr %s169, 2
      %s171 = smul.addr %s170, 4
      %s172 = scalar_lea.vmem %s3, %s171
      %s173 = smul.u32 8, %s14
      %v175 = vld [vmem:[%s166] sm:$0xf]
      %v176 = vld [vmem:[%s166 + $0x4] sm:$0x1]
      %v177 = vld [vmem:[%s166 + $0x8] sm:$0xf]
      %v178 = vld [vmem:[%s166 + $0xc] sm:$0x1]
      %v179 = vld [vmem:[%s166 + $0x10] sm:$0xf]
      %v180 = vld [vmem:[%s166 + $0x14] sm:$0x1]
      %v181 = vld [vmem:[%s166 + $0x18] sm:$0xf]
      %v182 = vld [vmem:[%s166 + $0x1c] sm:$0x1]
      %v183 = vld [vmem:[%s166 + $0x20] sm:$0xf]
      %v184 = vld [vmem:[%s166 + $0x24] sm:$0x1]
      %v185 = vld [vmem:[%s166 + $0x28] sm:$0xf]
      %v186 = vld [vmem:[%s166 + $0x2c] sm:$0x1]
      %v187 = vld [vmem:[%s166 + $0x30] sm:$0xf]
      %v188 = vld [vmem:[%s166 + $0x34] sm:$0x1]
      %v189 = vld [vmem:[%s166 + $0x38] sm:$0xf]
      %v190 = vld [vmem:[%s166 + $0x3c] sm:$0x1]
      %v191 = vld [vmem:[%s166 + $0x40] sm:$0xf]
      %v192 = vld [vmem:[%s166 + $0x44] sm:$0x1]
      %v193 = vld [vmem:[%s166 + $0x48] sm:$0xf]
      %v194 = vld [vmem:[%s166 + $0x4c] sm:$0x1]
      %v195 = vunpack.c.l.bf16 %v175
      %v196 = vunpack.c.l.bf16 %v176
      %v197 = vunpack.c.l.bf16 %v177
      %v198 = vunpack.c.l.bf16 %v178
      %v199 = vunpack.c.l.bf16 %v179
      %v200 = vunpack.c.l.bf16 %v180
      %v201 = vunpack.c.l.bf16 %v181
      %v202 = vunpack.c.l.bf16 %v182
      %v203 = vunpack.c.l.bf16 %v183
      %v204 = vunpack.c.l.bf16 %v184
      %v205 = vunpack.c.l.bf16 %v185
      %v206 = vunpack.c.l.bf16 %v186
      %v207 = vunpack.c.l.bf16 %v187
      %v208 = vunpack.c.l.bf16 %v188
      %v209 = vunpack.c.l.bf16 %v189
      %v210 = vunpack.c.l.bf16 %v190
      %v211 = vunpack.c.l.bf16 %v191
      %v212 = vunpack.c.l.bf16 %v192
      %v213 = vunpack.c.l.bf16 %v193
      %v214 = vunpack.c.l.bf16 %v194
      %v215 = vpack.c.bf16 %v197, %v195
      %v216 = vpack.c.bf16 %v201, %v199
      %v217 = vpack.c.bf16 %v205, %v203
      %v218 = vpack.c.bf16 %v209, %v207
      %v219 = vld [vmem:[%s1] sm:$0xff]
      %v220 = vld [vmem:[%s1 + $0x8] sm:$0xff]
      %v221 = vld [vmem:[%s1 + $0x10] sm:$0xff]
      %v222 = vld [vmem:[%s1 + $0x18] sm:$0xff]
      %v223 = vld [vmem:[%s1 + $0x20] sm:$0xff]
      %v224 = vld [vmem:[%s1 + $0x28] sm:$0xff]
      %v225 = vld [vmem:[%s1 + $0x30] sm:$0xff]
      %v226 = vld [vmem:[%s1 + $0x38] sm:$0xff]
      %v227 = vld [vmem:[%s1 + $0x40] sm:$0xff]
      %v228 = vld [vmem:[%s1 + $0x48] sm:$0xff]
      %v229 = vld [vmem:[%s1 + $0x50] sm:$0xff]
      %v230 = vld [vmem:[%s1 + $0x58] sm:$0xff]
      %v231 = vld [vmem:[%s1 + $0x60] sm:$0xff]
      %v232 = vld [vmem:[%s1 + $0x68] sm:$0xff]
      %v233 = vld [vmem:[%s1 + $0x70] sm:$0xff]
      %v234 = vld [vmem:[%s1 + $0x78] sm:$0xff]
      %vm251 = vcmask 1046528
      %v252 = vrot.slane %v195, 1
      %v253 = vrot.slane %v196, 1
      %v254 = vsel %vm251, %v252, %v253
      %v255 = vrot.slane %v197, 1
      %v256 = vrot.slane %v198, 1
      %v257 = vsel %vm251, %v255, %v256
      %v258 = vrot.slane %v199, 1
      %v259 = vrot.slane %v200, 1
      %v260 = vsel %vm251, %v258, %v259
      %v261 = vrot.slane %v201, 1
      %v262 = vrot.slane %v202, 1
      %v263 = vsel %vm251, %v261, %v262
      %v264 = vrot.slane %v203, 1
      %v265 = vrot.slane %v204, 1
      %v266 = vsel %vm251, %v264, %v265
      %v267 = vrot.slane %v205, 1
      %v268 = vrot.slane %v206, 1
      %v269 = vsel %vm251, %v267, %v268
      %v270 = vrot.slane %v207, 1
      %v271 = vrot.slane %v208, 1
      %v272 = vsel %vm251, %v270, %v271
      %v273 = vrot.slane %v209, 1
      %v274 = vrot.slane %v210, 1
      %v275 = vsel %vm251, %v273, %v274
      %v284 = vpack.c.bf16 %v257, %v254
      %v285 = vpack.c.bf16 %v263, %v260
      %v286 = vpack.c.bf16 %v269, %v266
      %v287 = vpack.c.bf16 %v275, %v272
      %s288 = scalar_lea.vmem %s1, 128
      %v289 = vld [vmem:[%s288] sm:$0xff]
      %v290 = vld [vmem:[%s288 + $0x8] sm:$0xff]
      %v291 = vld [vmem:[%s288 + $0x10] sm:$0xff]
      %v292 = vld [vmem:[%s288 + $0x18] sm:$0xff]
      %v293 = vld [vmem:[%s288 + $0x20] sm:$0xff]
      %v294 = vld [vmem:[%s288 + $0x28] sm:$0xff]
      %v295 = vld [vmem:[%s288 + $0x30] sm:$0xff]
      %v296 = vld [vmem:[%s288 + $0x38] sm:$0xff]
      %v297 = vld [vmem:[%s288 + $0x40] sm:$0xff]
      %v298 = vld [vmem:[%s288 + $0x48] sm:$0xff]
      %v299 = vld [vmem:[%s288 + $0x50] sm:$0xff]
      %v300 = vld [vmem:[%s288 + $0x58] sm:$0xff]
      %v301 = vld [vmem:[%s288 + $0x60] sm:$0xff]
      %v302 = vld [vmem:[%s288 + $0x68] sm:$0xff]
      %v303 = vld [vmem:[%s288 + $0x70] sm:$0xff]
      %v304 = vld [vmem:[%s288 + $0x78] sm:$0xff]
      %v321 = vunpack.c.l.b16 %v289
      %v322 = vunpack.c.h.b16 %v289
      %v323 = vunpack.c.l.b16 %v290
      %v324 = vunpack.c.h.b16 %v290
      %v325 = vunpack.c.l.b16 %v291
      %v326 = vunpack.c.h.b16 %v291
      %v327 = vunpack.c.l.b16 %v292
      %v328 = vunpack.c.h.b16 %v292
      %v329 = vunpack.c.l.b16 %v293
      %v330 = vunpack.c.h.b16 %v293
      %v331 = vunpack.c.l.b16 %v294
      %v332 = vunpack.c.h.b16 %v294
      %v333 = vunpack.c.l.b16 %v295
      %v334 = vunpack.c.h.b16 %v295
      %v335 = vunpack.c.l.b16 %v296
      %v336 = vunpack.c.h.b16 %v296
      %v337 = vunpack.c.l.b16 %v297
      %v338 = vunpack.c.h.b16 %v297
      %v339 = vunpack.c.l.b16 %v298
      %v340 = vunpack.c.h.b16 %v298
      %v341 = vunpack.c.l.b16 %v299
      %v342 = vunpack.c.h.b16 %v299
      %v343 = vunpack.c.l.b16 %v300
      %v344 = vunpack.c.h.b16 %v300
      %v345 = vunpack.c.l.b16 %v301
      %v346 = vunpack.c.h.b16 %v301
      %v347 = vunpack.c.l.b16 %v302
      %v348 = vunpack.c.h.b16 %v302
      %v349 = vunpack.c.l.b16 %v303
      %v350 = vunpack.c.h.b16 %v303
      %v351 = vunpack.c.l.b16 %v304
      %v352 = vunpack.c.h.b16 %v304
      %v353 = vpack.c.b16 %v323, %v321
      %v354 = vpack.c.b16 %v324, %v322
      %v355 = vpack.c.b16 %v327, %v325
      %v356 = vpack.c.b16 %v328, %v326
      %v357 = vpack.c.b16 %v331, %v329
      %v358 = vpack.c.b16 %v332, %v330
      %v359 = vpack.c.b16 %v335, %v333
      %v360 = vpack.c.b16 %v336, %v334
      %v361 = vpack.c.b16 %v339, %v337
      %v362 = vpack.c.b16 %v340, %v338
      %v363 = vpack.c.b16 %v343, %v341
      %v364 = vpack.c.b16 %v344, %v342
      %v365 = vpack.c.b16 %v347, %v345
      %v366 = vpack.c.b16 %v348, %v346
      %v367 = vpack.c.b16 %v351, %v349
      %v368 = vpack.c.b16 %v352, %v350
      %385 = vmatprep.subr.bf16.mxu0 %v368
      %386 = vmatpush1.bf16.msra.mxu0 %v367
      %387 = vmatprep.subr.bf16.mxu0 %v366
      %388 = vmatpush1.bf16.msra.mxu0 %v365
      %389 = vmatprep.subr.bf16.mxu0 %v364
      %390 = vmatpush1.bf16.msra.mxu0 %v363
      %391 = vmatprep.subr.bf16.mxu0 %v362
      %392 = vmatpush1.bf16.msra.mxu0 %v361
      %393 = vmatprep.subr.bf16.mxu0 %v360
      %394 = vmatpush1.bf16.msra.mxu0 %v359
      %395 = vmatprep.subr.bf16.mxu0 %v358
      %396 = vmatpush1.bf16.msra.mxu0 %v357
      %397 = vmatprep.subr.bf16.mxu0 %v356
      %398 = vmatpush1.bf16.msra.mxu0 %v355
      %399 = vmatprep.subr.bf16.mxu0 %v354
      %400 = vmatpush1.bf16.msra.mxu0 %v353
      %401 = vmatprep.subr.bf16.mxu0 0
      %402 = vmatpush2.bf16.msra.mxu0 0
      %403 = vmatprep.subr.bf16.mxu0 0
      %404 = vmatpush2.bf16.msra.mxu0 0
      %405 = vmatprep.subr.bf16.mxu0 0
      %406 = vmatpush2.bf16.msra.mxu0 0
      %407 = vmatprep.subr.bf16.mxu0 0
      %408 = vmatpush2.bf16.msra.mxu0 0
      %409 = vmatprep.subr.bf16.mxu0 0
      %410 = vmatpush2.bf16.msra.mxu0 0
      %411 = vmatprep.subr.bf16.mxu0 0
      %412 = vmatpush2.bf16.msra.mxu0 0
      %413 = vmatprep.subr.bf16.mxu0 0
      %414 = vmatpush2.bf16.msra.mxu0 0
      %415 = vmatprep.subr.bf16.mxu0 0
      %416 = vmatpush2.bf16.msra.mxu0 0
      %417 = vmatprep.mubr.bf16.mxu0 0
      %418 = vmatmul.mubr.bf16.gmra.mxu0 %v284
      %v419 = vpop.f32.mrf.mxu0
      %v420 = vadd.f32 0.0, %v419
      %v421 = vpop.f32.mrf.mxu0
      %v422 = vadd.f32 0.0, %v421
      %v423 = vpop.f32.mrf.mxu0
      %v424 = vadd.f32 0.0, %v423
      %v425 = vpop.f32.mrf.mxu0
      %v426 = vadd.f32 0.0, %v425
      %427 = vmatprep.mubr.bf16.mxu0 0
      %428 = vmatmul.mubr.bf16.gmra.mxu0 %v285
      %v429 = vpop.f32.mrf.mxu0
      %v430 = vadd.f32 0.0, %v429
      %v431 = vpop.f32.mrf.mxu0
      %v432 = vadd.f32 0.0, %v431
      %v433 = vpop.f32.mrf.mxu0
      %v434 = vadd.f32 0.0, %v433
      %v435 = vpop.f32.mrf.mxu0
      %v436 = vadd.f32 0.0, %v435
      %437 = vmatprep.mubr.bf16.mxu0 0
      %438 = vmatmul.mubr.bf16.gmra.mxu0 %v286
      %v439 = vpop.f32.mrf.mxu0
      %v440 = vadd.f32 0.0, %v439
      %v441 = vpop.f32.mrf.mxu0
      %v442 = vadd.f32 0.0, %v441
      %v443 = vpop.f32.mrf.mxu0
      %v444 = vadd.f32 0.0, %v443
      %v445 = vpop.f32.mrf.mxu0
      %v446 = vadd.f32 0.0, %v445
      %447 = vmatprep.mubr.bf16.mxu0 0
      %448 = vmatmul.mubr.bf16.gmra.mxu0 %v287
      %v449 = vpop.f32.mrf.mxu0
      %v450 = vadd.f32 0.0, %v449
      %v451 = vpop.f32.mrf.mxu0
      %v452 = vadd.f32 0.0, %v451
      %v453 = vpop.f32.mrf.mxu0
      %v454 = vadd.f32 0.0, %v453
      %v455 = vpop.f32.mrf.mxu0
      %v456 = vadd.f32 0.0, %v455
      %457 = vdwg.mxu0
      %v474 = vunpack.c.l.b16 %v219
      %v475 = vunpack.c.h.b16 %v219
      %v476 = vunpack.c.l.b16 %v220
      %v477 = vunpack.c.h.b16 %v220
      %v478 = vunpack.c.l.b16 %v221
      %v479 = vunpack.c.h.b16 %v221
      %v480 = vunpack.c.l.b16 %v222
      %v481 = vunpack.c.h.b16 %v222
      %v482 = vunpack.c.l.b16 %v223
      %v483 = vunpack.c.h.b16 %v223
      %v484 = vunpack.c.l.b16 %v224
      %v485 = vunpack.c.h.b16 %v224
      %v486 = vunpack.c.l.b16 %v225
      %v487 = vunpack.c.h.b16 %v225
      %v488 = vunpack.c.l.b16 %v226
      %v489 = vunpack.c.h.b16 %v226
      %v490 = vunpack.c.l.b16 %v227
      %v491 = vunpack.c.h.b16 %v227
      %v492 = vunpack.c.l.b16 %v228
      %v493 = vunpack.c.h.b16 %v228
      %v494 = vunpack.c.l.b16 %v229
      %v495 = vunpack.c.h.b16 %v229
      %v496 = vunpack.c.l.b16 %v230
      %v497 = vunpack.c.h.b16 %v230
      %v498 = vunpack.c.l.b16 %v231
      %v499 = vunpack.c.h.b16 %v231
      %v500 = vunpack.c.l.b16 %v232
      %v501 = vunpack.c.h.b16 %v232
      %v502 = vunpack.c.l.b16 %v233
      %v503 = vunpack.c.h.b16 %v233
      %v504 = vunpack.c.l.b16 %v234
      %v505 = vunpack.c.h.b16 %v234
      %v506 = vpack.c.b16 %v476, %v474
      %v507 = vpack.c.b16 %v477, %v475
      %v508 = vpack.c.b16 %v480, %v478
      %v509 = vpack.c.b16 %v481, %v479
      %v510 = vpack.c.b16 %v484, %v482
      %v511 = vpack.c.b16 %v485, %v483
      %v512 = vpack.c.b16 %v488, %v486
      %v513 = vpack.c.b16 %v489, %v487
      %v514 = vpack.c.b16 %v492, %v490
      %v515 = vpack.c.b16 %v493, %v491
      %v516 = vpack.c.b16 %v496, %v494
      %v517 = vpack.c.b16 %v497, %v495
      %v518 = vpack.c.b16 %v500, %v498
      %v519 = vpack.c.b16 %v501, %v499
      %v520 = vpack.c.b16 %v504, %v502
      %v521 = vpack.c.b16 %v505, %v503
      %538 = vmatprep.subr.bf16.mxu0 %v521
      %539 = vmatpush1.bf16.msra.mxu0 %v520
      %540 = vmatprep.subr.bf16.mxu0 %v519
      %541 = vmatpush1.bf16.msra.mxu0 %v518
      %542 = vmatprep.subr.bf16.mxu0 %v517
      %543 = vmatpush1.bf16.msra.mxu0 %v516
      %544 = vmatprep.subr.bf16.mxu0 %v515
      %545 = vmatpush1.bf16.msra.mxu0 %v514
      %546 = vmatprep.subr.bf16.mxu0 %v513
      %547 = vmatpush1.bf16.msra.mxu0 %v512
      %548 = vmatprep.subr.bf16.mxu0 %v511
      %549 = vmatpush1.bf16.msra.mxu0 %v510
      %550 = vmatprep.subr.bf16.mxu0 %v509
      %551 = vmatpush1.bf16.msra.mxu0 %v508
      %552 = vmatprep.subr.bf16.mxu0 %v507
      %553 = vmatpush1.bf16.msra.mxu0 %v506
      %554 = vmatprep.subr.bf16.mxu0 0
      %555 = vmatpush2.bf16.msra.mxu0 0
      %556 = vmatprep.subr.bf16.mxu0 0
      %557 = vmatpush2.bf16.msra.mxu0 0
      %558 = vmatprep.subr.bf16.mxu0 0
      %559 = vmatpush2.bf16.msra.mxu0 0
      %560 = vmatprep.subr.bf16.mxu0 0
      %561 = vmatpush2.bf16.msra.mxu0 0
      %562 = vmatprep.subr.bf16.mxu0 0
      %563 = vmatpush2.bf16.msra.mxu0 0
      %564 = vmatprep.subr.bf16.mxu0 0
      %565 = vmatpush2.bf16.msra.mxu0 0
      %566 = vmatprep.subr.bf16.mxu0 0
      %567 = vmatpush2.bf16.msra.mxu0 0
      %568 = vmatprep.subr.bf16.mxu0 0
      %569 = vmatpush2.bf16.msra.mxu0 0
      %570 = vmatprep.mubr.bf16.mxu0 0
      %571 = vmatmul.mubr.bf16.gmra.mxu0 %v215
      %v572 = vpop.f32.mrf.mxu0
      %v573 = vadd.f32 %v420, %v572
      %v574 = vpop.f32.mrf.mxu0
      %v575 = vadd.f32 %v422, %v574
      %v576 = vpop.f32.mrf.mxu0
      %v577 = vadd.f32 %v424, %v576
      %v578 = vpop.f32.mrf.mxu0
      %v579 = vadd.f32 %v426, %v578
      %580 = vmatprep.mubr.bf16.mxu0 0
      %581 = vmatmul.mubr.bf16.gmra.mxu0 %v216
      %v582 = vpop.f32.mrf.mxu0
      %v583 = vadd.f32 %v430, %v582
      %v584 = vpop.f32.mrf.mxu0
      %v585 = vadd.f32 %v432, %v584
      %v586 = vpop.f32.mrf.mxu0
      %v587 = vadd.f32 %v434, %v586
      %v588 = vpop.f32.mrf.mxu0
      %v589 = vadd.f32 %v436, %v588
      %590 = vmatprep.mubr.bf16.mxu0 0
      %591 = vmatmul.mubr.bf16.gmra.mxu0 %v217
      %v592 = vpop.f32.mrf.mxu0
      %v593 = vadd.f32 %v440, %v592
      %v594 = vpop.f32.mrf.mxu0
      %v595 = vadd.f32 %v442, %v594
      %v596 = vpop.f32.mrf.mxu0
      %v597 = vadd.f32 %v444, %v596
      %v598 = vpop.f32.mrf.mxu0
      %v599 = vadd.f32 %v446, %v598
      %600 = vmatprep.mubr.bf16.mxu0 0
      %601 = vmatmul.mubr.bf16.gmra.mxu0 %v218
      %v602 = vpop.f32.mrf.mxu0
      %v603 = vadd.f32 %v450, %v602
      %v604 = vpop.f32.mrf.mxu0
      %v605 = vadd.f32 %v452, %v604
      %v606 = vpop.f32.mrf.mxu0
      %v607 = vadd.f32 %v454, %v606
      %v608 = vpop.f32.mrf.mxu0
      %v609 = vadd.f32 %v456, %v608
      %610 = vdwg.mxu0
      %vm611 = vcmask 1045504
      %v612 = vrot.slane %v195, 2
      %v613 = vrot.slane %v196, 2
      %v614 = vsel %vm611, %v612, %v613
      %v615 = vrot.slane %v197, 2
      %v616 = vrot.slane %v198, 2
      %v617 = vsel %vm611, %v615, %v616
      %v618 = vrot.slane %v199, 2
      %v619 = vrot.slane %v200, 2
      %v620 = vsel %vm611, %v618, %v619
      %v621 = vrot.slane %v201, 2
      %v622 = vrot.slane %v202, 2
      %v623 = vsel %vm611, %v621, %v622
      %v624 = vrot.slane %v203, 2
      %v625 = vrot.slane %v204, 2
      %v626 = vsel %vm611, %v624, %v625
      %v627 = vrot.slane %v205, 2
      %v628 = vrot.slane %v206, 2
      %v629 = vsel %vm611, %v627, %v628
      %v630 = vrot.slane %v207, 2
      %v631 = vrot.slane %v208, 2
      %v632 = vsel %vm611, %v630, %v631
      %v633 = vrot.slane %v209, 2
      %v634 = vrot.slane %v210, 2
      %v635 = vsel %vm611, %v633, %v634
      %v644 = vpack.c.bf16 %v617, %v614
      %v645 = vpack.c.bf16 %v623, %v620
      %v646 = vpack.c.bf16 %v629, %v626
      %v647 = vpack.c.bf16 %v635, %v632
      %s648 = scalar_lea.vmem %s1, 256
      %v649 = vld [vmem:[%s648] sm:$0xff]
      %v650 = vld [vmem:[%s648 + $0x8] sm:$0xff]
      %v651 = vld [vmem:[%s648 + $0x10] sm:$0xff]
      %v652 = vld [vmem:[%s648 + $0x18] sm:$0xff]
      %v653 = vld [vmem:[%s648 + $0x20] sm:$0xff]
      %v654 = vld [vmem:[%s648 + $0x28] sm:$0xff]
      %v655 = vld [vmem:[%s648 + $0x30] sm:$0xff]
      %v656 = vld [vmem:[%s648 + $0x38] sm:$0xff]
      %v657 = vld [vmem:[%s648 + $0x40] sm:$0xff]
      %v658 = vld [vmem:[%s648 + $0x48] sm:$0xff]
      %v659 = vld [vmem:[%s648 + $0x50] sm:$0xff]
      %v660 = vld [vmem:[%s648 + $0x58] sm:$0xff]
      %v661 = vld [vmem:[%s648 + $0x60] sm:$0xff]
      %v662 = vld [vmem:[%s648 + $0x68] sm:$0xff]
      %v663 = vld [vmem:[%s648 + $0x70] sm:$0xff]
      %v664 = vld [vmem:[%s648 + $0x78] sm:$0xff]
      %v681 = vunpack.c.l.b16 %v649
      %v682 = vunpack.c.h.b16 %v649
      %v683 = vunpack.c.l.b16 %v650
      %v684 = vunpack.c.h.b16 %v650
      %v685 = vunpack.c.l.b16 %v651
      %v686 = vunpack.c.h.b16 %v651
      %v687 = vunpack.c.l.b16 %v652
      %v688 = vunpack.c.h.b16 %v652
      %v689 = vunpack.c.l.b16 %v653
      %v690 = vunpack.c.h.b16 %v653
      %v691 = vunpack.c.l.b16 %v654
      %v692 = vunpack.c.h.b16 %v654
      %v693 = vunpack.c.l.b16 %v655
      %v694 = vunpack.c.h.b16 %v655
      %v695 = vunpack.c.l.b16 %v656
      %v696 = vunpack.c.h.b16 %v656
      %v697 = vunpack.c.l.b16 %v657
      %v698 = vunpack.c.h.b16 %v657
      %v699 = vunpack.c.l.b16 %v658
      %v700 = vunpack.c.h.b16 %v658
      %v701 = vunpack.c.l.b16 %v659
      %v702 = vunpack.c.h.b16 %v659
      %v703 = vunpack.c.l.b16 %v660
      %v704 = vunpack.c.h.b16 %v660
      %v705 = vunpack.c.l.b16 %v661
      %v706 = vunpack.c.h.b16 %v661
      %v707 = vunpack.c.l.b16 %v662
      %v708 = vunpack.c.h.b16 %v662
      %v709 = vunpack.c.l.b16 %v663
      %v710 = vunpack.c.h.b16 %v663
      %v711 = vunpack.c.l.b16 %v664
      %v712 = vunpack.c.h.b16 %v664
      %v713 = vpack.c.b16 %v683, %v681
      %v714 = vpack.c.b16 %v684, %v682
      %v715 = vpack.c.b16 %v687, %v685
      %v716 = vpack.c.b16 %v688, %v686
      %v717 = vpack.c.b16 %v691, %v689
      %v718 = vpack.c.b16 %v692, %v690
      %v719 = vpack.c.b16 %v695, %v693
      %v720 = vpack.c.b16 %v696, %v694
      %v721 = vpack.c.b16 %v699, %v697
      %v722 = vpack.c.b16 %v700, %v698
      %v723 = vpack.c.b16 %v703, %v701
      %v724 = vpack.c.b16 %v704, %v702
      %v725 = vpack.c.b16 %v707, %v705
      %v726 = vpack.c.b16 %v708, %v706
      %v727 = vpack.c.b16 %v711, %v709
      %v728 = vpack.c.b16 %v712, %v710
      %745 = vmatprep.subr.bf16.mxu0 %v728
      %746 = vmatpush1.bf16.msra.mxu0 %v727
      %747 = vmatprep.subr.bf16.mxu0 %v726
      %748 = vmatpush1.bf16.msra.mxu0 %v725
      %749 = vmatprep.subr.bf16.mxu0 %v724
      %750 = vmatpush1.bf16.msra.mxu0 %v723
      %751 = vmatprep.subr.bf16.mxu0 %v722
      %752 = vmatpush1.bf16.msra.mxu0 %v721
      %753 = vmatprep.subr.bf16.mxu0 %v720
      %754 = vmatpush1.bf16.msra.mxu0 %v719
      %755 = vmatprep.subr.bf16.mxu0 %v718
      %756 = vmatpush1.bf16.msra.mxu0 %v717
      %757 = vmatprep.subr.bf16.mxu0 %v716
      %758 = vmatpush1.bf16.msra.mxu0 %v715
      %759 = vmatprep.subr.bf16.mxu0 %v714
      %760 = vmatpush1.bf16.msra.mxu0 %v713
      %761 = vmatprep.subr.bf16.mxu0 0
      %762 = vmatpush2.bf16.msra.mxu0 0
      %763 = vmatprep.subr.bf16.mxu0 0
      %764 = vmatpush2.bf16.msra.mxu0 0
      %765 = vmatprep.subr.bf16.mxu0 0
      %766 = vmatpush2.bf16.msra.mxu0 0
      %767 = vmatprep.subr.bf16.mxu0 0
      %768 = vmatpush2.bf16.msra.mxu0 0
      %769 = vmatprep.subr.bf16.mxu0 0
      %770 = vmatpush2.bf16.msra.mxu0 0
      %771 = vmatprep.subr.bf16.mxu0 0
      %772 = vmatpush2.bf16.msra.mxu0 0
      %773 = vmatprep.subr.bf16.mxu0 0
      %774 = vmatpush2.bf16.msra.mxu0 0
      %775 = vmatprep.subr.bf16.mxu0 0
      %776 = vmatpush2.bf16.msra.mxu0 0
      %777 = vmatprep.mubr.bf16.mxu0 0
      %778 = vmatmul.mubr.bf16.gmra.mxu0 %v644
      %v779 = vpop.f32.mrf.mxu0
      %v780 = vadd.f32 0.0, %v779
      %v781 = vpop.f32.mrf.mxu0
      %v782 = vadd.f32 0.0, %v781
      %v783 = vpop.f32.mrf.mxu0
      %v784 = vadd.f32 0.0, %v783
      %v785 = vpop.f32.mrf.mxu0
      %v786 = vadd.f32 0.0, %v785
      %787 = vmatprep.mubr.bf16.mxu0 0
      %788 = vmatmul.mubr.bf16.gmra.mxu0 %v645
      %v789 = vpop.f32.mrf.mxu0
      %v790 = vadd.f32 0.0, %v789
      %v791 = vpop.f32.mrf.mxu0
      %v792 = vadd.f32 0.0, %v791
      %v793 = vpop.f32.mrf.mxu0
      %v794 = vadd.f32 0.0, %v793
      %v795 = vpop.f32.mrf.mxu0
      %v796 = vadd.f32 0.0, %v795
      %797 = vmatprep.mubr.bf16.mxu0 0
      %798 = vmatmul.mubr.bf16.gmra.mxu0 %v646
      %v799 = vpop.f32.mrf.mxu0
      %v800 = vadd.f32 0.0, %v799
      %v801 = vpop.f32.mrf.mxu0
      %v802 = vadd.f32 0.0, %v801
      %v803 = vpop.f32.mrf.mxu0
      %v804 = vadd.f32 0.0, %v803
      %v805 = vpop.f32.mrf.mxu0
      %v806 = vadd.f32 0.0, %v805
      %807 = vmatprep.mubr.bf16.mxu0 0
      %808 = vmatmul.mubr.bf16.gmra.mxu0 %v647
      %v809 = vpop.f32.mrf.mxu0
      %v810 = vadd.f32 0.0, %v809
      %v811 = vpop.f32.mrf.mxu0
      %v812 = vadd.f32 0.0, %v811
      %v813 = vpop.f32.mrf.mxu0
      %v814 = vadd.f32 0.0, %v813
      %v815 = vpop.f32.mrf.mxu0
      %v816 = vadd.f32 0.0, %v815
      %817 = vdwg.mxu0
      %v818 = vadd.f32 %v573, %v780
      %v819 = vadd.f32 %v575, %v782
      %v820 = vadd.f32 %v577, %v784
      %v821 = vadd.f32 %v579, %v786
      %v822 = vadd.f32 %v583, %v790
      %v823 = vadd.f32 %v585, %v792
      %v824 = vadd.f32 %v587, %v794
      %v825 = vadd.f32 %v589, %v796
      %v826 = vadd.f32 %v593, %v800
      %v827 = vadd.f32 %v595, %v802
      %v828 = vadd.f32 %v597, %v804
      %v829 = vadd.f32 %v599, %v806
      %v830 = vadd.f32 %v603, %v810
      %v831 = vadd.f32 %v605, %v812
      %v832 = vadd.f32 %v607, %v814
      %v833 = vadd.f32 %v609, %v816
      %v834 = vpack.c.bf16 %v199, %v197
      %v835 = vpack.c.bf16 %v203, %v201
      %v836 = vpack.c.bf16 %v207, %v205
      %v837 = vpack.c.bf16 %v211, %v209
      %s838 = scalar_lea.vmem %s1, 384
      %v839 = vld [vmem:[%s838] sm:$0xff]
      %v840 = vld [vmem:[%s838 + $0x8] sm:$0xff]
      %v841 = vld [vmem:[%s838 + $0x10] sm:$0xff]
      %v842 = vld [vmem:[%s838 + $0x18] sm:$0xff]
      %v843 = vld [vmem:[%s838 + $0x20] sm:$0xff]
      %v844 = vld [vmem:[%s838 + $0x28] sm:$0xff]
      %v845 = vld [vmem:[%s838 + $0x30] sm:$0xff]
      %v846 = vld [vmem:[%s838 + $0x38] sm:$0xff]
      %v847 = vld [vmem:[%s838 + $0x40] sm:$0xff]
      %v848 = vld [vmem:[%s838 + $0x48] sm:$0xff]
      %v849 = vld [vmem:[%s838 + $0x50] sm:$0xff]
      %v850 = vld [vmem:[%s838 + $0x58] sm:$0xff]
      %v851 = vld [vmem:[%s838 + $0x60] sm:$0xff]
      %v852 = vld [vmem:[%s838 + $0x68] sm:$0xff]
      %v853 = vld [vmem:[%s838 + $0x70] sm:$0xff]
      %v854 = vld [vmem:[%s838 + $0x78] sm:$0xff]
      %v871 = vunpack.c.l.b16 %v839
      %v872 = vunpack.c.h.b16 %v839
      %v873 = vunpack.c.l.b16 %v840
      %v874 = vunpack.c.h.b16 %v840
      %v875 = vunpack.c.l.b16 %v841
      %v876 = vunpack.c.h.b16 %v841
      %v877 = vunpack.c.l.b16 %v842
      %v878 = vunpack.c.h.b16 %v842
      %v879 = vunpack.c.l.b16 %v843
      %v880 = vunpack.c.h.b16 %v843
      %v881 = vunpack.c.l.b16 %v844
      %v882 = vunpack.c.h.b16 %v844
      %v883 = vunpack.c.l.b16 %v845
      %v884 = vunpack.c.h.b16 %v845
      %v885 = vunpack.c.l.b16 %v846
      %v886 = vunpack.c.h.b16 %v846
      %v887 = vunpack.c.l.b16 %v847
      %v888 = vunpack.c.h.b16 %v847
      %v889 = vunpack.c.l.b16 %v848
      %v890 = vunpack.c.h.b16 %v848
      %v891 = vunpack.c.l.b16 %v849
      %v892 = vunpack.c.h.b16 %v849
      %v893 = vunpack.c.l.b16 %v850
      %v894 = vunpack.c.h.b16 %v850
      %v895 = vunpack.c.l.b16 %v851
      %v896 = vunpack.c.h.b16 %v851
      %v897 = vunpack.c.l.b16 %v852
      %v898 = vunpack.c.h.b16 %v852
      %v899 = vunpack.c.l.b16 %v853
      %v900 = vunpack.c.h.b16 %v853
      %v901 = vunpack.c.l.b16 %v854
      %v902 = vunpack.c.h.b16 %v854
      %v903 = vpack.c.b16 %v873, %v871
      %v904 = vpack.c.b16 %v874, %v872
      %v905 = vpack.c.b16 %v877, %v875
      %v906 = vpack.c.b16 %v878, %v876
      %v907 = vpack.c.b16 %v881, %v879
      %v908 = vpack.c.b16 %v882, %v880
      %v909 = vpack.c.b16 %v885, %v883
      %v910 = vpack.c.b16 %v886, %v884
      %v911 = vpack.c.b16 %v889, %v887
      %v912 = vpack.c.b16 %v890, %v888
      %v913 = vpack.c.b16 %v893, %v891
      %v914 = vpack.c.b16 %v894, %v892
      %v915 = vpack.c.b16 %v897, %v895
      %v916 = vpack.c.b16 %v898, %v896
      %v917 = vpack.c.b16 %v901, %v899
      %v918 = vpack.c.b16 %v902, %v900
      %935 = vmatprep.subr.bf16.mxu0 %v918
      %936 = vmatpush1.bf16.msra.mxu0 %v917
      %937 = vmatprep.subr.bf16.mxu0 %v916
      %938 = vmatpush1.bf16.msra.mxu0 %v915
      %939 = vmatprep.subr.bf16.mxu0 %v914
      %940 = vmatpush1.bf16.msra.mxu0 %v913
      %941 = vmatprep.subr.bf16.mxu0 %v912
      %942 = vmatpush1.bf16.msra.mxu0 %v911
      %943 = vmatprep.subr.bf16.mxu0 %v910
      %944 = vmatpush1.bf16.msra.mxu0 %v909
      %945 = vmatprep.subr.bf16.mxu0 %v908
      %946 = vmatpush1.bf16.msra.mxu0 %v907
      %947 = vmatprep.subr.bf16.mxu0 %v906
      %948 = vmatpush1.bf16.msra.mxu0 %v905
      %949 = vmatprep.subr.bf16.mxu0 %v904
      %950 = vmatpush1.bf16.msra.mxu0 %v903
      %951 = vmatprep.subr.bf16.mxu0 0
      %952 = vmatpush2.bf16.msra.mxu0 0
      %953 = vmatprep.subr.bf16.mxu0 0
      %954 = vmatpush2.bf16.msra.mxu0 0
      %955 = vmatprep.subr.bf16.mxu0 0
      %956 = vmatpush2.bf16.msra.mxu0 0
      %957 = vmatprep.subr.bf16.mxu0 0
      %958 = vmatpush2.bf16.msra.mxu0 0
      %959 = vmatprep.subr.bf16.mxu0 0
      %960 = vmatpush2.bf16.msra.mxu0 0
      %961 = vmatprep.subr.bf16.mxu0 0
      %962 = vmatpush2.bf16.msra.mxu0 0
      %963 = vmatprep.subr.bf16.mxu0 0
      %964 = vmatpush2.bf16.msra.mxu0 0
      %965 = vmatprep.subr.bf16.mxu0 0
      %966 = vmatpush2.bf16.msra.mxu0 0
      %967 = vmatprep.mubr.bf16.mxu0 0
      %968 = vmatmul.mubr.bf16.gmra.mxu0 %v834
      %v969 = vpop.f32.mrf.mxu0
      %v970 = vadd.f32 0.0, %v969
      %v971 = vpop.f32.mrf.mxu0
      %v972 = vadd.f32 0.0, %v971
      %v973 = vpop.f32.mrf.mxu0
      %v974 = vadd.f32 0.0, %v973
      %v975 = vpop.f32.mrf.mxu0
      %v976 = vadd.f32 0.0, %v975
      %977 = vmatprep.mubr.bf16.mxu0 0
      %978 = vmatmul.mubr.bf16.gmra.mxu0 %v835
      %v979 = vpop.f32.mrf.mxu0
      %v980 = vadd.f32 0.0, %v979
      %v981 = vpop.f32.mrf.mxu0
      %v982 = vadd.f32 0.0, %v981
      %v983 = vpop.f32.mrf.mxu0
      %v984 = vadd.f32 0.0, %v983
      %v985 = vpop.f32.mrf.mxu0
      %v986 = vadd.f32 0.0, %v985
      %987 = vmatprep.mubr.bf16.mxu0 0
      %988 = vmatmul.mubr.bf16.gmra.mxu0 %v836
      %v989 = vpop.f32.mrf.mxu0
      %v990 = vadd.f32 0.0, %v989
      %v991 = vpop.f32.mrf.mxu0
      %v992 = vadd.f32 0.0, %v991
      %v993 = vpop.f32.mrf.mxu0
      %v994 = vadd.f32 0.0, %v993
      %v995 = vpop.f32.mrf.mxu0
      %v996 = vadd.f32 0.0, %v995
      %997 = vmatprep.mubr.bf16.mxu0 0
      %998 = vmatmul.mubr.bf16.gmra.mxu0 %v837
      %v999 = vpop.f32.mrf.mxu0
      %v1000 = vadd.f32 0.0, %v999
      %v1001 = vpop.f32.mrf.mxu0
      %v1002 = vadd.f32 0.0, %v1001
      %v1003 = vpop.f32.mrf.mxu0
      %v1004 = vadd.f32 0.0, %v1003
      %v1005 = vpop.f32.mrf.mxu0
      %v1006 = vadd.f32 0.0, %v1005
      %1007 = vdwg.mxu0
      %v1008 = vadd.f32 %v818, %v970
      %v1009 = vadd.f32 %v819, %v972
      %v1010 = vadd.f32 %v820, %v974
      %v1011 = vadd.f32 %v821, %v976
      %v1012 = vadd.f32 %v822, %v980
      %v1013 = vadd.f32 %v823, %v982
      %v1014 = vadd.f32 %v824, %v984
      %v1015 = vadd.f32 %v825, %v986
      %v1016 = vadd.f32 %v826, %v990
      %v1017 = vadd.f32 %v827, %v992
      %v1018 = vadd.f32 %v828, %v994
      %v1019 = vadd.f32 %v829, %v996
      %v1020 = vadd.f32 %v830, %v1000
      %v1021 = vadd.f32 %v831, %v1002
      %v1022 = vadd.f32 %v832, %v1004
      %v1023 = vadd.f32 %v833, %v1006
      %v1026 = vrot.slane %v211, 1
      %v1027 = vrot.slane %v212, 1
      %v1028 = vsel %vm251, %v1026, %v1027
      %v1030 = vpack.c.bf16 %v260, %v257
      %v1031 = vpack.c.bf16 %v266, %v263
      %v1032 = vpack.c.bf16 %v272, %v269
      %v1033 = vpack.c.bf16 %v1028, %v275
      %s1034 = scalar_lea.vmem %s1, 512
      %v1035 = vld [vmem:[%s1034] sm:$0xff]
      %v1036 = vld [vmem:[%s1034 + $0x8] sm:$0xff]
      %v1037 = vld [vmem:[%s1034 + $0x10] sm:$0xff]
      %v1038 = vld [vmem:[%s1034 + $0x18] sm:$0xff]
      %v1039 = vld [vmem:[%s1034 + $0x20] sm:$0xff]
      %v1040 = vld [vmem:[%s1034 + $0x28] sm:$0xff]
      %v1041 = vld [vmem:[%s1034 + $0x30] sm:$0xff]
      %v1042 = vld [vmem:[%s1034 + $0x38] sm:$0xff]
      %v1043 = vld [vmem:[%s1034 + $0x40] sm:$0xff]
      %v1044 = vld [vmem:[%s1034 + $0x48] sm:$0xff]
      %v1045 = vld [vmem:[%s1034 + $0x50] sm:$0xff]
      %v1046 = vld [vmem:[%s1034 + $0x58] sm:$0xff]
      %v1047 = vld [vmem:[%s1034 + $0x60] sm:$0xff]
      %v1048 = vld [vmem:[%s1034 + $0x68] sm:$0xff]
      %v1049 = vld [vmem:[%s1034 + $0x70] sm:$0xff]
      %v1050 = vld [vmem:[%s1034 + $0x78] sm:$0xff]
      %v1067 = vunpack.c.l.b16 %v1035
      %v1068 = vunpack.c.h.b16 %v1035
      %v1069 = vunpack.c.l.b16 %v1036
      %v1070 = vunpack.c.h.b16 %v1036
      %v1071 = vunpack.c.l.b16 %v1037
      %v1072 = vunpack.c.h.b16 %v1037
      %v1073 = vunpack.c.l.b16 %v1038
      %v1074 = vunpack.c.h.b16 %v1038
      %v1075 = vunpack.c.l.b16 %v1039
      %v1076 = vunpack.c.h.b16 %v1039
      %v1077 = vunpack.c.l.b16 %v1040
      %v1078 = vunpack.c.h.b16 %v1040
      %v1079 = vunpack.c.l.b16 %v1041
      %v1080 = vunpack.c.h.b16 %v1041
      %v1081 = vunpack.c.l.b16 %v1042
      %v1082 = vunpack.c.h.b16 %v1042
      %v1083 = vunpack.c.l.b16 %v1043
      %v1084 = vunpack.c.h.b16 %v1043
      %v1085 = vunpack.c.l.b16 %v1044
      %v1086 = vunpack.c.h.b16 %v1044
      %v1087 = vunpack.c.l.b16 %v1045
      %v1088 = vunpack.c.h.b16 %v1045
      %v1089 = vunpack.c.l.b16 %v1046
      %v1090 = vunpack.c.h.b16 %v1046
      %v1091 = vunpack.c.l.b16 %v1047
      %v1092 = vunpack.c.h.b16 %v1047
      %v1093 = vunpack.c.l.b16 %v1048
      %v1094 = vunpack.c.h.b16 %v1048
      %v1095 = vunpack.c.l.b16 %v1049
      %v1096 = vunpack.c.h.b16 %v1049
      %v1097 = vunpack.c.l.b16 %v1050
      %v1098 = vunpack.c.h.b16 %v1050
      %v1099 = vpack.c.b16 %v1069, %v1067
      %v1100 = vpack.c.b16 %v1070, %v1068
      %v1101 = vpack.c.b16 %v1073, %v1071
      %v1102 = vpack.c.b16 %v1074, %v1072
      %v1103 = vpack.c.b16 %v1077, %v1075
      %v1104 = vpack.c.b16 %v1078, %v1076
      %v1105 = vpack.c.b16 %v1081, %v1079
      %v1106 = vpack.c.b16 %v1082, %v1080
      %v1107 = vpack.c.b16 %v1085, %v1083
      %v1108 = vpack.c.b16 %v1086, %v1084
      %v1109 = vpack.c.b16 %v1089, %v1087
      %v1110 = vpack.c.b16 %v1090, %v1088
      %v1111 = vpack.c.b16 %v1093, %v1091
      %v1112 = vpack.c.b16 %v1094, %v1092
      %v1113 = vpack.c.b16 %v1097, %v1095
      %v1114 = vpack.c.b16 %v1098, %v1096
      %1131 = vmatprep.subr.bf16.mxu0 %v1114
      %1132 = vmatpush1.bf16.msra.mxu0 %v1113
      %1133 = vmatprep.subr.bf16.mxu0 %v1112
      %1134 = vmatpush1.bf16.msra.mxu0 %v1111
      %1135 = vmatprep.subr.bf16.mxu0 %v1110
      %1136 = vmatpush1.bf16.msra.mxu0 %v1109
      %1137 = vmatprep.subr.bf16.mxu0 %v1108
      %1138 = vmatpush1.bf16.msra.mxu0 %v1107
      %1139 = vmatprep.subr.bf16.mxu0 %v1106
      %1140 = vmatpush1.bf16.msra.mxu0 %v1105
      %1141 = vmatprep.subr.bf16.mxu0 %v1104
      %1142 = vmatpush1.bf16.msra.mxu0 %v1103
      %1143 = vmatprep.subr.bf16.mxu0 %v1102
      %1144 = vmatpush1.bf16.msra.mxu0 %v1101
      %1145 = vmatprep.subr.bf16.mxu0 %v1100
      %1146 = vmatpush1.bf16.msra.mxu0 %v1099
      %1147 = vmatprep.subr.bf16.mxu0 0
      %1148 = vmatpush2.bf16.msra.mxu0 0
      %1149 = vmatprep.subr.bf16.mxu0 0
      %1150 = vmatpush2.bf16.msra.mxu0 0
      %1151 = vmatprep.subr.bf16.mxu0 0
      %1152 = vmatpush2.bf16.msra.mxu0 0
      %1153 = vmatprep.subr.bf16.mxu0 0
      %1154 = vmatpush2.bf16.msra.mxu0 0
      %1155 = vmatprep.subr.bf16.mxu0 0
      %1156 = vmatpush2.bf16.msra.mxu0 0
      %1157 = vmatprep.subr.bf16.mxu0 0
      %1158 = vmatpush2.bf16.msra.mxu0 0
      %1159 = vmatprep.subr.bf16.mxu0 0
      %1160 = vmatpush2.bf16.msra.mxu0 0
      %1161 = vmatprep.subr.bf16.mxu0 0
      %1162 = vmatpush2.bf16.msra.mxu0 0
      %1163 = vmatprep.mubr.bf16.mxu0 0
      %1164 = vmatmul.mubr.bf16.gmra.mxu0 %v1030
      %v1165 = vpop.f32.mrf.mxu0
      %v1166 = vadd.f32 0.0, %v1165
      %v1167 = vpop.f32.mrf.mxu0
      %v1168 = vadd.f32 0.0, %v1167
      %v1169 = vpop.f32.mrf.mxu0
      %v1170 = vadd.f32 0.0, %v1169
      %v1171 = vpop.f32.mrf.mxu0
      %v1172 = vadd.f32 0.0, %v1171
      %1173 = vmatprep.mubr.bf16.mxu0 0
      %1174 = vmatmul.mubr.bf16.gmra.mxu0 %v1031
      %v1175 = vpop.f32.mrf.mxu0
      %v1176 = vadd.f32 0.0, %v1175
      %v1177 = vpop.f32.mrf.mxu0
      %v1178 = vadd.f32 0.0, %v1177
      %v1179 = vpop.f32.mrf.mxu0
      %v1180 = vadd.f32 0.0, %v1179
      %v1181 = vpop.f32.mrf.mxu0
      %v1182 = vadd.f32 0.0, %v1181
      %1183 = vmatprep.mubr.bf16.mxu0 0
      %1184 = vmatmul.mubr.bf16.gmra.mxu0 %v1032
      %v1185 = vpop.f32.mrf.mxu0
      %v1186 = vadd.f32 0.0, %v1185
      %v1187 = vpop.f32.mrf.mxu0
      %v1188 = vadd.f32 0.0, %v1187
      %v1189 = vpop.f32.mrf.mxu0
      %v1190 = vadd.f32 0.0, %v1189
      %v1191 = vpop.f32.mrf.mxu0
      %v1192 = vadd.f32 0.0, %v1191
      %1193 = vmatprep.mubr.bf16.mxu0 0
      %1194 = vmatmul.mubr.bf16.gmra.mxu0 %v1033
      %v1195 = vpop.f32.mrf.mxu0
      %v1196 = vadd.f32 0.0, %v1195
      %v1197 = vpop.f32.mrf.mxu0
      %v1198 = vadd.f32 0.0, %v1197
      %v1199 = vpop.f32.mrf.mxu0
      %v1200 = vadd.f32 0.0, %v1199
      %v1201 = vpop.f32.mrf.mxu0
      %v1202 = vadd.f32 0.0, %v1201
      %1203 = vdwg.mxu0
      %v1204 = vadd.f32 %v1008, %v1166
      %v1205 = vadd.f32 %v1009, %v1168
      %v1206 = vadd.f32 %v1010, %v1170
      %v1207 = vadd.f32 %v1011, %v1172
      %v1208 = vadd.f32 %v1012, %v1176
      %v1209 = vadd.f32 %v1013, %v1178
      %v1210 = vadd.f32 %v1014, %v1180
      %v1211 = vadd.f32 %v1015, %v1182
      %v1212 = vadd.f32 %v1016, %v1186
      %v1213 = vadd.f32 %v1017, %v1188
      %v1214 = vadd.f32 %v1018, %v1190
      %v1215 = vadd.f32 %v1019, %v1192
      %v1216 = vadd.f32 %v1020, %v1196
      %v1217 = vadd.f32 %v1021, %v1198
      %v1218 = vadd.f32 %v1022, %v1200
      %v1219 = vadd.f32 %v1023, %v1202
      %v1220 = vrot.slane %v211, 2
      %v1221 = vrot.slane %v212, 2
      %v1222 = vsel %vm611, %v1220, %v1221
      %v1224 = vpack.c.bf16 %v620, %v617
      %v1225 = vpack.c.bf16 %v626, %v623
      %v1226 = vpack.c.bf16 %v632, %v629
      %v1227 = vpack.c.bf16 %v1222, %v635
      %s1228 = scalar_lea.vmem %s1, 640
      %v1229 = vld [vmem:[%s1228] sm:$0xff]
      %v1230 = vld [vmem:[%s1228 + $0x8] sm:$0xff]
      %v1231 = vld [vmem:[%s1228 + $0x10] sm:$0xff]
      %v1232 = vld [vmem:[%s1228 + $0x18] sm:$0xff]
      %v1233 = vld [vmem:[%s1228 + $0x20] sm:$0xff]
      %v1234 = vld [vmem:[%s1228 + $0x28] sm:$0xff]
      %v1235 = vld [vmem:[%s1228 + $0x30] sm:$0xff]
      %v1236 = vld [vmem:[%s1228 + $0x38] sm:$0xff]
      %v1237 = vld [vmem:[%s1228 + $0x40] sm:$0xff]
      %v1238 = vld [vmem:[%s1228 + $0x48] sm:$0xff]
      %v1239 = vld [vmem:[%s1228 + $0x50] sm:$0xff]
      %v1240 = vld [vmem:[%s1228 + $0x58] sm:$0xff]
      %v1241 = vld [vmem:[%s1228 + $0x60] sm:$0xff]
      %v1242 = vld [vmem:[%s1228 + $0x68] sm:$0xff]
      %v1243 = vld [vmem:[%s1228 + $0x70] sm:$0xff]
      %v1244 = vld [vmem:[%s1228 + $0x78] sm:$0xff]
      %v1261 = vunpack.c.l.b16 %v1229
      %v1262 = vunpack.c.h.b16 %v1229
      %v1263 = vunpack.c.l.b16 %v1230
      %v1264 = vunpack.c.h.b16 %v1230
      %v1265 = vunpack.c.l.b16 %v1231
      %v1266 = vunpack.c.h.b16 %v1231
      %v1267 = vunpack.c.l.b16 %v1232
      %v1268 = vunpack.c.h.b16 %v1232
      %v1269 = vunpack.c.l.b16 %v1233
      %v1270 = vunpack.c.h.b16 %v1233
      %v1271 = vunpack.c.l.b16 %v1234
      %v1272 = vunpack.c.h.b16 %v1234
      %v1273 = vunpack.c.l.b16 %v1235
      %v1274 = vunpack.c.h.b16 %v1235
      %v1275 = vunpack.c.l.b16 %v1236
      %v1276 = vunpack.c.h.b16 %v1236
      %v1277 = vunpack.c.l.b16 %v1237
      %v1278 = vunpack.c.h.b16 %v1237
      %v1279 = vunpack.c.l.b16 %v1238
      %v1280 = vunpack.c.h.b16 %v1238
      %v1281 = vunpack.c.l.b16 %v1239
      %v1282 = vunpack.c.h.b16 %v1239
      %v1283 = vunpack.c.l.b16 %v1240
      %v1284 = vunpack.c.h.b16 %v1240
      %v1285 = vunpack.c.l.b16 %v1241
      %v1286 = vunpack.c.h.b16 %v1241
      %v1287 = vunpack.c.l.b16 %v1242
      %v1288 = vunpack.c.h.b16 %v1242
      %v1289 = vunpack.c.l.b16 %v1243
      %v1290 = vunpack.c.h.b16 %v1243
      %v1291 = vunpack.c.l.b16 %v1244
      %v1292 = vunpack.c.h.b16 %v1244
      %v1293 = vpack.c.b16 %v1263, %v1261
      %v1294 = vpack.c.b16 %v1264, %v1262
      %v1295 = vpack.c.b16 %v1267, %v1265
      %v1296 = vpack.c.b16 %v1268, %v1266
      %v1297 = vpack.c.b16 %v1271, %v1269
      %v1298 = vpack.c.b16 %v1272, %v1270
      %v1299 = vpack.c.b16 %v1275, %v1273
      %v1300 = vpack.c.b16 %v1276, %v1274
      %v1301 = vpack.c.b16 %v1279, %v1277
      %v1302 = vpack.c.b16 %v1280, %v1278
      %v1303 = vpack.c.b16 %v1283, %v1281
      %v1304 = vpack.c.b16 %v1284, %v1282
      %v1305 = vpack.c.b16 %v1287, %v1285
      %v1306 = vpack.c.b16 %v1288, %v1286
      %v1307 = vpack.c.b16 %v1291, %v1289
      %v1308 = vpack.c.b16 %v1292, %v1290
      %1325 = vmatprep.subr.bf16.mxu0 %v1308
      %1326 = vmatpush1.bf16.msra.mxu0 %v1307
      %1327 = vmatprep.subr.bf16.mxu0 %v1306
      %1328 = vmatpush1.bf16.msra.mxu0 %v1305
      %1329 = vmatprep.subr.bf16.mxu0 %v1304
      %1330 = vmatpush1.bf16.msra.mxu0 %v1303
      %1331 = vmatprep.subr.bf16.mxu0 %v1302
      %1332 = vmatpush1.bf16.msra.mxu0 %v1301
      %1333 = vmatprep.subr.bf16.mxu0 %v1300
      %1334 = vmatpush1.bf16.msra.mxu0 %v1299
      %1335 = vmatprep.subr.bf16.mxu0 %v1298
      %1336 = vmatpush1.bf16.msra.mxu0 %v1297
      %1337 = vmatprep.subr.bf16.mxu0 %v1296
      %1338 = vmatpush1.bf16.msra.mxu0 %v1295
      %1339 = vmatprep.subr.bf16.mxu0 %v1294
      %1340 = vmatpush1.bf16.msra.mxu0 %v1293
      %1341 = vmatprep.subr.bf16.mxu0 0
      %1342 = vmatpush2.bf16.msra.mxu0 0
      %1343 = vmatprep.subr.bf16.mxu0 0
      %1344 = vmatpush2.bf16.msra.mxu0 0
      %1345 = vmatprep.subr.bf16.mxu0 0
      %1346 = vmatpush2.bf16.msra.mxu0 0
      %1347 = vmatprep.subr.bf16.mxu0 0
      %1348 = vmatpush2.bf16.msra.mxu0 0
      %1349 = vmatprep.subr.bf16.mxu0 0
      %1350 = vmatpush2.bf16.msra.mxu0 0
      %1351 = vmatprep.subr.bf16.mxu0 0
      %1352 = vmatpush2.bf16.msra.mxu0 0
      %1353 = vmatprep.subr.bf16.mxu0 0
      %1354 = vmatpush2.bf16.msra.mxu0 0
      %1355 = vmatprep.subr.bf16.mxu0 0
      %1356 = vmatpush2.bf16.msra.mxu0 0
      %1357 = vmatprep.mubr.bf16.mxu0 0
      %1358 = vmatmul.mubr.bf16.gmra.mxu0 %v1224
      %v1359 = vpop.f32.mrf.mxu0
      %v1360 = vadd.f32 0.0, %v1359
      %v1361 = vpop.f32.mrf.mxu0
      %v1362 = vadd.f32 0.0, %v1361
      %v1363 = vpop.f32.mrf.mxu0
      %v1364 = vadd.f32 0.0, %v1363
      %v1365 = vpop.f32.mrf.mxu0
      %v1366 = vadd.f32 0.0, %v1365
      %1367 = vmatprep.mubr.bf16.mxu0 0
      %1368 = vmatmul.mubr.bf16.gmra.mxu0 %v1225
      %v1369 = vpop.f32.mrf.mxu0
      %v1370 = vadd.f32 0.0, %v1369
      %v1371 = vpop.f32.mrf.mxu0
      %v1372 = vadd.f32 0.0, %v1371
      %v1373 = vpop.f32.mrf.mxu0
      %v1374 = vadd.f32 0.0, %v1373
      %v1375 = vpop.f32.mrf.mxu0
      %v1376 = vadd.f32 0.0, %v1375
      %1377 = vmatprep.mubr.bf16.mxu0 0
      %1378 = vmatmul.mubr.bf16.gmra.mxu0 %v1226
      %v1379 = vpop.f32.mrf.mxu0
      %v1380 = vadd.f32 0.0, %v1379
      %v1381 = vpop.f32.mrf.mxu0
      %v1382 = vadd.f32 0.0, %v1381
      %v1383 = vpop.f32.mrf.mxu0
      %v1384 = vadd.f32 0.0, %v1383
      %v1385 = vpop.f32.mrf.mxu0
      %v1386 = vadd.f32 0.0, %v1385
      %1387 = vmatprep.mubr.bf16.mxu0 0
      %1388 = vmatmul.mubr.bf16.gmra.mxu0 %v1227
      %v1389 = vpop.f32.mrf.mxu0
      %v1390 = vadd.f32 0.0, %v1389
      %v1391 = vpop.f32.mrf.mxu0
      %v1392 = vadd.f32 0.0, %v1391
      %v1393 = vpop.f32.mrf.mxu0
      %v1394 = vadd.f32 0.0, %v1393
      %v1395 = vpop.f32.mrf.mxu0
      %v1396 = vadd.f32 0.0, %v1395
      %1397 = vdwg.mxu0
      %v1398 = vadd.f32 %v1204, %v1360
      %v1399 = vadd.f32 %v1205, %v1362
      %v1400 = vadd.f32 %v1206, %v1364
      %v1401 = vadd.f32 %v1207, %v1366
      %v1402 = vadd.f32 %v1208, %v1370
      %v1403 = vadd.f32 %v1209, %v1372
      %v1404 = vadd.f32 %v1210, %v1374
      %v1405 = vadd.f32 %v1211, %v1376
      %v1406 = vadd.f32 %v1212, %v1380
      %v1407 = vadd.f32 %v1213, %v1382
      %v1408 = vadd.f32 %v1214, %v1384
      %v1409 = vadd.f32 %v1215, %v1386
      %v1410 = vadd.f32 %v1216, %v1390
      %v1411 = vadd.f32 %v1217, %v1392
      %v1412 = vadd.f32 %v1218, %v1394
      %v1413 = vadd.f32 %v1219, %v1396
      %v1414 = vpack.c.bf16 %v213, %v211
      %s1415 = scalar_lea.vmem %s1, 768
      %v1416 = vld [vmem:[%s1415] sm:$0xff]
      %v1417 = vld [vmem:[%s1415 + $0x8] sm:$0xff]
      %v1418 = vld [vmem:[%s1415 + $0x10] sm:$0xff]
      %v1419 = vld [vmem:[%s1415 + $0x18] sm:$0xff]
      %v1420 = vld [vmem:[%s1415 + $0x20] sm:$0xff]
      %v1421 = vld [vmem:[%s1415 + $0x28] sm:$0xff]
      %v1422 = vld [vmem:[%s1415 + $0x30] sm:$0xff]
      %v1423 = vld [vmem:[%s1415 + $0x38] sm:$0xff]
      %v1424 = vld [vmem:[%s1415 + $0x40] sm:$0xff]
      %v1425 = vld [vmem:[%s1415 + $0x48] sm:$0xff]
      %v1426 = vld [vmem:[%s1415 + $0x50] sm:$0xff]
      %v1427 = vld [vmem:[%s1415 + $0x58] sm:$0xff]
      %v1428 = vld [vmem:[%s1415 + $0x60] sm:$0xff]
      %v1429 = vld [vmem:[%s1415 + $0x68] sm:$0xff]
      %v1430 = vld [vmem:[%s1415 + $0x70] sm:$0xff]
      %v1431 = vld [vmem:[%s1415 + $0x78] sm:$0xff]
      %v1448 = vunpack.c.l.b16 %v1416
      %v1449 = vunpack.c.h.b16 %v1416
      %v1450 = vunpack.c.l.b16 %v1417
      %v1451 = vunpack.c.h.b16 %v1417
      %v1452 = vunpack.c.l.b16 %v1418
      %v1453 = vunpack.c.h.b16 %v1418
      %v1454 = vunpack.c.l.b16 %v1419
      %v1455 = vunpack.c.h.b16 %v1419
      %v1456 = vunpack.c.l.b16 %v1420
      %v1457 = vunpack.c.h.b16 %v1420
      %v1458 = vunpack.c.l.b16 %v1421
      %v1459 = vunpack.c.h.b16 %v1421
      %v1460 = vunpack.c.l.b16 %v1422
      %v1461 = vunpack.c.h.b16 %v1422
      %v1462 = vunpack.c.l.b16 %v1423
      %v1463 = vunpack.c.h.b16 %v1423
      %v1464 = vunpack.c.l.b16 %v1424
      %v1465 = vunpack.c.h.b16 %v1424
      %v1466 = vunpack.c.l.b16 %v1425
      %v1467 = vunpack.c.h.b16 %v1425
      %v1468 = vunpack.c.l.b16 %v1426
      %v1469 = vunpack.c.h.b16 %v1426
      %v1470 = vunpack.c.l.b16 %v1427
      %v1471 = vunpack.c.h.b16 %v1427
      %v1472 = vunpack.c.l.b16 %v1428
      %v1473 = vunpack.c.h.b16 %v1428
      %v1474 = vunpack.c.l.b16 %v1429
      %v1475 = vunpack.c.h.b16 %v1429
      %v1476 = vunpack.c.l.b16 %v1430
      %v1477 = vunpack.c.h.b16 %v1430
      %v1478 = vunpack.c.l.b16 %v1431
      %v1479 = vunpack.c.h.b16 %v1431
      %v1480 = vpack.c.b16 %v1450, %v1448
      %v1481 = vpack.c.b16 %v1451, %v1449
      %v1482 = vpack.c.b16 %v1454, %v1452
      %v1483 = vpack.c.b16 %v1455, %v1453
      %v1484 = vpack.c.b16 %v1458, %v1456
      %v1485 = vpack.c.b16 %v1459, %v1457
      %v1486 = vpack.c.b16 %v1462, %v1460
      %v1487 = vpack.c.b16 %v1463, %v1461
      %v1488 = vpack.c.b16 %v1466, %v1464
      %v1489 = vpack.c.b16 %v1467, %v1465
      %v1490 = vpack.c.b16 %v1470, %v1468
      %v1491 = vpack.c.b16 %v1471, %v1469
      %v1492 = vpack.c.b16 %v1474, %v1472
      %v1493 = vpack.c.b16 %v1475, %v1473
      %v1494 = vpack.c.b16 %v1478, %v1476
      %v1495 = vpack.c.b16 %v1479, %v1477
      %1512 = vmatprep.subr.bf16.mxu0 %v1495
      %1513 = vmatpush1.bf16.msra.mxu0 %v1494
      %1514 = vmatprep.subr.bf16.mxu0 %v1493
      %1515 = vmatpush1.bf16.msra.mxu0 %v1492
      %1516 = vmatprep.subr.bf16.mxu0 %v1491
      %1517 = vmatpush1.bf16.msra.mxu0 %v1490
      %1518 = vmatprep.subr.bf16.mxu0 %v1489
      %1519 = vmatpush1.bf16.msra.mxu0 %v1488
      %1520 = vmatprep.subr.bf16.mxu0 %v1487
      %1521 = vmatpush1.bf16.msra.mxu0 %v1486
      %1522 = vmatprep.subr.bf16.mxu0 %v1485
      %1523 = vmatpush1.bf16.msra.mxu0 %v1484
      %1524 = vmatprep.subr.bf16.mxu0 %v1483
      %1525 = vmatpush1.bf16.msra.mxu0 %v1482
      %1526 = vmatprep.subr.bf16.mxu0 %v1481
      %1527 = vmatpush1.bf16.msra.mxu0 %v1480
      %1528 = vmatprep.subr.bf16.mxu0 0
      %1529 = vmatpush2.bf16.msra.mxu0 0
      %1530 = vmatprep.subr.bf16.mxu0 0
      %1531 = vmatpush2.bf16.msra.mxu0 0
      %1532 = vmatprep.subr.bf16.mxu0 0
      %1533 = vmatpush2.bf16.msra.mxu0 0
      %1534 = vmatprep.subr.bf16.mxu0 0
      %1535 = vmatpush2.bf16.msra.mxu0 0
      %1536 = vmatprep.subr.bf16.mxu0 0
      %1537 = vmatpush2.bf16.msra.mxu0 0
      %1538 = vmatprep.subr.bf16.mxu0 0
      %1539 = vmatpush2.bf16.msra.mxu0 0
      %1540 = vmatprep.subr.bf16.mxu0 0
      %1541 = vmatpush2.bf16.msra.mxu0 0
      %1542 = vmatprep.subr.bf16.mxu0 0
      %1543 = vmatpush2.bf16.msra.mxu0 0
      %1544 = vmatprep.mubr.bf16.mxu0 0
      %1545 = vmatmul.mubr.bf16.gmra.mxu0 %v216
      %v1546 = vpop.f32.mrf.mxu0
      %v1547 = vadd.f32 0.0, %v1546
      %v1548 = vpop.f32.mrf.mxu0
      %v1549 = vadd.f32 0.0, %v1548
      %v1550 = vpop.f32.mrf.mxu0
      %v1551 = vadd.f32 0.0, %v1550
      %v1552 = vpop.f32.mrf.mxu0
      %v1553 = vadd.f32 0.0, %v1552
      %1554 = vmatprep.mubr.bf16.mxu0 0
      %1555 = vmatmul.mubr.bf16.gmra.mxu0 %v217
      %v1556 = vpop.f32.mrf.mxu0
      %v1557 = vadd.f32 0.0, %v1556
      %v1558 = vpop.f32.mrf.mxu0
      %v1559 = vadd.f32 0.0, %v1558
      %v1560 = vpop.f32.mrf.mxu0
      %v1561 = vadd.f32 0.0, %v1560
      %v1562 = vpop.f32.mrf.mxu0
      %v1563 = vadd.f32 0.0, %v1562
      %1564 = vmatprep.mubr.bf16.mxu0 0
      %1565 = vmatmul.mubr.bf16.gmra.mxu0 %v218
      %v1566 = vpop.f32.mrf.mxu0
      %v1567 = vadd.f32 0.0, %v1566
      %v1568 = vpop.f32.mrf.mxu0
      %v1569 = vadd.f32 0.0, %v1568
      %v1570 = vpop.f32.mrf.mxu0
      %v1571 = vadd.f32 0.0, %v1570
      %v1572 = vpop.f32.mrf.mxu0
      %v1573 = vadd.f32 0.0, %v1572
      %1574 = vmatprep.mubr.bf16.mxu0 0
      %1575 = vmatmul.mubr.bf16.gmra.mxu0 %v1414
      %v1576 = vpop.f32.mrf.mxu0
      %v1577 = vadd.f32 0.0, %v1576
      %v1578 = vpop.f32.mrf.mxu0
      %v1579 = vadd.f32 0.0, %v1578
      %v1580 = vpop.f32.mrf.mxu0
      %v1581 = vadd.f32 0.0, %v1580
      %v1582 = vpop.f32.mrf.mxu0
      %v1583 = vadd.f32 0.0, %v1582
      %1584 = vdwg.mxu0
      %v1585 = vadd.f32 %v1398, %v1547
      %v1586 = vadd.f32 %v1399, %v1549
      %v1587 = vadd.f32 %v1400, %v1551
      %v1588 = vadd.f32 %v1401, %v1553
      %v1589 = vadd.f32 %v1402, %v1557
      %v1590 = vadd.f32 %v1403, %v1559
      %v1591 = vadd.f32 %v1404, %v1561
      %v1592 = vadd.f32 %v1405, %v1563
      %v1593 = vadd.f32 %v1406, %v1567
      %v1594 = vadd.f32 %v1407, %v1569
      %v1595 = vadd.f32 %v1408, %v1571
      %v1596 = vadd.f32 %v1409, %v1573
      %v1597 = vadd.f32 %v1410, %v1577
      %v1598 = vadd.f32 %v1411, %v1579
      %v1599 = vadd.f32 %v1412, %v1581
      %v1600 = vadd.f32 %v1413, %v1583
      %v1603 = vrot.slane %v213, 1
      %v1604 = vrot.slane %v214, 1
      %v1605 = vsel %vm251, %v1603, %v1604
      %v1607 = vpack.c.bf16 %v1605, %v1028
      %s1608 = scalar_lea.vmem %s1, 896
      %v1609 = vld [vmem:[%s1608] sm:$0xff]
      %v1610 = vld [vmem:[%s1608 + $0x8] sm:$0xff]
      %v1611 = vld [vmem:[%s1608 + $0x10] sm:$0xff]
      %v1612 = vld [vmem:[%s1608 + $0x18] sm:$0xff]
      %v1613 = vld [vmem:[%s1608 + $0x20] sm:$0xff]
      %v1614 = vld [vmem:[%s1608 + $0x28] sm:$0xff]
      %v1615 = vld [vmem:[%s1608 + $0x30] sm:$0xff]
      %v1616 = vld [vmem:[%s1608 + $0x38] sm:$0xff]
      %v1617 = vld [vmem:[%s1608 + $0x40] sm:$0xff]
      %v1618 = vld [vmem:[%s1608 + $0x48] sm:$0xff]
      %v1619 = vld [vmem:[%s1608 + $0x50] sm:$0xff]
      %v1620 = vld [vmem:[%s1608 + $0x58] sm:$0xff]
      %v1621 = vld [vmem:[%s1608 + $0x60] sm:$0xff]
      %v1622 = vld [vmem:[%s1608 + $0x68] sm:$0xff]
      %v1623 = vld [vmem:[%s1608 + $0x70] sm:$0xff]
      %v1624 = vld [vmem:[%s1608 + $0x78] sm:$0xff]
      %v1641 = vunpack.c.l.b16 %v1609
      %v1642 = vunpack.c.h.b16 %v1609
      %v1643 = vunpack.c.l.b16 %v1610
      %v1644 = vunpack.c.h.b16 %v1610
      %v1645 = vunpack.c.l.b16 %v1611
      %v1646 = vunpack.c.h.b16 %v1611
      %v1647 = vunpack.c.l.b16 %v1612
      %v1648 = vunpack.c.h.b16 %v1612
      %v1649 = vunpack.c.l.b16 %v1613
      %v1650 = vunpack.c.h.b16 %v1613
      %v1651 = vunpack.c.l.b16 %v1614
      %v1652 = vunpack.c.h.b16 %v1614
      %v1653 = vunpack.c.l.b16 %v1615
      %v1654 = vunpack.c.h.b16 %v1615
      %v1655 = vunpack.c.l.b16 %v1616
      %v1656 = vunpack.c.h.b16 %v1616
      %v1657 = vunpack.c.l.b16 %v1617
      %v1658 = vunpack.c.h.b16 %v1617
      %v1659 = vunpack.c.l.b16 %v1618
      %v1660 = vunpack.c.h.b16 %v1618
      %v1661 = vunpack.c.l.b16 %v1619
      %v1662 = vunpack.c.h.b16 %v1619
      %v1663 = vunpack.c.l.b16 %v1620
      %v1664 = vunpack.c.h.b16 %v1620
      %v1665 = vunpack.c.l.b16 %v1621
      %v1666 = vunpack.c.h.b16 %v1621
      %v1667 = vunpack.c.l.b16 %v1622
      %v1668 = vunpack.c.h.b16 %v1622
      %v1669 = vunpack.c.l.b16 %v1623
      %v1670 = vunpack.c.h.b16 %v1623
      %v1671 = vunpack.c.l.b16 %v1624
      %v1672 = vunpack.c.h.b16 %v1624
      %v1673 = vpack.c.b16 %v1643, %v1641
      %v1674 = vpack.c.b16 %v1644, %v1642
      %v1675 = vpack.c.b16 %v1647, %v1645
      %v1676 = vpack.c.b16 %v1648, %v1646
      %v1677 = vpack.c.b16 %v1651, %v1649
      %v1678 = vpack.c.b16 %v1652, %v1650
      %v1679 = vpack.c.b16 %v1655, %v1653
      %v1680 = vpack.c.b16 %v1656, %v1654
      %v1681 = vpack.c.b16 %v1659, %v1657
      %v1682 = vpack.c.b16 %v1660, %v1658
      %v1683 = vpack.c.b16 %v1663, %v1661
      %v1684 = vpack.c.b16 %v1664, %v1662
      %v1685 = vpack.c.b16 %v1667, %v1665
      %v1686 = vpack.c.b16 %v1668, %v1666
      %v1687 = vpack.c.b16 %v1671, %v1669
      %v1688 = vpack.c.b16 %v1672, %v1670
      %1705 = vmatprep.subr.bf16.mxu0 %v1688
      %1706 = vmatpush1.bf16.msra.mxu0 %v1687
      %1707 = vmatprep.subr.bf16.mxu0 %v1686
      %1708 = vmatpush1.bf16.msra.mxu0 %v1685
      %1709 = vmatprep.subr.bf16.mxu0 %v1684
      %1710 = vmatpush1.bf16.msra.mxu0 %v1683
      %1711 = vmatprep.subr.bf16.mxu0 %v1682
      %1712 = vmatpush1.bf16.msra.mxu0 %v1681
      %1713 = vmatprep.subr.bf16.mxu0 %v1680
      %1714 = vmatpush1.bf16.msra.mxu0 %v1679
      %1715 = vmatprep.subr.bf16.mxu0 %v1678
      %1716 = vmatpush1.bf16.msra.mxu0 %v1677
      %1717 = vmatprep.subr.bf16.mxu0 %v1676
      %1718 = vmatpush1.bf16.msra.mxu0 %v1675
      %1719 = vmatprep.subr.bf16.mxu0 %v1674
      %1720 = vmatpush1.bf16.msra.mxu0 %v1673
      %1721 = vmatprep.subr.bf16.mxu0 0
      %1722 = vmatpush2.bf16.msra.mxu0 0
      %1723 = vmatprep.subr.bf16.mxu0 0
      %1724 = vmatpush2.bf16.msra.mxu0 0
      %1725 = vmatprep.subr.bf16.mxu0 0
      %1726 = vmatpush2.bf16.msra.mxu0 0
      %1727 = vmatprep.subr.bf16.mxu0 0
      %1728 = vmatpush2.bf16.msra.mxu0 0
      %1729 = vmatprep.subr.bf16.mxu0 0
      %1730 = vmatpush2.bf16.msra.mxu0 0
      %1731 = vmatprep.subr.bf16.mxu0 0
      %1732 = vmatpush2.bf16.msra.mxu0 0
      %1733 = vmatprep.subr.bf16.mxu0 0
      %1734 = vmatpush2.bf16.msra.mxu0 0
      %1735 = vmatprep.subr.bf16.mxu0 0
      %1736 = vmatpush2.bf16.msra.mxu0 0
      %1737 = vmatprep.mubr.bf16.mxu0 0
      %1738 = vmatmul.mubr.bf16.gmra.mxu0 %v285
      %v1739 = vpop.f32.mrf.mxu0
      %v1740 = vadd.f32 0.0, %v1739
      %v1741 = vpop.f32.mrf.mxu0
      %v1742 = vadd.f32 0.0, %v1741
      %v1743 = vpop.f32.mrf.mxu0
      %v1744 = vadd.f32 0.0, %v1743
      %v1745 = vpop.f32.mrf.mxu0
      %v1746 = vadd.f32 0.0, %v1745
      %1747 = vmatprep.mubr.bf16.mxu0 0
      %1748 = vmatmul.mubr.bf16.gmra.mxu0 %v286
      %v1749 = vpop.f32.mrf.mxu0
      %v1750 = vadd.f32 0.0, %v1749
      %v1751 = vpop.f32.mrf.mxu0
      %v1752 = vadd.f32 0.0, %v1751
      %v1753 = vpop.f32.mrf.mxu0
      %v1754 = vadd.f32 0.0, %v1753
      %v1755 = vpop.f32.mrf.mxu0
      %v1756 = vadd.f32 0.0, %v1755
      %1757 = vmatprep.mubr.bf16.mxu0 0
      %1758 = vmatmul.mubr.bf16.gmra.mxu0 %v287
      %v1759 = vpop.f32.mrf.mxu0
      %v1760 = vadd.f32 0.0, %v1759
      %v1761 = vpop.f32.mrf.mxu0
      %v1762 = vadd.f32 0.0, %v1761
      %v1763 = vpop.f32.mrf.mxu0
      %v1764 = vadd.f32 0.0, %v1763
      %v1765 = vpop.f32.mrf.mxu0
      %v1766 = vadd.f32 0.0, %v1765
      %1767 = vmatprep.mubr.bf16.mxu0 0
      %1768 = vmatmul.mubr.bf16.gmra.mxu0 %v1607
      %v1769 = vpop.f32.mrf.mxu0
      %v1770 = vadd.f32 0.0, %v1769
      %v1771 = vpop.f32.mrf.mxu0
      %v1772 = vadd.f32 0.0, %v1771
      %v1773 = vpop.f32.mrf.mxu0
      %v1774 = vadd.f32 0.0, %v1773
      %v1775 = vpop.f32.mrf.mxu0
      %v1776 = vadd.f32 0.0, %v1775
      %1777 = vdwg.mxu0
      %v1778 = vadd.f32 %v1585, %v1740
      %v1779 = vadd.f32 %v1586, %v1742
      %v1780 = vadd.f32 %v1587, %v1744
      %v1781 = vadd.f32 %v1588, %v1746
      %v1782 = vadd.f32 %v1589, %v1750
      %v1783 = vadd.f32 %v1590, %v1752
      %v1784 = vadd.f32 %v1591, %v1754
      %v1785 = vadd.f32 %v1592, %v1756
      %v1786 = vadd.f32 %v1593, %v1760
      %v1787 = vadd.f32 %v1594, %v1762
      %v1788 = vadd.f32 %v1595, %v1764
      %v1789 = vadd.f32 %v1596, %v1766
      %v1790 = vadd.f32 %v1597, %v1770
      %v1791 = vadd.f32 %v1598, %v1772
      %v1792 = vadd.f32 %v1599, %v1774
      %v1793 = vadd.f32 %v1600, %v1776
      %v1794 = vrot.slane %v213, 2
      %v1795 = vrot.slane %v214, 2
      %v1796 = vsel %vm611, %v1794, %v1795
      %v1798 = vpack.c.bf16 %v1796, %v1222
      %s1799 = scalar_lea.vmem %s1, 1024
      %v1800 = vld [vmem:[%s1799] sm:$0xff]
      %v1801 = vld [vmem:[%s1799 + $0x8] sm:$0xff]
      %v1802 = vld [vmem:[%s1799 + $0x10] sm:$0xff]
      %v1803 = vld [vmem:[%s1799 + $0x18] sm:$0xff]
      %v1804 = vld [vmem:[%s1799 + $0x20] sm:$0xff]
      %v1805 = vld [vmem:[%s1799 + $0x28] sm:$0xff]
      %v1806 = vld [vmem:[%s1799 + $0x30] sm:$0xff]
      %v1807 = vld [vmem:[%s1799 + $0x38] sm:$0xff]
      %v1808 = vld [vmem:[%s1799 + $0x40] sm:$0xff]
      %v1809 = vld [vmem:[%s1799 + $0x48] sm:$0xff]
      %v1810 = vld [vmem:[%s1799 + $0x50] sm:$0xff]
      %v1811 = vld [vmem:[%s1799 + $0x58] sm:$0xff]
      %v1812 = vld [vmem:[%s1799 + $0x60] sm:$0xff]
      %v1813 = vld [vmem:[%s1799 + $0x68] sm:$0xff]
      %v1814 = vld [vmem:[%s1799 + $0x70] sm:$0xff]
      %v1815 = vld [vmem:[%s1799 + $0x78] sm:$0xff]
      %v1832 = vunpack.c.l.b16 %v1800
      %v1833 = vunpack.c.h.b16 %v1800
      %v1834 = vunpack.c.l.b16 %v1801
      %v1835 = vunpack.c.h.b16 %v1801
      %v1836 = vunpack.c.l.b16 %v1802
      %v1837 = vunpack.c.h.b16 %v1802
      %v1838 = vunpack.c.l.b16 %v1803
      %v1839 = vunpack.c.h.b16 %v1803
      %v1840 = vunpack.c.l.b16 %v1804
      %v1841 = vunpack.c.h.b16 %v1804
      %v1842 = vunpack.c.l.b16 %v1805
      %v1843 = vunpack.c.h.b16 %v1805
      %v1844 = vunpack.c.l.b16 %v1806
      %v1845 = vunpack.c.h.b16 %v1806
      %v1846 = vunpack.c.l.b16 %v1807
      %v1847 = vunpack.c.h.b16 %v1807
      %v1848 = vunpack.c.l.b16 %v1808
      %v1849 = vunpack.c.h.b16 %v1808
      %v1850 = vunpack.c.l.b16 %v1809
      %v1851 = vunpack.c.h.b16 %v1809
      %v1852 = vunpack.c.l.b16 %v1810
      %v1853 = vunpack.c.h.b16 %v1810
      %v1854 = vunpack.c.l.b16 %v1811
      %v1855 = vunpack.c.h.b16 %v1811
      %v1856 = vunpack.c.l.b16 %v1812
      %v1857 = vunpack.c.h.b16 %v1812
      %v1858 = vunpack.c.l.b16 %v1813
      %v1859 = vunpack.c.h.b16 %v1813
      %v1860 = vunpack.c.l.b16 %v1814
      %v1861 = vunpack.c.h.b16 %v1814
      %v1862 = vunpack.c.l.b16 %v1815
      %v1863 = vunpack.c.h.b16 %v1815
      %v1864 = vpack.c.b16 %v1834, %v1832
      %v1865 = vpack.c.b16 %v1835, %v1833
      %v1866 = vpack.c.b16 %v1838, %v1836
      %v1867 = vpack.c.b16 %v1839, %v1837
      %v1868 = vpack.c.b16 %v1842, %v1840
      %v1869 = vpack.c.b16 %v1843, %v1841
      %v1870 = vpack.c.b16 %v1846, %v1844
      %v1871 = vpack.c.b16 %v1847, %v1845
      %v1872 = vpack.c.b16 %v1850, %v1848
      %v1873 = vpack.c.b16 %v1851, %v1849
      %v1874 = vpack.c.b16 %v1854, %v1852
      %v1875 = vpack.c.b16 %v1855, %v1853
      %v1876 = vpack.c.b16 %v1858, %v1856
      %v1877 = vpack.c.b16 %v1859, %v1857
      %v1878 = vpack.c.b16 %v1862, %v1860
      %v1879 = vpack.c.b16 %v1863, %v1861
      %1896 = vmatprep.subr.bf16.mxu0 %v1879
      %1897 = vmatpush1.bf16.msra.mxu0 %v1878
      %1898 = vmatprep.subr.bf16.mxu0 %v1877
      %1899 = vmatpush1.bf16.msra.mxu0 %v1876
      %1900 = vmatprep.subr.bf16.mxu0 %v1875
      %1901 = vmatpush1.bf16.msra.mxu0 %v1874
      %1902 = vmatprep.subr.bf16.mxu0 %v1873
      %1903 = vmatpush1.bf16.msra.mxu0 %v1872
      %1904 = vmatprep.subr.bf16.mxu0 %v1871
      %1905 = vmatpush1.bf16.msra.mxu0 %v1870
      %1906 = vmatprep.subr.bf16.mxu0 %v1869
      %1907 = vmatpush1.bf16.msra.mxu0 %v1868
      %1908 = vmatprep.subr.bf16.mxu0 %v1867
      %1909 = vmatpush1.bf16.msra.mxu0 %v1866
      %1910 = vmatprep.subr.bf16.mxu0 %v1865
      %1911 = vmatpush1.bf16.msra.mxu0 %v1864
      %1912 = vmatprep.subr.bf16.mxu0 0
      %1913 = vmatpush2.bf16.msra.mxu0 0
      %1914 = vmatprep.subr.bf16.mxu0 0
      %1915 = vmatpush2.bf16.msra.mxu0 0
      %1916 = vmatprep.subr.bf16.mxu0 0
      %1917 = vmatpush2.bf16.msra.mxu0 0
      %1918 = vmatprep.subr.bf16.mxu0 0
      %1919 = vmatpush2.bf16.msra.mxu0 0
      %1920 = vmatprep.subr.bf16.mxu0 0
      %1921 = vmatpush2.bf16.msra.mxu0 0
      %1922 = vmatprep.subr.bf16.mxu0 0
      %1923 = vmatpush2.bf16.msra.mxu0 0
      %1924 = vmatprep.subr.bf16.mxu0 0
      %1925 = vmatpush2.bf16.msra.mxu0 0
      %1926 = vmatprep.subr.bf16.mxu0 0
      %1927 = vmatpush2.bf16.msra.mxu0 0
      %1928 = vmatprep.mubr.bf16.mxu0 0
      %1929 = vmatmul.mubr.bf16.gmra.mxu0 %v645
      %v1930 = vpop.f32.mrf.mxu0
      %v1931 = vadd.f32 0.0, %v1930
      %v1932 = vpop.f32.mrf.mxu0
      %v1933 = vadd.f32 0.0, %v1932
      %v1934 = vpop.f32.mrf.mxu0
      %v1935 = vadd.f32 0.0, %v1934
      %v1936 = vpop.f32.mrf.mxu0
      %v1937 = vadd.f32 0.0, %v1936
      %1938 = vmatprep.mubr.bf16.mxu0 0
      %1939 = vmatmul.mubr.bf16.gmra.mxu0 %v646
      %v1940 = vpop.f32.mrf.mxu0
      %v1941 = vadd.f32 0.0, %v1940
      %v1942 = vpop.f32.mrf.mxu0
      %v1943 = vadd.f32 0.0, %v1942
      %v1944 = vpop.f32.mrf.mxu0
      %v1945 = vadd.f32 0.0, %v1944
      %v1946 = vpop.f32.mrf.mxu0
      %v1947 = vadd.f32 0.0, %v1946
      %1948 = vmatprep.mubr.bf16.mxu0 0
      %1949 = vmatmul.mubr.bf16.gmra.mxu0 %v647
      %v1950 = vpop.f32.mrf.mxu0
      %v1951 = vadd.f32 0.0, %v1950
      %v1952 = vpop.f32.mrf.mxu0
      %v1953 = vadd.f32 0.0, %v1952
      %v1954 = vpop.f32.mrf.mxu0
      %v1955 = vadd.f32 0.0, %v1954
      %v1956 = vpop.f32.mrf.mxu0
      %v1957 = vadd.f32 0.0, %v1956
      %1958 = vmatprep.mubr.bf16.mxu0 0
      %1959 = vmatmul.mubr.bf16.gmra.mxu0 %v1798
      %v1960 = vpop.f32.mrf.mxu0
      %v1961 = vadd.f32 0.0, %v1960
      %v1962 = vpop.f32.mrf.mxu0
      %v1963 = vadd.f32 0.0, %v1962
      %v1964 = vpop.f32.mrf.mxu0
      %v1965 = vadd.f32 0.0, %v1964
      %v1966 = vpop.f32.mrf.mxu0
      %v1967 = vadd.f32 0.0, %v1966
      %1968 = vdwg.mxu0
      %v1969 = vadd.f32 %v1778, %v1931
      %v1970 = vadd.f32 %v1779, %v1933
      %v1971 = vadd.f32 %v1780, %v1935
      %v1972 = vadd.f32 %v1781, %v1937
      %v1973 = vadd.f32 %v1782, %v1941
      %v1974 = vadd.f32 %v1783, %v1943
      %v1975 = vadd.f32 %v1784, %v1945
      %v1976 = vadd.f32 %v1785, %v1947
      %v1977 = vadd.f32 %v1786, %v1951
      %v1978 = vadd.f32 %v1787, %v1953
      %v1979 = vadd.f32 %v1788, %v1955
      %v1980 = vadd.f32 %v1789, %v1957
      %v1981 = vadd.f32 %v1790, %v1961
      %v1982 = vadd.f32 %v1791, %v1963
      %v1983 = vadd.f32 %v1792, %v1965
      %v1984 = vadd.f32 %v1793, %v1967
      %v1985 = vld [vmem:[%s2] sm:$0x3]
      %v1987 = vlaneseq
      %v1988 = vshrl.u32 %v1987, 7
      %v1989 = vsub.s32 0, %v1988
      %v1990 = vrot.slane %v1985, %v1989
      %v1991 = vlaneseq
      %v1992 = vshrl.u32 %v1991, 7
      %v1993 = vsub.s32 1, %v1992
      %v1994 = vrot.slane %v1985, %v1993
      %v1997 = vadd.f32 %v1969, %v1990
      %v1998 = vadd.f32 %v1970, %v1994
      %v1999 = vadd.f32 %v1971, %v1990
      %v2000 = vadd.f32 %v1972, %v1994
      %v2001 = vadd.f32 %v1973, %v1990
      %v2002 = vadd.f32 %v1974, %v1994
      %v2003 = vadd.f32 %v1975, %v1990
      %v2004 = vadd.f32 %v1976, %v1994
      %v2005 = vadd.f32 %v1977, %v1990
      %v2006 = vadd.f32 %v1978, %v1994
      %v2007 = vadd.f32 %v1979, %v1990
      %v2008 = vadd.f32 %v1980, %v1994
      %v2009 = vadd.f32 %v1981, %v1990
      %v2010 = vadd.f32 %v1982, %v1994
      %v2011 = vadd.f32 %v1983, %v1990
      %v2012 = vadd.f32 %v1984, %v1994
      %v2013 = vmax.f32 %v1997, 0.0
      %v2014 = vmax.f32 %v1998, 0.0
      %v2015 = vmax.f32 %v1999, 0.0
      %v2016 = vmax.f32 %v2000, 0.0
      %v2017 = vmax.f32 %v2001, 0.0
      %v2018 = vmax.f32 %v2002, 0.0
      %v2019 = vmax.f32 %v2003, 0.0
      %v2020 = vmax.f32 %v2004, 0.0
      %v2021 = vmax.f32 %v2005, 0.0
      %v2022 = vmax.f32 %v2006, 0.0
      %v2023 = vmax.f32 %v2007, 0.0
      %v2024 = vmax.f32 %v2008, 0.0
      %v2025 = vmax.f32 %v2009, 0.0
      %v2026 = vmax.f32 %v2010, 0.0
      %v2027 = vmax.f32 %v2011, 0.0
      %v2028 = vmax.f32 %v2012, 0.0
      %v2029 = vpack.c.bf16 %v2015, %v2013
      %v2030 = vpack.c.bf16 %v2016, %v2014
      %v2031 = vpack.c.bf16 %v2019, %v2017
      %v2032 = vpack.c.bf16 %v2020, %v2018
      %v2033 = vpack.c.bf16 %v2023, %v2021
      %v2034 = vpack.c.bf16 %v2024, %v2022
      %v2035 = vpack.c.bf16 %v2027, %v2025
      %v2036 = vpack.c.bf16 %v2028, %v2026
      %v2045 = vunpack.c.l.b16 %v2029
      %v2046 = vunpack.c.l.b16 %v2030
      %v2047 = vunpack.c.h.b16 %v2029
      %v2048 = vunpack.c.h.b16 %v2030
      %v2049 = vunpack.c.l.b16 %v2031
      %v2050 = vunpack.c.l.b16 %v2032
      %v2051 = vunpack.c.h.b16 %v2031
      %v2052 = vunpack.c.h.b16 %v2032
      %v2053 = vunpack.c.l.b16 %v2033
      %v2054 = vunpack.c.l.b16 %v2034
      %v2055 = vunpack.c.h.b16 %v2033
      %v2056 = vunpack.c.h.b16 %v2034
      %v2057 = vunpack.c.l.b16 %v2035
      %v2058 = vunpack.c.l.b16 %v2036
      %v2059 = vunpack.c.h.b16 %v2035
      %v2060 = vunpack.c.h.b16 %v2036
      %v2061 = vpack.c.b16 %v2046, %v2045
      %v2062 = vpack.c.b16 %v2048, %v2047
      %v2063 = vpack.c.b16 %v2050, %v2049
      %v2064 = vpack.c.b16 %v2052, %v2051
      %v2065 = vpack.c.b16 %v2054, %v2053
      %v2066 = vpack.c.b16 %v2056, %v2055
      %v2067 = vpack.c.b16 %v2058, %v2057
      %v2068 = vpack.c.b16 %v2060, %v2059
      %vm2077 = vcmask 1043456
      %vm2078 = vcmask 523268
      %vm2079 = vmor %vm2078, %vm2077
      %2080 = vst.msk [vmem:[%s172] sm:$0xff] %vm2079, %v2061
      %2081 = vst.msk [vmem:[%s172 + $0x8] sm:$0xff] %vm2079, %v2062
      %2082 = vst.msk [vmem:[%s172 + $0x10] sm:$0xff] %vm2079, %v2063
      %2083 = vst.msk [vmem:[%s172 + $0x18] sm:$0xff] %vm2079, %v2064
      %2084 = vst.msk [vmem:[%s172 + $0x20] sm:$0xff] %vm2079, %v2065
      %2085 = vst.msk [vmem:[%s172 + $0x28] sm:$0xff] %vm2079, %v2066
      %2086 = vst.msk [vmem:[%s172 + $0x30] sm:$0xff] %vm2079, %v2067
      %2087 = vst.msk [vmem:[%s172 + $0x38] sm:$0xff] %vm2079, %v2068
      %s2088 = smul.u32 8, %s14
      %p2089 = scmp.lt.s32.totalorder %s2088, 15
      %s2090 = scalar_select %p2089, %s2088, 15
      %s2091 = smul.addr %s2090, 2
      %s2092 = smul.addr %s2091, 4
      %s2093 = scalar_lea.vmem %s3, %s2092
      // Predicated region
      $region33: #{inception_a_forward.4} parent=31 // pred_check
        %p2094 = pneg %p100
      $region34: #{inception_a_forward.4} parent=31 // pred_check_branch
        %2096 = sbr.rel (%p2094) target = $region36
      $region35: #{inception_a_forward.4} parent=31 // pred_region
        %s2097 = smul.u32 8, %s14
      $region36: #{inception_a_forward.4} parent=31 // pred_fallthru
        _
    $region32: #{inception_a_forward.4} parent=5 // pred_fallthru
      _
    %p2098 = scmp.le.s32.totalorder 2, %s9
    // Predicated region
    $region37: #{inception_a_forward.4} parent=5 // pred_check
      %p2099 = pneg %p2098
    $region38: #{inception_a_forward.4} parent=5 // pred_check_branch
      %2101 = sbr.rel (%p2099) target = $region40
    $region39: #{inception_a_forward.4} parent=5 // pred_region
      %s2102 = ssub.s32 %s9, 2
      // Predicated region
      $region41: #{inception_a_forward.4} parent=39 // pred_check
        %p2103 = pneg %p106
      $region42: #{inception_a_forward.4} parent=39 // pred_check_branch
        %2105 = sbr.rel (%p2103) target = $region44
      $region43: #{inception_a_forward.4} parent=39 // pred_region
        %s2106 = smul.u32 8, %s15
        %p2107 = scmp.lt.s32.totalorder %s2106, 15
        %s2108 = scalar_select %p2107, %s2106, 15
        %s2109 = smul.addr %s2108, 2
        %s2110 = smul.addr %s2109, 4
        %s2111 = scalar_lea.vmem %s3, %s2110
      $region44: #{inception_a_forward.4} parent=39 // pred_fallthru
        _
    $region40: #{inception_a_forward.4} parent=5 // pred_fallthru
      _
  $region6: #{inception_a_forward.4} parent=0 // loop_footer
    %s13 = sadd.s32 1, %s9
  $region7: #{inception_a_forward.4} parent=0 // loop_footer_branch
    %8 = sbr.rel target = $region3
  $region8: #{inception_a_forward.4} parent=0 // loop_exit
    _

// kernel: inception_a_forward.3
$region0: #{inception_a_forward.3}
  #allocation0 [shape = 'u32[]', space=smem, size = 0x4, offset = 0x4, fixed_abs, tag = 'smem constant byte address 0x4 - core index']
  #allocation1 [shape = 'u32[144,128]{1,0:T(1,128)}', space=vmem, size = 0x12000, scoped, tag = 'internal scratch']
  %s0 = inlined_call_operand.vmem [shape: bf16[2,10,10,384], index: 0, kind: input, shape index: {}]
  %s1 = inlined_call_operand.vmem [shape: f32[1,8,8,1], index: 1, kind: input, shape index: {}]
  %s2 = inlined_call_operand.vmem [shape: bf16[384,224], index: 2, kind: input, shape index: {}]
  %s3 = inlined_call_operand.vmem [shape: f32[1,224], index: 3, kind: input, shape index: {}]
  %s4 = inlined_call_operand.vmem [shape: bf16[384,96], index: 4, kind: input, shape index: {}]
  %s5 = inlined_call_operand.vmem [shape: f32[1,96], index: 5, kind: input, shape index: {}]
  %s6 = inlined_call_operand.vmem [shape: bf16[128,224], index: 6, kind: output, shape index: {0}]
  %s7 = inlined_call_operand.vmem [shape: bf16[128,96], index: 7, kind: output, shape index: {1}]
  %8 = xla_tuple %s6, %s7
  %s9 = sld [smem:[#allocation0]]
  $region65: #{inception_a_forward.3} parent=0
    _
  %s11 = ssub.s32 1, %s9
  %s12 = scalar_select 0, %s11, %s9
  loop: start=0, step=1, limit=4
  $region2: #{inception_a_forward.3} parent=0 // loop_pre_header
    _
  $region3: #{inception_a_forward.3} parent=0 // loop_header
    %s14 = sphi 0, %s18
    %p15 = scmp.ge.s32.totalorder %s14, 4
    %s24 = sphi 0, %s26
    %s27 = sphi 0, %s24
    %s28 = sphi 0, %s27
    %s44 = sphi 0, %s28
    %s48 = sphi 0, %s48
    %s50 = sphi 0, %s48
    %s51 = sphi 0, %s50
    %s65 = sphi 0, %s51
    %s69 = sphi 0, %s69
    %s71 = sphi 0, %s69
    %s72 = sphi 0, %s71
    %s86 = sphi 0, %s72
    %s90 = sphi 0, %s90
    %s92 = sphi 0, %s90
    %s93 = sphi 0, %s92
    %s107 = sphi 0, %s93
    %s111 = sphi 0, %s111
    %s113 = sphi 0, %s111
    %s114 = sphi 0, %s113
    %s128 = sphi 0, %s114
    %s132 = sphi 0, %s132
    %s134 = sphi 0, %s132
    %s135 = sphi 0, %s134
    %s149 = sphi 0, %s135
    %s155 = sphi 0, %s157
    %s158 = sphi 0, %s155
    %s159 = sphi 0, %s158
    %s175 = sphi 0, %s159
    %s181 = sphi 0, %s183
    %s184 = sphi 0, %s181
    %s185 = sphi 0, %s184
    %s201 = sphi 0, %s185
  $region4: #{inception_a_forward.3} parent=0 // loop_header_branch
    %17 = sbr.rel (%p15) target = $region8
  $region5: #{inception_a_forward.3} parent=0 // loop_body
    %s19 = ssub.s32 %s14, 1
    %s20 = ssub.s32 %s14, 2
    %s21 = sadd.s32 %s14, 1
    %s22 = ssub.s32 %s14, %s21
    %p23 = scmp.eq.s32.totalorder %s22, 0
    %s25 = sadd.s32 %s24, 1
    %s26 = scalar_select %p23, %s24, %s25
    %p29 = pneg %p23
    %p30 = scmp.eq.s32.totalorder %s14, 1
    %p31 = por %p29, %p30
    %p32 = scmp.ne.s32.totalorder %s24, %s27
    %p33 = scmp.eq.s32.totalorder %s14, 0
    %p34 = por %p32, %p33
    %p35 = scmp.ne.s32.totalorder %s24, %s27
    %p36 = scmp.eq.s32.totalorder %s19, 1
    %p37 = por %p35, %p36
    %p38 = scmp.ne.s32.totalorder %s27, %s28
    %p39 = scmp.eq.s32.totalorder %s19, 0
    %p40 = por %p38, %p39
    %p41 = scmp.ne.s32.totalorder %s27, %s28
    %p42 = scmp.eq.s32.totalorder %s20, 1
    %p43 = por %p41, %p42
    %p45 = scmp.ne.s32.totalorder %s28, %s44
    %p46 = scmp.eq.s32.totalorder %s20, 0
    %p47 = por %p45, %p46
    %s49 = sadd.s32 %s48, 1
    %p52 = scmp.eq.s32.totalorder %s14, 1
    %p53 = scmp.ne.s32.totalorder %s48, %s50
    %p54 = scmp.eq.s32.totalorder %s14, 0
    %p55 = por %p53, %p54
    %p56 = scmp.ne.s32.totalorder %s48, %s50
    %p57 = scmp.eq.s32.totalorder %s19, 1
    %p58 = por %p56, %p57
    %p59 = scmp.ne.s32.totalorder %s50, %s51
    %p60 = scmp.eq.s32.totalorder %s19, 0
    %p61 = por %p59, %p60
    %p62 = scmp.ne.s32.totalorder %s50, %s51
    %p63 = scmp.eq.s32.totalorder %s20, 1
    %p64 = por %p62, %p63
    %p66 = scmp.ne.s32.totalorder %s51, %s65
    %p67 = scmp.eq.s32.totalorder %s20, 0
    %p68 = por %p66, %p67
    %s70 = sadd.s32 %s69, 1
    %p73 = scmp.eq.s32.totalorder %s14, 1
    %p74 = scmp.ne.s32.totalorder %s69, %s71
    %p75 = scmp.eq.s32.totalorder %s14, 0
    %p76 = por %p74, %p75
    %p77 = scmp.ne.s32.totalorder %s69, %s71
    %p78 = scmp.eq.s32.totalorder %s19, 1
    %p79 = por %p77, %p78
    %p80 = scmp.ne.s32.totalorder %s71, %s72
    %p81 = scmp.eq.s32.totalorder %s19, 0
    %p82 = por %p80, %p81
    %p83 = scmp.ne.s32.totalorder %s71, %s72
    %p84 = scmp.eq.s32.totalorder %s20, 1
    %p85 = por %p83, %p84
    %p87 = scmp.ne.s32.totalorder %s72, %s86
    %p88 = scmp.eq.s32.totalorder %s20, 0
    %p89 = por %p87, %p88
    %s91 = sadd.s32 %s90, 1
    %p94 = scmp.eq.s32.totalorder %s14, 1
    %p95 = scmp.ne.s32.totalorder %s90, %s92
    %p96 = scmp.eq.s32.totalorder %s14, 0
    %p97 = por %p95, %p96
    %p98 = scmp.ne.s32.totalorder %s90, %s92
    %p99 = scmp.eq.s32.totalorder %s19, 1
    %p100 = por %p98, %p99
    %p101 = scmp.ne.s32.totalorder %s92, %s93
    %p102 = scmp.eq.s32.totalorder %s19, 0
    %p103 = por %p101, %p102
    %p104 = scmp.ne.s32.totalorder %s92, %s93
    %p105 = scmp.eq.s32.totalorder %s20, 1
    %p106 = por %p104, %p105
    %p108 = scmp.ne.s32.totalorder %s93, %s107
    %p109 = scmp.eq.s32.totalorder %s20, 0
    %p110 = por %p108, %p109
    %s112 = sadd.s32 %s111, 1
    %p115 = scmp.eq.s32.totalorder %s14, 1
    %p116 = scmp.ne.s32.totalorder %s111, %s113
    %p117 = scmp.eq.s32.totalorder %s14, 0
    %p118 = por %p116, %p117
    %p119 = scmp.ne.s32.totalorder %s111, %s113
    %p120 = scmp.eq.s32.totalorder %s19, 1
    %p121 = por %p119, %p120
    %p122 = scmp.ne.s32.totalorder %s113, %s114
    %p123 = scmp.eq.s32.totalorder %s19, 0
    %p124 = por %p122, %p123
    %p125 = scmp.ne.s32.totalorder %s113, %s114
    %p126 = scmp.eq.s32.totalorder %s20, 1
    %p127 = por %p125, %p126
    %p129 = scmp.ne.s32.totalorder %s114, %s128
    %p130 = scmp.eq.s32.totalorder %s20, 0
    %p131 = por %p129, %p130
    %s133 = sadd.s32 %s132, 1
    %p136 = scmp.eq.s32.totalorder %s14, 1
    %p137 = scmp.ne.s32.totalorder %s132, %s134
    %p138 = scmp.eq.s32.totalorder %s14, 0
    %p139 = por %p137, %p138
    %p140 = scmp.ne.s32.totalorder %s132, %s134
    %p141 = scmp.eq.s32.totalorder %s19, 1
    %p142 = por %p140, %p141
    %p143 = scmp.ne.s32.totalorder %s134, %s135
    %p144 = scmp.eq.s32.totalorder %s19, 0
    %p145 = por %p143, %p144
    %p146 = scmp.ne.s32.totalorder %s134, %s135
    %p147 = scmp.eq.s32.totalorder %s20, 1
    %p148 = por %p146, %p147
    %p150 = scmp.ne.s32.totalorder %s135, %s149
    %p151 = scmp.eq.s32.totalorder %s20, 0
    %p152 = por %p150, %p151
    %s153 = ssub.s32 %s14, %s21
    %p154 = scmp.eq.s32.totalorder %s153, 0
    %s156 = sadd.s32 %s155, 1
    %s157 = scalar_select %p154, %s155, %s156
    %p160 = pneg %p154
    %p161 = scmp.eq.s32.totalorder %s14, 1
    %p162 = por %p160, %p161
    %p163 = scmp.ne.s32.totalorder %s155, %s158
    %p164 = scmp.eq.s32.totalorder %s14, 0
    %p165 = por %p163, %p164
    %p166 = scmp.ne.s32.totalorder %s155, %s158
    %p167 = scmp.eq.s32.totalorder %s19, 1
    %p168 = por %p166, %p167
    %p169 = scmp.ne.s32.totalorder %s158, %s159
    %p170 = scmp.eq.s32.totalorder %s19, 0
    %p171 = por %p169, %p170
    %p172 = scmp.ne.s32.totalorder %s158, %s159
    %p173 = scmp.eq.s32.totalorder %s20, 1
    %p174 = por %p172, %p173
    %p176 = scmp.ne.s32.totalorder %s159, %s175
    %p177 = scmp.eq.s32.totalorder %s20, 0
    %p178 = por %p176, %p177
    %s179 = ssub.s32 %s14, %s21
    %p180 = scmp.eq.s32.totalorder %s179, 0
    %s182 = sadd.s32 %s181, 1
    %s183 = scalar_select %p180, %s181, %s182
    %p186 = pneg %p180
    %p187 = scmp.eq.s32.totalorder %s14, 1
    %p188 = por %p186, %p187
    %p189 = scmp.ne.s32.totalorder %s181, %s184
    %p190 = scmp.eq.s32.totalorder %s14, 0
    %p191 = por %p189, %p190
    %p192 = scmp.ne.s32.totalorder %s181, %s184
    %p193 = scmp.eq.s32.totalorder %s19, 1
    %p194 = por %p192, %p193
    %p195 = scmp.ne.s32.totalorder %s184, %s185
    %p196 = scmp.eq.s32.totalorder %s19, 0
    %p197 = por %p195, %p196
    %p198 = scmp.ne.s32.totalorder %s184, %s185
    %p199 = scmp.eq.s32.totalorder %s20, 1
    %p200 = por %p198, %p199
    %p202 = scmp.ne.s32.totalorder %s185, %s201
    %p203 = scmp.eq.s32.totalorder %s20, 0
    %p204 = por %p202, %p203
    %p205 = scmp.le.s32.totalorder 1, %s14
    %p206 = scmp.lt.s32.totalorder %s14, 3
    %p207 = pnand %p205, %p206
    %p208 = pneg %p207
    // Predicated region
    $region9: #{inception_a_forward.3} parent=5 // pred_check
      _
    $region10: #{inception_a_forward.3} parent=5 // pred_check_branch
      %210 = sbr.rel (%p207) target = $region12
    $region11: #{inception_a_forward.3} parent=5 // pred_region
      %s211 = ssub.s32 %s14, 1
      // Predicated region
      $region13: #{inception_a_forward.3} parent=11 // pred_check
        %p212 = pneg %p61
      $region14: #{inception_a_forward.3} parent=11 // pred_check_branch
        %214 = sbr.rel (%p212) target = $region16
      $region15: #{inception_a_forward.3} parent=11 // pred_region
        _
      $region16: #{inception_a_forward.3} parent=11 // pred_fallthru
        _
      // Predicated region
      $region17: #{inception_a_forward.3} parent=11 // pred_check
        %p215 = pneg %p82
      $region18: #{inception_a_forward.3} parent=11 // pred_check_branch
        %217 = sbr.rel (%p215) target = $region20
      $region19: #{inception_a_forward.3} parent=11 // pred_region
        _
      $region20: #{inception_a_forward.3} parent=11 // pred_fallthru
        _
      // Predicated region
      $region21: #{inception_a_forward.3} parent=11 // pred_check
        %p218 = pneg %p103
      $region22: #{inception_a_forward.3} parent=11 // pred_check_branch
        %220 = sbr.rel (%p218) target = $region24
      $region23: #{inception_a_forward.3} parent=11 // pred_region
        _
      $region24: #{inception_a_forward.3} parent=11 // pred_fallthru
        _
      // Predicated region
      $region25: #{inception_a_forward.3} parent=11 // pred_check
        %p221 = pneg %p124
      $region26: #{inception_a_forward.3} parent=11 // pred_check_branch
        %223 = sbr.rel (%p221) target = $region28
      $region27: #{inception_a_forward.3} parent=11 // pred_region
        _
      $region28: #{inception_a_forward.3} parent=11 // pred_fallthru
        _
      // Predicated region
      $region29: #{inception_a_forward.3} parent=11 // pred_check
        %p224 = pneg %p145
      $region30: #{inception_a_forward.3} parent=11 // pred_check_branch
        %226 = sbr.rel (%p224) target = $region32
      $region31: #{inception_a_forward.3} parent=11 // pred_region
        _
      $region32: #{inception_a_forward.3} parent=11 // pred_fallthru
        _
    $region12: #{inception_a_forward.3} parent=5 // pred_fallthru
      _
    %p227 = scmp.lt.s32.totalorder %s14, 2
    // Predicated region
    $region33: #{inception_a_forward.3} parent=5 // pred_check
      %p228 = pneg %p227
    $region34: #{inception_a_forward.3} parent=5 // pred_check_branch
      %230 = sbr.rel (%p228) target = $region36
    $region35: #{inception_a_forward.3} parent=5 // pred_region
      // Predicated region
      $region37: #{inception_a_forward.3} parent=35 // pred_check
        %p231 = pneg %p34
      $region38: #{inception_a_forward.3} parent=35 // pred_check_branch
        %233 = sbr.rel (%p231) target = $region40
      $region39: #{inception_a_forward.3} parent=35 // pred_region
        %p234 = scmp.lt.s32.totalorder %s14, 1
        %s235 = scalar_select %p234, %s14, 1
        %s236 = smul.addr %s235, 60
        %s237 = smul.addr %s236, 4
        %s238 = scalar_lea.vmem %s0, %s237
      $region40: #{inception_a_forward.3} parent=35 // pred_fallthru
        _
    $region36: #{inception_a_forward.3} parent=5 // pred_fallthru
      _
    %p239 = scmp.le.s32.totalorder 1, %s14
    %p240 = scmp.lt.s32.totalorder %s14, 3
    %p241 = pnand %p239, %p240
    %p242 = pneg %p241
    // Predicated region
    $region41: #{inception_a_forward.3} parent=5 // pred_check
      _
    $region42: #{inception_a_forward.3} parent=5 // pred_check_branch
      %244 = sbr.rel (%p241) target = $region44
    $region43: #{inception_a_forward.3} parent=5 // pred_region
      %s245 = ssub.s32 %s14, 1
      %p246 = scmp.lt.s32.totalorder %s19, 1
      %s247 = scalar_select %p246, %s19, 1
      %s248 = smul.addr %s247, 60
      %s249 = smul.addr %s248, 4
      %s250 = scalar_lea.vmem %s0, %s249
      %p251 = pneg %p40
      %p252 = pneg %p37
      %p253 = pneg %p61
      %p254 = pneg %p58
      %p255 = pneg %p82
      %p256 = pneg %p79
      %p257 = pneg %p103
      %p258 = pneg %p100
      %p259 = pneg %p124
      %p260 = pneg %p121
      %p261 = pneg %p145
      %p262 = pneg %p142
      %p263 = pneg %p171
      %p264 = pneg %p168
      %s265 = smul.u32 8, %s19
      %p266 = scmp.lt.s32.totalorder %s265, 15
      %s267 = scalar_select %p266, %s265, 15
      %s268 = smul.addr %s267, 2
      %s269 = smul.addr %s268, 4
      %s270 = scalar_lea.vmem %s6, %s269
      %p271 = pneg %p197
      %p272 = pneg %p194
      %s273 = smul.u32 8, %s19
      %p274 = scmp.lt.s32.totalorder %s273, 15
      %s275 = scalar_select %p274, %s273, 15
      %s276 = smul.addr %s275, 4
      %s277 = scalar_lea.vmem %s7, %s276
      %p278 = scmp.lt.s32.totalorder %s19, 1
      %s279 = scalar_select %p278, %s19, 1
      %s280 = smul.addr %s279, 60
      %s281 = smul.addr %s280, 4
      %s282 = scalar_lea.vmem %s0, %s281
      %s283 = smul.u32 8, %s19
      %p284 = scmp.lt.s32.totalorder %s283, 15
      %s285 = scalar_select %p284, %s283, 15
      %s286 = smul.addr %s285, 2
      %s287 = smul.addr %s286, 4
      %s288 = scalar_lea.vmem %s6, %s287
      %s289 = smul.u32 8, %s19
      %s290 = smul.u32 8, %s19
      %p291 = scmp.lt.s32.totalorder %s290, 15
      %s292 = scalar_select %p291, %s290, 15
      %s293 = smul.addr %s292, 4
      %s294 = scalar_lea.vmem %s7, %s293
      %s295 = smul.u32 8, %s19
      %v297 = vld [vmem:[%s282] sm:$0xff]
      %v298 = vld [vmem:[%s282 + $0x8] sm:$0xf]
      %v299 = vld [vmem:[%s282 + $0xc] sm:$0x11]
      %v300 = vld [vmem:[%s282 + $0x14] sm:$0x1]
      %v301 = vld [vmem:[%s282 + $0x18] sm:$0xff]
      %v302 = vld [vmem:[%s282 + $0x20] sm:$0xf]
      %v303 = vld [vmem:[%s282 + $0x24] sm:$0x11]
      %v304 = vld [vmem:[%s282 + $0x2c] sm:$0x1]
      %v305 = vld [vmem:[%s282 + $0x30] sm:$0xff]
      %v306 = vld [vmem:[%s282 + $0x38] sm:$0xf]
      %v307 = vld [vmem:[%s282 + $0x3c] sm:$0x11]
      %v308 = vld [vmem:[%s282 + $0x44] sm:$0x1]
      %v309 = vld [vmem:[%s282 + $0x48] sm:$0xff]
      %v310 = vld [vmem:[%s282 + $0x50] sm:$0xf]
      %v311 = vld [vmem:[%s282 + $0x54] sm:$0x11]
      %v312 = vld [vmem:[%s282 + $0x5c] sm:$0x1]
      %v313 = vld [vmem:[%s282 + $0x60] sm:$0xff]
      %v314 = vld [vmem:[%s282 + $0x68] sm:$0xf]
      %v315 = vld [vmem:[%s282 + $0x6c] sm:$0x11]
      %v316 = vld [vmem:[%s282 + $0x74] sm:$0x1]
      %v317 = vld [vmem:[%s282 + $0x78] sm:$0xff]
      %v318 = vld [vmem:[%s282 + $0x80] sm:$0xf]
      %v319 = vld [vmem:[%s282 + $0x84] sm:$0x11]
      %v320 = vld [vmem:[%s282 + $0x8c] sm:$0x1]
      %v321 = vld [vmem:[%s282 + $0x90] sm:$0xff]
      %v322 = vld [vmem:[%s282 + $0x98] sm:$0xf]
      %v323 = vld [vmem:[%s282 + $0x9c] sm:$0x11]
      %v324 = vld [vmem:[%s282 + $0xa4] sm:$0x1]
      %v325 = vld [vmem:[%s282 + $0xa8] sm:$0xff]
      %v326 = vld [vmem:[%s282 + $0xb0] sm:$0xf]
      %v327 = vld [vmem:[%s282 + $0xb4] sm:$0x11]
      %v328 = vld [vmem:[%s282 + $0xbc] sm:$0x1]
      %v329 = vld [vmem:[%s282 + $0xc0] sm:$0xff]
      %v330 = vld [vmem:[%s282 + $0xc8] sm:$0xf]
      %v331 = vld [vmem:[%s282 + $0xcc] sm:$0x11]
      %v332 = vld [vmem:[%s282 + $0xd4] sm:$0x1]
      %v333 = vld [vmem:[%s282 + $0xd8] sm:$0xff]
      %v334 = vld [vmem:[%s282 + $0xe0] sm:$0xf]
      %v335 = vld [vmem:[%s282 + $0xe4] sm:$0x11]
      %v336 = vld [vmem:[%s282 + $0xec] sm:$0x1]
      %v337 = vunpack.c.l.bf16 %v297
      %v338 = vunpack.c.h.bf16 %v297
      %v339 = vunpack.c.l.bf16 %v298
      %v340 = vunpack.c.l.bf16 %v299
      %v341 = vunpack.c.h.bf16 %v299
      %v342 = vunpack.c.l.bf16 %v300
      %v343 = vunpack.c.l.bf16 %v301
      %v344 = vunpack.c.h.bf16 %v301
      %v345 = vunpack.c.l.bf16 %v302
      %v346 = vunpack.c.l.bf16 %v303
      %v347 = vunpack.c.h.bf16 %v303
      %v348 = vunpack.c.l.bf16 %v304
      %v349 = vunpack.c.l.bf16 %v305
      %v350 = vunpack.c.h.bf16 %v305
      %v351 = vunpack.c.l.bf16 %v306
      %v352 = vunpack.c.l.bf16 %v307
      %v353 = vunpack.c.h.bf16 %v307
      %v354 = vunpack.c.l.bf16 %v308
      %v355 = vunpack.c.l.bf16 %v309
      %v356 = vunpack.c.h.bf16 %v309
      %v357 = vunpack.c.l.bf16 %v310
      %v358 = vunpack.c.l.bf16 %v311
      %v359 = vunpack.c.h.bf16 %v311
      %v360 = vunpack.c.l.bf16 %v312
      %v361 = vunpack.c.l.bf16 %v313
      %v362 = vunpack.c.h.bf16 %v313
      %v363 = vunpack.c.l.bf16 %v314
      %v364 = vunpack.c.l.bf16 %v315
      %v365 = vunpack.c.h.bf16 %v315
      %v366 = vunpack.c.l.bf16 %v316
      %v367 = vunpack.c.l.bf16 %v317
      %v368 = vunpack.c.h.bf16 %v317
      %v369 = vunpack.c.l.bf16 %v318
      %v370 = vunpack.c.l.bf16 %v319
      %v371 = vunpack.c.h.bf16 %v319
      %v372 = vunpack.c.l.bf16 %v320
      %v373 = vunpack.c.l.bf16 %v321
      %v374 = vunpack.c.h.bf16 %v321
      %v375 = vunpack.c.l.bf16 %v322
      %v376 = vunpack.c.l.bf16 %v323
      %v377 = vunpack.c.h.bf16 %v323
      %v378 = vunpack.c.l.bf16 %v324
      %v379 = vunpack.c.l.bf16 %v325
      %v380 = vunpack.c.h.bf16 %v325
      %v381 = vunpack.c.l.bf16 %v326
      %v382 = vunpack.c.l.bf16 %v327
      %v383 = vunpack.c.h.bf16 %v327
      %v384 = vunpack.c.l.bf16 %v328
      %v385 = vunpack.c.l.bf16 %v329
      %v386 = vunpack.c.h.bf16 %v329
      %v387 = vunpack.c.l.bf16 %v330
      %v388 = vunpack.c.l.bf16 %v331
      %v389 = vunpack.c.h.bf16 %v331
      %v390 = vunpack.c.l.bf16 %v332
      %v391 = vunpack.c.l.bf16 %v333
      %v392 = vunpack.c.h.bf16 %v333
      %v393 = vunpack.c.l.bf16 %v334
      %v394 = vunpack.c.l.bf16 %v335
      %v395 = vunpack.c.h.bf16 %v335
      %v396 = vunpack.c.l.bf16 %v336
      %vm445 = vcmask 1046528
      %v446 = vrot.slane %v343, 1
      %v447 = vrot.slane %v346, 1
      %v448 = vsel %vm445, %v446, %v447
      %v449 = vrot.slane %v344, 1
      %v450 = vrot.slane %v347, 1
      %v451 = vsel %vm445, %v449, %v450
      %v452 = vrot.slane %v345, 1
      %v453 = vrot.slane %v348, 1
      %v454 = vsel %vm445, %v452, %v453
      %v455 = vrot.slane %v349, 1
      %v456 = vrot.slane %v352, 1
      %v457 = vsel %vm445, %v455, %v456
      %v458 = vrot.slane %v350, 1
      %v459 = vrot.slane %v353, 1
      %v460 = vsel %vm445, %v458, %v459
      %v461 = vrot.slane %v351, 1
      %v462 = vrot.slane %v354, 1
      %v463 = vsel %vm445, %v461, %v462
      %v464 = vrot.slane %v355, 1
      %v465 = vrot.slane %v358, 1
      %v466 = vsel %vm445, %v464, %v465
      %v467 = vrot.slane %v356, 1
      %v468 = vrot.slane %v359, 1
      %v469 = vsel %vm445, %v467, %v468
      %v470 = vrot.slane %v357, 1
      %v471 = vrot.slane %v360, 1
      %v472 = vsel %vm445, %v470, %v471
      %v473 = vrot.slane %v361, 1
      %v474 = vrot.slane %v364, 1
      %v475 = vsel %vm445, %v473, %v474
      %v476 = vrot.slane %v362, 1
      %v477 = vrot.slane %v365, 1
      %v478 = vsel %vm445, %v476, %v477
      %v479 = vrot.slane %v363, 1
      %v480 = vrot.slane %v366, 1
      %v481 = vsel %vm445, %v479, %v480
      %v482 = vrot.slane %v367, 1
      %v483 = vrot.slane %v370, 1
      %v484 = vsel %vm445, %v482, %v483
      %v485 = vrot.slane %v368, 1
      %v486 = vrot.slane %v371, 1
      %v487 = vsel %vm445, %v485, %v486
      %v488 = vrot.slane %v369, 1
      %v489 = vrot.slane %v372, 1
      %v490 = vsel %vm445, %v488, %v489
      %v491 = vrot.slane %v373, 1
      %v492 = vrot.slane %v376, 1
      %v493 = vsel %vm445, %v491, %v492
      %v494 = vrot.slane %v374, 1
      %v495 = vrot.slane %v377, 1
      %v496 = vsel %vm445, %v494, %v495
      %v497 = vrot.slane %v375, 1
      %v498 = vrot.slane %v378, 1
      %v499 = vsel %vm445, %v497, %v498
      %v500 = vrot.slane %v379, 1
      %v501 = vrot.slane %v382, 1
      %v502 = vsel %vm445, %v500, %v501
      %v503 = vrot.slane %v380, 1
      %v504 = vrot.slane %v383, 1
      %v505 = vsel %vm445, %v503, %v504
      %v506 = vrot.slane %v381, 1
      %v507 = vrot.slane %v384, 1
      %v508 = vsel %vm445, %v506, %v507
      %v509 = vrot.slane %v385, 1
      %v510 = vrot.slane %v388, 1
      %v511 = vsel %vm445, %v509, %v510
      %v512 = vrot.slane %v386, 1
      %v513 = vrot.slane %v389, 1
      %v514 = vsel %vm445, %v512, %v513
      %v515 = vrot.slane %v387, 1
      %v516 = vrot.slane %v390, 1
      %v517 = vsel %vm445, %v515, %v516
      %v542 = vpack.c.bf16 %v457, %v448
      %v543 = vpack.c.bf16 %v460, %v451
      %v544 = vpack.c.bf16 %v463, %v454
      %v545 = vpack.c.bf16 %v475, %v466
      %v546 = vpack.c.bf16 %v478, %v469
      %v547 = vpack.c.bf16 %v481, %v472
      %v548 = vpack.c.bf16 %v493, %v484
      %v549 = vpack.c.bf16 %v496, %v487
      %v550 = vpack.c.bf16 %v499, %v490
      %v551 = vpack.c.bf16 %v511, %v502
      %v552 = vpack.c.bf16 %v514, %v505
      %v553 = vpack.c.bf16 %v517, %v508
      %v554 = vld [vmem:[%s2] sm:$0xff]
      %v555 = vld [vmem:[%s2 + $0x8] sm:$0xff]
      %v556 = vld [vmem:[%s2 + $0x10] sm:$0xff]
      %v557 = vld [vmem:[%s2 + $0x18] sm:$0xff]
      %v558 = vld [vmem:[%s2 + $0x20] sm:$0xff]
      %v559 = vld [vmem:[%s2 + $0x28] sm:$0xff]
      %v560 = vld [vmem:[%s2 + $0x30] sm:$0xff]
      %v561 = vld [vmem:[%s2 + $0x38] sm:$0xff]
      %v562 = vld [vmem:[%s2 + $0x40] sm:$0xff]
      %v563 = vld [vmem:[%s2 + $0x48] sm:$0xff]
      %v564 = vld [vmem:[%s2 + $0x50] sm:$0xff]
      %v565 = vld [vmem:[%s2 + $0x58] sm:$0xff]
      %v566 = vld [vmem:[%s2 + $0x60] sm:$0xff]
      %v567 = vld [vmem:[%s2 + $0x68] sm:$0xff]
      %v568 = vld [vmem:[%s2 + $0x70] sm:$0xff]
      %v569 = vld [vmem:[%s2 + $0x78] sm:$0xff]
      %v570 = vld [vmem:[%s2 + $0x80] sm:$0xff]
      %v571 = vld [vmem:[%s2 + $0x88] sm:$0xff]
      %v572 = vld [vmem:[%s2 + $0x90] sm:$0xff]
      %v573 = vld [vmem:[%s2 + $0x98] sm:$0xff]
      %v574 = vld [vmem:[%s2 + $0xa0] sm:$0xff]
      %v575 = vld [vmem:[%s2 + $0xa8] sm:$0xff]
      %v576 = vld [vmem:[%s2 + $0xb0] sm:$0xff]
      %v577 = vld [vmem:[%s2 + $0xb8] sm:$0xff]
      %v578 = vld [vmem:[%s2 + $0xc0] sm:$0xff]
      %v579 = vld [vmem:[%s2 + $0xc8] sm:$0xff]
      %v580 = vld [vmem:[%s2 + $0xd0] sm:$0xff]
      %v581 = vld [vmem:[%s2 + $0xd8] sm:$0xff]
      %v582 = vld [vmem:[%s2 + $0xe0] sm:$0xff]
      %v583 = vld [vmem:[%s2 + $0xe8] sm:$0xff]
      %v584 = vld [vmem:[%s2 + $0xf0] sm:$0xff]
      %v585 = vld [vmem:[%s2 + $0xf8] sm:$0xff]
      %v586 = vld [vmem:[%s2 + $0x100] sm:$0xff]
      %v587 = vld [vmem:[%s2 + $0x108] sm:$0xff]
      %v588 = vld [vmem:[%s2 + $0x110] sm:$0xff]
      %v589 = vld [vmem:[%s2 + $0x118] sm:$0xff]
      %v590 = vld [vmem:[%s2 + $0x120] sm:$0xff]
      %v591 = vld [vmem:[%s2 + $0x128] sm:$0xff]
      %v592 = vld [vmem:[%s2 + $0x130] sm:$0xff]
      %v593 = vld [vmem:[%s2 + $0x138] sm:$0xff]
      %v594 = vld [vmem:[%s2 + $0x140] sm:$0xff]
      %v595 = vld [vmem:[%s2 + $0x148] sm:$0xff]
      %v596 = vld [vmem:[%s2 + $0x150] sm:$0xff]
      %v597 = vld [vmem:[%s2 + $0x158] sm:$0xff]
      %v598 = vld [vmem:[%s2 + $0x160] sm:$0xff]
      %v599 = vld [vmem:[%s2 + $0x168] sm:$0xff]
      %v600 = vld [vmem:[%s2 + $0x170] sm:$0xff]
      %v601 = vld [vmem:[%s2 + $0x178] sm:$0xff]
      %v602 = vld [vmem:[%s3] sm:$0x3]
      %v604 = vlaneseq
      %v605 = vshrl.u32 %v604, 7
      %v606 = vsub.s32 0, %v605
      %v607 = vrot.slane %v602, %v606
      %v608 = vlaneseq
      %v609 = vshrl.u32 %v608, 7
      %v610 = vsub.s32 1, %v609
      %v611 = vrot.slane %v602, %v610
      %v662 = vunpack.c.l.b16 %v554
      %v663 = vunpack.c.h.b16 %v554
      %v664 = vunpack.c.l.b16 %v555
      %v665 = vunpack.c.h.b16 %v555
      %v666 = vunpack.c.l.b16 %v556
      %v667 = vunpack.c.h.b16 %v556
      %v668 = vunpack.c.l.b16 %v557
      %v669 = vunpack.c.h.b16 %v557
      %v670 = vunpack.c.l.b16 %v558
      %v671 = vunpack.c.h.b16 %v558
      %v672 = vunpack.c.l.b16 %v559
      %v673 = vunpack.c.h.b16 %v559
      %v674 = vunpack.c.l.b16 %v560
      %v675 = vunpack.c.h.b16 %v560
      %v676 = vunpack.c.l.b16 %v561
      %v677 = vunpack.c.h.b16 %v561
      %v678 = vunpack.c.l.b16 %v562
      %v679 = vunpack.c.h.b16 %v562
      %v680 = vunpack.c.l.b16 %v563
      %v681 = vunpack.c.h.b16 %v563
      %v682 = vunpack.c.l.b16 %v564
      %v683 = vunpack.c.h.b16 %v564
      %v684 = vunpack.c.l.b16 %v565
      %v685 = vunpack.c.h.b16 %v565
      %v686 = vunpack.c.l.b16 %v566
      %v687 = vunpack.c.h.b16 %v566
      %v688 = vunpack.c.l.b16 %v567
      %v689 = vunpack.c.h.b16 %v567
      %v690 = vunpack.c.l.b16 %v568
      %v691 = vunpack.c.h.b16 %v568
      %v692 = vunpack.c.l.b16 %v569
      %v693 = vunpack.c.h.b16 %v569
      %v694 = vunpack.c.l.b16 %v570
      %v695 = vunpack.c.h.b16 %v570
      %v696 = vunpack.c.l.b16 %v571
      %v697 = vunpack.c.h.b16 %v571
      %v698 = vunpack.c.l.b16 %v572
      %v699 = vunpack.c.h.b16 %v572
      %v700 = vunpack.c.l.b16 %v573
      %v701 = vunpack.c.h.b16 %v573
      %v702 = vunpack.c.l.b16 %v574
      %v703 = vunpack.c.h.b16 %v574
      %v704 = vunpack.c.l.b16 %v575
      %v705 = vunpack.c.h.b16 %v575
      %v706 = vunpack.c.l.b16 %v576
      %v707 = vunpack.c.h.b16 %v576
      %v708 = vunpack.c.l.b16 %v577
      %v709 = vunpack.c.h.b16 %v577
      %v710 = vunpack.c.l.b16 %v578
      %v711 = vunpack.c.h.b16 %v578
      %v712 = vunpack.c.l.b16 %v579
      %v713 = vunpack.c.h.b16 %v579
      %v714 = vunpack.c.l.b16 %v580
      %v715 = vunpack.c.h.b16 %v580
      %v716 = vunpack.c.l.b16 %v581
      %v717 = vunpack.c.h.b16 %v581
      %v718 = vunpack.c.l.b16 %v582
      %v719 = vunpack.c.h.b16 %v582
      %v720 = vunpack.c.l.b16 %v583
      %v721 = vunpack.c.h.b16 %v583
      %v722 = vunpack.c.l.b16 %v584
      %v723 = vunpack.c.h.b16 %v584
      %v724 = vunpack.c.l.b16 %v585
      %v725 = vunpack.c.h.b16 %v585
      %v726 = vunpack.c.l.b16 %v586
      %v727 = vunpack.c.h.b16 %v586
      %v728 = vunpack.c.l.b16 %v587
      %v729 = vunpack.c.h.b16 %v587
      %v730 = vunpack.c.l.b16 %v588
      %v731 = vunpack.c.h.b16 %v588
      %v732 = vunpack.c.l.b16 %v589
      %v733 = vunpack.c.h.b16 %v589
      %v734 = vunpack.c.l.b16 %v590
      %v735 = vunpack.c.h.b16 %v590
      %v736 = vunpack.c.l.b16 %v591
      %v737 = vunpack.c.h.b16 %v591
      %v738 = vunpack.c.l.b16 %v592
      %v739 = vunpack.c.h.b16 %v592
      %v740 = vunpack.c.l.b16 %v593
      %v741 = vunpack.c.h.b16 %v593
      %v742 = vunpack.c.l.b16 %v594
      %v743 = vunpack.c.h.b16 %v594
      %v744 = vunpack.c.l.b16 %v595
      %v745 = vunpack.c.h.b16 %v595
      %v746 = vunpack.c.l.b16 %v596
      %v747 = vunpack.c.h.b16 %v596
      %v748 = vunpack.c.l.b16 %v597
      %v749 = vunpack.c.h.b16 %v597
      %v750 = vunpack.c.l.b16 %v598
      %v751 = vunpack.c.h.b16 %v598
      %v752 = vunpack.c.l.b16 %v599
      %v753 = vunpack.c.h.b16 %v599
      %v754 = vunpack.c.l.b16 %v600
      %v755 = vunpack.c.h.b16 %v600
      %v756 = vunpack.c.l.b16 %v601
      %v757 = vunpack.c.h.b16 %v601
      %v758 = vpack.c.b16 %v664, %v662
      %v759 = vpack.c.b16 %v665, %v663
      %v760 = vpack.c.b16 %v668, %v666
      %v761 = vpack.c.b16 %v669, %v667
      %v762 = vpack.c.b16 %v672, %v670
      %v763 = vpack.c.b16 %v673, %v671
      %v764 = vpack.c.b16 %v676, %v674
      %v765 = vpack.c.b16 %v677, %v675
      %v766 = vpack.c.b16 %v680, %v678
      %v767 = vpack.c.b16 %v681, %v679
      %v768 = vpack.c.b16 %v684, %v682
      %v769 = vpack.c.b16 %v685, %v683
      %v770 = vpack.c.b16 %v688, %v686
      %v771 = vpack.c.b16 %v689, %v687
      %v772 = vpack.c.b16 %v692, %v690
      %v773 = vpack.c.b16 %v693, %v691
      %v774 = vpack.c.b16 %v696, %v694
      %v775 = vpack.c.b16 %v697, %v695
      %v776 = vpack.c.b16 %v700, %v698
      %v777 = vpack.c.b16 %v701, %v699
      %v778 = vpack.c.b16 %v704, %v702
      %v779 = vpack.c.b16 %v705, %v703
      %v780 = vpack.c.b16 %v708, %v706
      %v781 = vpack.c.b16 %v709, %v707
      %v782 = vpack.c.b16 %v712, %v710
      %v783 = vpack.c.b16 %v713, %v711
      %v784 = vpack.c.b16 %v716, %v714
      %v785 = vpack.c.b16 %v717, %v715
      %v786 = vpack.c.b16 %v720, %v718
      %v787 = vpack.c.b16 %v721, %v719
      %v788 = vpack.c.b16 %v724, %v722
      %v789 = vpack.c.b16 %v725, %v723
      %v790 = vpack.c.b16 %v728, %v726
      %v791 = vpack.c.b16 %v729, %v727
      %v792 = vpack.c.b16 %v732, %v730
      %v793 = vpack.c.b16 %v733, %v731
      %v794 = vpack.c.b16 %v736, %v734
      %v795 = vpack.c.b16 %v737, %v735
      %v796 = vpack.c.b16 %v740, %v738
      %v797 = vpack.c.b16 %v741, %v739
      %v798 = vpack.c.b16 %v744, %v742
      %v799 = vpack.c.b16 %v745, %v743
      %v800 = vpack.c.b16 %v748, %v746
      %v801 = vpack.c.b16 %v749, %v747
      %v802 = vpack.c.b16 %v752, %v750
      %v803 = vpack.c.b16 %v753, %v751
      %v804 = vpack.c.b16 %v756, %v754
      %v805 = vpack.c.b16 %v757, %v755
      %854 = vmatprep.subr.bf16.mxu0 %v773
      %855 = vmatpush1.bf16.msra.mxu0 %v772
      %856 = vmatprep.subr.bf16.mxu0 %v771
      %857 = vmatpush1.bf16.msra.mxu0 %v770
      %858 = vmatprep.subr.bf16.mxu0 %v769
      %859 = vmatpush1.bf16.msra.mxu0 %v768
      %860 = vmatprep.subr.bf16.mxu0 %v767
      %861 = vmatpush1.bf16.msra.mxu0 %v766
      %862 = vmatprep.subr.bf16.mxu0 %v765
      %863 = vmatpush1.bf16.msra.mxu0 %v764
      %864 = vmatprep.subr.bf16.mxu0 %v763
      %865 = vmatpush1.bf16.msra.mxu0 %v762
      %866 = vmatprep.subr.bf16.mxu0 %v761
      %867 = vmatpush1.bf16.msra.mxu0 %v760
      %868 = vmatprep.subr.bf16.mxu0 %v759
      %869 = vmatpush1.bf16.msra.mxu0 %v758
      %870 = vmatprep.subr.bf16.mxu0 %v789
      %871 = vmatpush2.bf16.msra.mxu0 %v788
      %872 = vmatprep.subr.bf16.mxu0 %v787
      %873 = vmatpush2.bf16.msra.mxu0 %v786
      %874 = vmatprep.subr.bf16.mxu0 %v785
      %875 = vmatpush2.bf16.msra.mxu0 %v784
      %876 = vmatprep.subr.bf16.mxu0 %v783
      %877 = vmatpush2.bf16.msra.mxu0 %v782
      %878 = vmatprep.subr.bf16.mxu0 %v781
      %879 = vmatpush2.bf16.msra.mxu0 %v780
      %880 = vmatprep.subr.bf16.mxu0 %v779
      %881 = vmatpush2.bf16.msra.mxu0 %v778
      %882 = vmatprep.subr.bf16.mxu0 %v777
      %883 = vmatpush2.bf16.msra.mxu0 %v776
      %884 = vmatprep.subr.bf16.mxu0 %v775
      %885 = vmatpush2.bf16.msra.mxu0 %v774
      %886 = vmatprep.mubr.bf16.mxu0 %v543
      %887 = vmatmul.mubr.bf16.gmra.mxu0 %v542
      %v888 = vpop.f32.mrf.mxu0
      %v889 = vadd.f32 %v607, %v888
      %v890 = vpop.f32.mrf.mxu0
      %v891 = vadd.f32 %v611, %v890
      %v892 = vpop.f32.mrf.mxu0
      %v893 = vadd.f32 %v607, %v892
      %v894 = vpop.f32.mrf.mxu0
      %v895 = vadd.f32 %v611, %v894
      %896 = vmatprep.mubr.bf16.mxu0 %v546
      %897 = vmatmul.mubr.bf16.gmra.mxu0 %v545
      %v898 = vpop.f32.mrf.mxu0
      %v899 = vadd.f32 %v607, %v898
      %v900 = vpop.f32.mrf.mxu0
      %v901 = vadd.f32 %v611, %v900
      %v902 = vpop.f32.mrf.mxu0
      %v903 = vadd.f32 %v607, %v902
      %v904 = vpop.f32.mrf.mxu0
      %v905 = vadd.f32 %v611, %v904
      %906 = vmatprep.mubr.bf16.mxu0 %v549
      %907 = vmatmul.mubr.bf16.gmra.mxu0 %v548
      %v908 = vpop.f32.mrf.mxu0
      %v909 = vadd.f32 %v607, %v908
      %v910 = vpop.f32.mrf.mxu0
      %v911 = vadd.f32 %v611, %v910
      %v912 = vpop.f32.mrf.mxu0
      %v913 = vadd.f32 %v607, %v912
      %v914 = vpop.f32.mrf.mxu0
      %v915 = vadd.f32 %v611, %v914
      %916 = vmatprep.mubr.bf16.mxu0 %v552
      %917 = vmatmul.mubr.bf16.gmra.mxu0 %v551
      %v918 = vpop.f32.mrf.mxu0
      %v919 = vadd.f32 %v607, %v918
      %v920 = vpop.f32.mrf.mxu0
      %v921 = vadd.f32 %v611, %v920
      %v922 = vpop.f32.mrf.mxu0
      %v923 = vadd.f32 %v607, %v922
      %v924 = vpop.f32.mrf.mxu0
      %v925 = vadd.f32 %v611, %v924
      %926 = vdwg.mxu0
      %927 = vmatprep.subr.bf16.mxu0 %v805
      %928 = vmatpush1.bf16.msra.mxu0 %v804
      %929 = vmatprep.subr.bf16.mxu0 %v803
      %930 = vmatpush1.bf16.msra.mxu0 %v802
      %931 = vmatprep.subr.bf16.mxu0 %v801
      %932 = vmatpush1.bf16.msra.mxu0 %v800
      %933 = vmatprep.subr.bf16.mxu0 %v799
      %934 = vmatpush1.bf16.msra.mxu0 %v798
      %935 = vmatprep.subr.bf16.mxu0 %v797
      %936 = vmatpush1.bf16.msra.mxu0 %v796
      %937 = vmatprep.subr.bf16.mxu0 %v795
      %938 = vmatpush1.bf16.msra.mxu0 %v794
      %939 = vmatprep.subr.bf16.mxu0 %v793
      %940 = vmatpush1.bf16.msra.mxu0 %v792
      %941 = vmatprep.subr.bf16.mxu0 %v791
      %942 = vmatpush1.bf16.msra.mxu0 %v790
      %943 = vmatprep.subr.bf16.mxu0 0
      %944 = vmatpush2.bf16.msra.mxu0 0
      %945 = vmatprep.subr.bf16.mxu0 0
      %946 = vmatpush2.bf16.msra.mxu0 0
      %947 = vmatprep.subr.bf16.mxu0 0
      %948 = vmatpush2.bf16.msra.mxu0 0
      %949 = vmatprep.subr.bf16.mxu0 0
      %950 = vmatpush2.bf16.msra.mxu0 0
      %951 = vmatprep.subr.bf16.mxu0 0
      %952 = vmatpush2.bf16.msra.mxu0 0
      %953 = vmatprep.subr.bf16.mxu0 0
      %954 = vmatpush2.bf16.msra.mxu0 0
      %955 = vmatprep.subr.bf16.mxu0 0
      %956 = vmatpush2.bf16.msra.mxu0 0
      %957 = vmatprep.subr.bf16.mxu0 0
      %958 = vmatpush2.bf16.msra.mxu0 0
      %959 = vmatprep.mubr.bf16.mxu0 0
      %960 = vmatmul.mubr.bf16.gmra.mxu0 %v544
      %v961 = vpop.f32.mrf.mxu0
      %v962 = vadd.f32 %v889, %v961
      %v963 = vpop.f32.mrf.mxu0
      %v964 = vadd.f32 %v891, %v963
      %v965 = vpop.f32.mrf.mxu0
      %v966 = vadd.f32 %v893, %v965
      %v967 = vpop.f32.mrf.mxu0
      %v968 = vadd.f32 %v895, %v967
      %969 = vmatprep.mubr.bf16.mxu0 0
      %970 = vmatmul.mubr.bf16.gmra.mxu0 %v547
      %v971 = vpop.f32.mrf.mxu0
      %v972 = vadd.f32 %v899, %v971
      %v973 = vpop.f32.mrf.mxu0
      %v974 = vadd.f32 %v901, %v973
      %v975 = vpop.f32.mrf.mxu0
      %v976 = vadd.f32 %v903, %v975
      %v977 = vpop.f32.mrf.mxu0
      %v978 = vadd.f32 %v905, %v977
      %979 = vmatprep.mubr.bf16.mxu0 0
      %980 = vmatmul.mubr.bf16.gmra.mxu0 %v550
      %v981 = vpop.f32.mrf.mxu0
      %v982 = vadd.f32 %v909, %v981
      %v983 = vpop.f32.mrf.mxu0
      %v984 = vadd.f32 %v911, %v983
      %v985 = vpop.f32.mrf.mxu0
      %v986 = vadd.f32 %v913, %v985
      %v987 = vpop.f32.mrf.mxu0
      %v988 = vadd.f32 %v915, %v987
      %989 = vmatprep.mubr.bf16.mxu0 0
      %990 = vmatmul.mubr.bf16.gmra.mxu0 %v553
      %v991 = vpop.f32.mrf.mxu0
      %v992 = vadd.f32 %v919, %v991
      %v993 = vpop.f32.mrf.mxu0
      %v994 = vadd.f32 %v921, %v993
      %v995 = vpop.f32.mrf.mxu0
      %v996 = vadd.f32 %v923, %v995
      %v997 = vpop.f32.mrf.mxu0
      %v998 = vadd.f32 %v925, %v997
      %999 = vdwg.mxu0
      %v1000 = vmax.f32 %v962, 0.0
      %v1001 = vmax.f32 %v964, 0.0
      %v1002 = vmax.f32 %v966, 0.0
      %v1003 = vmax.f32 %v968, 0.0
      %v1004 = vmax.f32 %v972, 0.0
      %v1005 = vmax.f32 %v974, 0.0
      %v1006 = vmax.f32 %v976, 0.0
      %v1007 = vmax.f32 %v978, 0.0
      %v1008 = vmax.f32 %v982, 0.0
      %v1009 = vmax.f32 %v984, 0.0
      %v1010 = vmax.f32 %v986, 0.0
      %v1011 = vmax.f32 %v988, 0.0
      %v1012 = vmax.f32 %v992, 0.0
      %v1013 = vmax.f32 %v994, 0.0
      %v1014 = vmax.f32 %v996, 0.0
      %v1015 = vmax.f32 %v998, 0.0
      %v1016 = vpack.c.bf16 %v1002, %v1000
      %v1017 = vpack.c.bf16 %v1003, %v1001
      %v1018 = vpack.c.bf16 %v1006, %v1004
      %v1019 = vpack.c.bf16 %v1007, %v1005
      %v1020 = vpack.c.bf16 %v1010, %v1008
      %v1021 = vpack.c.bf16 %v1011, %v1009
      %v1022 = vpack.c.bf16 %v1014, %v1012
      %v1023 = vpack.c.bf16 %v1015, %v1013
      %v1032 = vunpack.c.l.b16 %v1016
      %v1033 = vunpack.c.l.b16 %v1017
      %v1034 = vunpack.c.h.b16 %v1016
      %v1035 = vunpack.c.h.b16 %v1017
      %v1036 = vunpack.c.l.b16 %v1018
      %v1037 = vunpack.c.l.b16 %v1019
      %v1038 = vunpack.c.h.b16 %v1018
      %v1039 = vunpack.c.h.b16 %v1019
      %v1040 = vunpack.c.l.b16 %v1020
      %v1041 = vunpack.c.l.b16 %v1021
      %v1042 = vunpack.c.h.b16 %v1020
      %v1043 = vunpack.c.h.b16 %v1021
      %v1044 = vunpack.c.l.b16 %v1022
      %v1045 = vunpack.c.l.b16 %v1023
      %v1046 = vunpack.c.h.b16 %v1022
      %v1047 = vunpack.c.h.b16 %v1023
      %v1048 = vpack.c.b16 %v1033, %v1032
      %v1049 = vpack.c.b16 %v1035, %v1034
      %v1050 = vpack.c.b16 %v1037, %v1036
      %v1051 = vpack.c.b16 %v1039, %v1038
      %v1052 = vpack.c.b16 %v1041, %v1040
      %v1053 = vpack.c.b16 %v1043, %v1042
      %v1054 = vpack.c.b16 %v1045, %v1044
      %v1055 = vpack.c.b16 %v1047, %v1046
      %vm1064 = vcmask 1043456
      %vm1065 = vcmask 785412
      %vm1066 = vmor %vm1065, %vm1064
      %1067 = vst.msk [vmem:[%s288] sm:$0xff] %vm1066, %v1048
      %1068 = vst.msk [vmem:[%s288 + $0x8] sm:$0xff] %vm1066, %v1049
      %1069 = vst.msk [vmem:[%s288 + $0x10] sm:$0xff] %vm1066, %v1050
      %1070 = vst.msk [vmem:[%s288 + $0x18] sm:$0xff] %vm1066, %v1051
      %1071 = vst.msk [vmem:[%s288 + $0x20] sm:$0xff] %vm1066, %v1052
      %1072 = vst.msk [vmem:[%s288 + $0x28] sm:$0xff] %vm1066, %v1053
      %1073 = vst.msk [vmem:[%s288 + $0x30] sm:$0xff] %vm1066, %v1054
      %1074 = vst.msk [vmem:[%s288 + $0x38] sm:$0xff] %vm1066, %v1055
      %v1075 = vadd.f32 %v337, 0.0
      %v1076 = vadd.f32 %v338, 0.0
      %v1077 = vadd.f32 %v339, 0.0
      %v1078 = vadd.f32 %v343, 0.0
      %v1079 = vadd.f32 %v344, 0.0
      %v1080 = vadd.f32 %v345, 0.0
      %v1081 = vadd.f32 %v349, 0.0
      %v1082 = vadd.f32 %v350, 0.0
      %v1083 = vadd.f32 %v351, 0.0
      %v1084 = vadd.f32 %v355, 0.0
      %v1085 = vadd.f32 %v356, 0.0
      %v1086 = vadd.f32 %v357, 0.0
      %v1087 = vadd.f32 %v361, 0.0
      %v1088 = vadd.f32 %v362, 0.0
      %v1089 = vadd.f32 %v363, 0.0
      %v1090 = vadd.f32 %v367, 0.0
      %v1091 = vadd.f32 %v368, 0.0
      %v1092 = vadd.f32 %v369, 0.0
      %v1093 = vadd.f32 %v373, 0.0
      %v1094 = vadd.f32 %v374, 0.0
      %v1095 = vadd.f32 %v375, 0.0
      %v1096 = vadd.f32 %v379, 0.0
      %v1097 = vadd.f32 %v380, 0.0
      %v1098 = vadd.f32 %v381, 0.0
      %v1105 = vrot.slane %v337, 1
      %v1106 = vrot.slane %v340, 1
      %v1107 = vsel %vm445, %v1105, %v1106
      %v1108 = vrot.slane %v338, 1
      %v1109 = vrot.slane %v341, 1
      %v1110 = vsel %vm445, %v1108, %v1109
      %v1111 = vrot.slane %v339, 1
      %v1112 = vrot.slane %v342, 1
      %v1113 = vsel %vm445, %v1111, %v1112
      %v1117 = vadd.f32 %v1075, %v1107
      %v1118 = vadd.f32 %v1076, %v1110
      %v1119 = vadd.f32 %v1077, %v1113
      %v1120 = vadd.f32 %v1078, %v448
      %v1121 = vadd.f32 %v1079, %v451
      %v1122 = vadd.f32 %v1080, %v454
      %v1123 = vadd.f32 %v1081, %v457
      %v1124 = vadd.f32 %v1082, %v460
      %v1125 = vadd.f32 %v1083, %v463
      %v1126 = vadd.f32 %v1084, %v466
      %v1127 = vadd.f32 %v1085, %v469
      %v1128 = vadd.f32 %v1086, %v472
      %v1129 = vadd.f32 %v1087, %v475
      %v1130 = vadd.f32 %v1088, %v478
      %v1131 = vadd.f32 %v1089, %v481
      %v1132 = vadd.f32 %v1090, %v484
      %v1133 = vadd.f32 %v1091, %v487
      %v1134 = vadd.f32 %v1092, %v490
      %v1135 = vadd.f32 %v1093, %v493
      %v1136 = vadd.f32 %v1094, %v496
      %v1137 = vadd.f32 %v1095, %v499
      %v1138 = vadd.f32 %v1096, %v502
      %v1139 = vadd.f32 %v1097, %v505
      %v1140 = vadd.f32 %v1098, %v508
      %vm1141 = vcmask 1045504
      %v1142 = vrot.slane %v337, 2
      %v1143 = vrot.slane %v340, 2
      %v1144 = vsel %vm1141, %v1142, %v1143
      %v1145 = vrot.slane %v338, 2
      %v1146 = vrot.slane %v341, 2
      %v1147 = vsel %vm1141, %v1145, %v1146
      %v1148 = vrot.slane %v339, 2
      %v1149 = vrot.slane %v342, 2
      %v1150 = vsel %vm1141, %v1148, %v1149
      %v1151 = vrot.slane %v343, 2
      %v1152 = vrot.slane %v346, 2
      %v1153 = vsel %vm1141, %v1151, %v1152
      %v1154 = vrot.slane %v344, 2
      %v1155 = vrot.slane %v347, 2
      %v1156 = vsel %vm1141, %v1154, %v1155
      %v1157 = vrot.slane %v345, 2
      %v1158 = vrot.slane %v348, 2
      %v1159 = vsel %vm1141, %v1157, %v1158
      %v1160 = vrot.slane %v349, 2
      %v1161 = vrot.slane %v352, 2
      %v1162 = vsel %vm1141, %v1160, %v1161
      %v1163 = vrot.slane %v350, 2
      %v1164 = vrot.slane %v353, 2
      %v1165 = vsel %vm1141, %v1163, %v1164
      %v1166 = vrot.slane %v351, 2
      %v1167 = vrot.slane %v354, 2
      %v1168 = vsel %vm1141, %v1166, %v1167
      %v1169 = vrot.slane %v355, 2
      %v1170 = vrot.slane %v358, 2
      %v1171 = vsel %vm1141, %v1169, %v1170
      %v1172 = vrot.slane %v356, 2
      %v1173 = vrot.slane %v359, 2
      %v1174 = vsel %vm1141, %v1172, %v1173
      %v1175 = vrot.slane %v357, 2
      %v1176 = vrot.slane %v360, 2
      %v1177 = vsel %vm1141, %v1175, %v1176
      %v1178 = vrot.slane %v361, 2
      %v1179 = vrot.slane %v364, 2
      %v1180 = vsel %vm1141, %v1178, %v1179
      %v1181 = vrot.slane %v362, 2
      %v1182 = vrot.slane %v365, 2
      %v1183 = vsel %vm1141, %v1181, %v1182
      %v1184 = vrot.slane %v363, 2
      %v1185 = vrot.slane %v366, 2
      %v1186 = vsel %vm1141, %v1184, %v1185
      %v1187 = vrot.slane %v367, 2
      %v1188 = vrot.slane %v370, 2
      %v1189 = vsel %vm1141, %v1187, %v1188
      %v1190 = vrot.slane %v368, 2
      %v1191 = vrot.slane %v371, 2
      %v1192 = vsel %vm1141, %v1190, %v1191
      %v1193 = vrot.slane %v369, 2
      %v1194 = vrot.slane %v372, 2
      %v1195 = vsel %vm1141, %v1193, %v1194
      %v1196 = vrot.slane %v373, 2
      %v1197 = vrot.slane %v376, 2
      %v1198 = vsel %vm1141, %v1196, %v1197
      %v1199 = vrot.slane %v374, 2
      %v1200 = vrot.slane %v377, 2
      %v1201 = vsel %vm1141, %v1199, %v1200
      %v1202 = vrot.slane %v375, 2
      %v1203 = vrot.slane %v378, 2
      %v1204 = vsel %vm1141, %v1202, %v1203
      %v1205 = vrot.slane %v379, 2
      %v1206 = vrot.slane %v382, 2
      %v1207 = vsel %vm1141, %v1205, %v1206
      %v1208 = vrot.slane %v380, 2
      %v1209 = vrot.slane %v383, 2
      %v1210 = vsel %vm1141, %v1208, %v1209
      %v1211 = vrot.slane %v381, 2
      %v1212 = vrot.slane %v384, 2
      %v1213 = vsel %vm1141, %v1211, %v1212
      %v1238 = vadd.f32 %v1117, %v1144
      %v1239 = vadd.f32 %v1118, %v1147
      %v1240 = vadd.f32 %v1119, %v1150
      %v1241 = vadd.f32 %v1120, %v1153
      %v1242 = vadd.f32 %v1121, %v1156
      %v1243 = vadd.f32 %v1122, %v1159
      %v1244 = vadd.f32 %v1123, %v1162
      %v1245 = vadd.f32 %v1124, %v1165
      %v1246 = vadd.f32 %v1125, %v1168
      %v1247 = vadd.f32 %v1126, %v1171
      %v1248 = vadd.f32 %v1127, %v1174
      %v1249 = vadd.f32 %v1128, %v1177
      %v1250 = vadd.f32 %v1129, %v1180
      %v1251 = vadd.f32 %v1130, %v1183
      %v1252 = vadd.f32 %v1131, %v1186
      %v1253 = vadd.f32 %v1132, %v1189
      %v1254 = vadd.f32 %v1133, %v1192
      %v1255 = vadd.f32 %v1134, %v1195
      %v1256 = vadd.f32 %v1135, %v1198
      %v1257 = vadd.f32 %v1136, %v1201
      %v1258 = vadd.f32 %v1137, %v1204
      %v1259 = vadd.f32 %v1138, %v1207
      %v1260 = vadd.f32 %v1139, %v1210
      %v1261 = vadd.f32 %v1140, %v1213
      %v1262 = vadd.f32 %v1238, %v343
      %v1263 = vadd.f32 %v1239, %v344
      %v1264 = vadd.f32 %v1240, %v345
      %v1265 = vadd.f32 %v1241, %v349
      %v1266 = vadd.f32 %v1242, %v350
      %v1267 = vadd.f32 %v1243, %v351
      %v1268 = vadd.f32 %v1244, %v355
      %v1269 = vadd.f32 %v1245, %v356
      %v1270 = vadd.f32 %v1246, %v357
      %v1271 = vadd.f32 %v1247, %v361
      %v1272 = vadd.f32 %v1248, %v362
      %v1273 = vadd.f32 %v1249, %v363
      %v1274 = vadd.f32 %v1250, %v367
      %v1275 = vadd.f32 %v1251, %v368
      %v1276 = vadd.f32 %v1252, %v369
      %v1277 = vadd.f32 %v1253, %v373
      %v1278 = vadd.f32 %v1254, %v374
      %v1279 = vadd.f32 %v1255, %v375
      %v1280 = vadd.f32 %v1256, %v379
      %v1281 = vadd.f32 %v1257, %v380
      %v1282 = vadd.f32 %v1258, %v381
      %v1283 = vadd.f32 %v1259, %v385
      %v1284 = vadd.f32 %v1260, %v386
      %v1285 = vadd.f32 %v1261, %v387
      %v1286 = vadd.f32 %v1262, %v448
      %v1287 = vadd.f32 %v1263, %v451
      %v1288 = vadd.f32 %v1264, %v454
      %v1289 = vadd.f32 %v1265, %v457
      %v1290 = vadd.f32 %v1266, %v460
      %v1291 = vadd.f32 %v1267, %v463
      %v1292 = vadd.f32 %v1268, %v466
      %v1293 = vadd.f32 %v1269, %v469
      %v1294 = vadd.f32 %v1270, %v472
      %v1295 = vadd.f32 %v1271, %v475
      %v1296 = vadd.f32 %v1272, %v478
      %v1297 = vadd.f32 %v1273, %v481
      %v1298 = vadd.f32 %v1274, %v484
      %v1299 = vadd.f32 %v1275, %v487
      %v1300 = vadd.f32 %v1276, %v490
      %v1301 = vadd.f32 %v1277, %v493
      %v1302 = vadd.f32 %v1278, %v496
      %v1303 = vadd.f32 %v1279, %v499
      %v1304 = vadd.f32 %v1280, %v502
      %v1305 = vadd.f32 %v1281, %v505
      %v1306 = vadd.f32 %v1282, %v508
      %v1307 = vadd.f32 %v1283, %v511
      %v1308 = vadd.f32 %v1284, %v514
      %v1309 = vadd.f32 %v1285, %v517
      %v1310 = vrot.slane %v385, 2
      %v1311 = vrot.slane %v388, 2
      %v1312 = vsel %vm1141, %v1310, %v1311
      %v1313 = vrot.slane %v386, 2
      %v1314 = vrot.slane %v389, 2
      %v1315 = vsel %vm1141, %v1313, %v1314
      %v1316 = vrot.slane %v387, 2
      %v1317 = vrot.slane %v390, 2
      %v1318 = vsel %vm1141, %v1316, %v1317
      %v1322 = vadd.f32 %v1286, %v1153
      %v1323 = vadd.f32 %v1287, %v1156
      %v1324 = vadd.f32 %v1288, %v1159
      %v1325 = vadd.f32 %v1289, %v1162
      %v1326 = vadd.f32 %v1290, %v1165
      %v1327 = vadd.f32 %v1291, %v1168
      %v1328 = vadd.f32 %v1292, %v1171
      %v1329 = vadd.f32 %v1293, %v1174
      %v1330 = vadd.f32 %v1294, %v1177
      %v1331 = vadd.f32 %v1295, %v1180
      %v1332 = vadd.f32 %v1296, %v1183
      %v1333 = vadd.f32 %v1297, %v1186
      %v1334 = vadd.f32 %v1298, %v1189
      %v1335 = vadd.f32 %v1299, %v1192
      %v1336 = vadd.f32 %v1300, %v1195
      %v1337 = vadd.f32 %v1301, %v1198
      %v1338 = vadd.f32 %v1302, %v1201
      %v1339 = vadd.f32 %v1303, %v1204
      %v1340 = vadd.f32 %v1304, %v1207
      %v1341 = vadd.f32 %v1305, %v1210
      %v1342 = vadd.f32 %v1306, %v1213
      %v1343 = vadd.f32 %v1307, %v1312
      %v1344 = vadd.f32 %v1308, %v1315
      %v1345 = vadd.f32 %v1309, %v1318
      %v1346 = vadd.f32 %v1322, %v349
      %v1347 = vadd.f32 %v1323, %v350
      %v1348 = vadd.f32 %v1324, %v351
      %v1349 = vadd.f32 %v1325, %v355
      %v1350 = vadd.f32 %v1326, %v356
      %v1351 = vadd.f32 %v1327, %v357
      %v1352 = vadd.f32 %v1328, %v361
      %v1353 = vadd.f32 %v1329, %v362
      %v1354 = vadd.f32 %v1330, %v363
      %v1355 = vadd.f32 %v1331, %v367
      %v1356 = vadd.f32 %v1332, %v368
      %v1357 = vadd.f32 %v1333, %v369
      %v1358 = vadd.f32 %v1334, %v373
      %v1359 = vadd.f32 %v1335, %v374
      %v1360 = vadd.f32 %v1336, %v375
      %v1361 = vadd.f32 %v1337, %v379
      %v1362 = vadd.f32 %v1338, %v380
      %v1363 = vadd.f32 %v1339, %v381
      %v1364 = vadd.f32 %v1340, %v385
      %v1365 = vadd.f32 %v1341, %v386
      %v1366 = vadd.f32 %v1342, %v387
      %v1367 = vadd.f32 %v1343, %v391
      %v1368 = vadd.f32 %v1344, %v392
      %v1369 = vadd.f32 %v1345, %v393
      %v1376 = vrot.slane %v391, 1
      %v1377 = vrot.slane %v394, 1
      %v1378 = vsel %vm445, %v1376, %v1377
      %v1379 = vrot.slane %v392, 1
      %v1380 = vrot.slane %v395, 1
      %v1381 = vsel %vm445, %v1379, %v1380
      %v1382 = vrot.slane %v393, 1
      %v1383 = vrot.slane %v396, 1
      %v1384 = vsel %vm445, %v1382, %v1383
      %v1388 = vadd.f32 %v1346, %v457
      %v1389 = vadd.f32 %v1347, %v460
      %v1390 = vadd.f32 %v1348, %v463
      %v1391 = vadd.f32 %v1349, %v466
      %v1392 = vadd.f32 %v1350, %v469
      %v1393 = vadd.f32 %v1351, %v472
      %v1394 = vadd.f32 %v1352, %v475
      %v1395 = vadd.f32 %v1353, %v478
      %v1396 = vadd.f32 %v1354, %v481
      %v1397 = vadd.f32 %v1355, %v484
      %v1398 = vadd.f32 %v1356, %v487
      %v1399 = vadd.f32 %v1357, %v490
      %v1400 = vadd.f32 %v1358, %v493
      %v1401 = vadd.f32 %v1359, %v496
      %v1402 = vadd.f32 %v1360, %v499
      %v1403 = vadd.f32 %v1361, %v502
      %v1404 = vadd.f32 %v1362, %v505
      %v1405 = vadd.f32 %v1363, %v508
      %v1406 = vadd.f32 %v1364, %v511
      %v1407 = vadd.f32 %v1365, %v514
      %v1408 = vadd.f32 %v1366, %v517
      %v1409 = vadd.f32 %v1367, %v1378
      %v1410 = vadd.f32 %v1368, %v1381
      %v1411 = vadd.f32 %v1369, %v1384
      %v1412 = vrot.slane %v391, 2
      %v1413 = vrot.slane %v394, 2
      %v1414 = vsel %vm1141, %v1412, %v1413
      %v1415 = vrot.slane %v392, 2
      %v1416 = vrot.slane %v395, 2
      %v1417 = vsel %vm1141, %v1415, %v1416
      %v1418 = vrot.slane %v393, 2
      %v1419 = vrot.slane %v396, 2
      %v1420 = vsel %vm1141, %v1418, %v1419
      %v1424 = vadd.f32 %v1388, %v1162
      %v1425 = vadd.f32 %v1389, %v1165
      %v1426 = vadd.f32 %v1390, %v1168
      %v1427 = vadd.f32 %v1391, %v1171
      %v1428 = vadd.f32 %v1392, %v1174
      %v1429 = vadd.f32 %v1393, %v1177
      %v1430 = vadd.f32 %v1394, %v1180
      %v1431 = vadd.f32 %v1395, %v1183
      %v1432 = vadd.f32 %v1396, %v1186
      %v1433 = vadd.f32 %v1397, %v1189
      %v1434 = vadd.f32 %v1398, %v1192
      %v1435 = vadd.f32 %v1399, %v1195
      %v1436 = vadd.f32 %v1400, %v1198
      %v1437 = vadd.f32 %v1401, %v1201
      %v1438 = vadd.f32 %v1402, %v1204
      %v1439 = vadd.f32 %v1403, %v1207
      %v1440 = vadd.f32 %v1404, %v1210
      %v1441 = vadd.f32 %v1405, %v1213
      %v1442 = vadd.f32 %v1406, %v1312
      %v1443 = vadd.f32 %v1407, %v1315
      %v1444 = vadd.f32 %v1408, %v1318
      %v1445 = vadd.f32 %v1409, %v1414
      %v1446 = vadd.f32 %v1410, %v1417
      %v1447 = vadd.f32 %v1411, %v1420
      %v1448 = vld [vmem:[%s1] sm:$0xff]
      %v1449 = vld [vmem:[%s1 + $0x8] sm:$0xff]
      %v1450 = vld [vmem:[%s1 + $0x10] sm:$0xff]
      %v1451 = vld [vmem:[%s1 + $0x18] sm:$0xff]
      %v1452 = vld [vmem:[%s1 + $0x20] sm:$0xff]
      %v1453 = vld [vmem:[%s1 + $0x28] sm:$0xff]
      %v1454 = vld [vmem:[%s1 + $0x30] sm:$0xff]
      %v1455 = vld [vmem:[%s1 + $0x38] sm:$0xff]
      %1457 = vset.pattern.permute.xlu0 0
      %1458 = vperm.xlu0 %1457, %v1448
      %v1459 = vpop.permute.xlu0 %1458
      %1462 = vset.pattern.permute.xlu0 0
      %1463 = vperm.xlu0 %1462, %v1449
      %v1464 = vpop.permute.xlu0 %1463
      %1467 = vset.pattern.permute.xlu0 0
      %1468 = vperm.xlu0 %1467, %v1450
      %v1469 = vpop.permute.xlu0 %1468
      %1472 = vset.pattern.permute.xlu0 0
      %1473 = vperm.xlu0 %1472, %v1451
      %v1474 = vpop.permute.xlu0 %1473
      %1477 = vset.pattern.permute.xlu0 0
      %1478 = vperm.xlu0 %1477, %v1452
      %v1479 = vpop.permute.xlu0 %1478
      %1482 = vset.pattern.permute.xlu0 0
      %1483 = vperm.xlu0 %1482, %v1453
      %v1484 = vpop.permute.xlu0 %1483
      %1487 = vset.pattern.permute.xlu0 0
      %1488 = vperm.xlu0 %1487, %v1454
      %v1489 = vpop.permute.xlu0 %1488
      %1492 = vset.pattern.permute.xlu0 0
      %1493 = vperm.xlu0 %1492, %v1455
      %v1494 = vpop.permute.xlu0 %1493
      %v1496 = vmul.f32 %v1424, %v1459
      %v1497 = vmul.f32 %v1425, %v1459
      %v1498 = vmul.f32 %v1426, %v1459
      %v1499 = vmul.f32 %v1427, %v1464
      %v1500 = vmul.f32 %v1428, %v1464
      %v1501 = vmul.f32 %v1429, %v1464
      %v1502 = vmul.f32 %v1430, %v1469
      %v1503 = vmul.f32 %v1431, %v1469
      %v1504 = vmul.f32 %v1432, %v1469
      %v1505 = vmul.f32 %v1433, %v1474
      %v1506 = vmul.f32 %v1434, %v1474
      %v1507 = vmul.f32 %v1435, %v1474
      %v1508 = vmul.f32 %v1436, %v1479
      %v1509 = vmul.f32 %v1437, %v1479
      %v1510 = vmul.f32 %v1438, %v1479
      %v1511 = vmul.f32 %v1439, %v1484
      %v1512 = vmul.f32 %v1440, %v1484
      %v1513 = vmul.f32 %v1441, %v1484
      %v1514 = vmul.f32 %v1442, %v1489
      %v1515 = vmul.f32 %v1443, %v1489
      %v1516 = vmul.f32 %v1444, %v1489
      %v1517 = vmul.f32 %v1445, %v1494
      %v1518 = vmul.f32 %v1446, %v1494
      %v1519 = vmul.f32 %v1447, %v1494
      %v1520 = vpack.c.bf16 %v1499, %v1496
      %v1521 = vpack.c.bf16 %v1500, %v1497
      %v1522 = vpack.c.bf16 %v1501, %v1498
      %v1523 = vpack.c.bf16 %v1505, %v1502
      %v1524 = vpack.c.bf16 %v1506, %v1503
      %v1525 = vpack.c.bf16 %v1507, %v1504
      %v1526 = vpack.c.bf16 %v1511, %v1508
      %v1527 = vpack.c.bf16 %v1512, %v1509
      %v1528 = vpack.c.bf16 %v1513, %v1510
      %v1529 = vpack.c.bf16 %v1517, %v1514
      %v1530 = vpack.c.bf16 %v1518, %v1515
      %v1531 = vpack.c.bf16 %v1519, %v1516
      %v1532 = vld [vmem:[%s4] sm:$0xf]
      %v1533 = vld [vmem:[%s4 + $0x4] sm:$0xf]
      %v1534 = vld [vmem:[%s4 + $0x8] sm:$0xf]
      %v1535 = vld [vmem:[%s4 + $0xc] sm:$0xf]
      %v1536 = vld [vmem:[%s4 + $0x10] sm:$0xf]
      %v1537 = vld [vmem:[%s4 + $0x14] sm:$0xf]
      %v1538 = vld [vmem:[%s4 + $0x18] sm:$0xf]
      %v1539 = vld [vmem:[%s4 + $0x1c] sm:$0xf]
      %v1540 = vld [vmem:[%s4 + $0x20] sm:$0xf]
      %v1541 = vld [vmem:[%s4 + $0x24] sm:$0xf]
      %v1542 = vld [vmem:[%s4 + $0x28] sm:$0xf]
      %v1543 = vld [vmem:[%s4 + $0x2c] sm:$0xf]
      %v1544 = vld [vmem:[%s4 + $0x30] sm:$0xf]
      %v1545 = vld [vmem:[%s4 + $0x34] sm:$0xf]
      %v1546 = vld [vmem:[%s4 + $0x38] sm:$0xf]
      %v1547 = vld [vmem:[%s4 + $0x3c] sm:$0xf]
      %v1548 = vld [vmem:[%s4 + $0x40] sm:$0xf]
      %v1549 = vld [vmem:[%s4 + $0x44] sm:$0xf]
      %v1550 = vld [vmem:[%s4 + $0x48] sm:$0xf]
      %v1551 = vld [vmem:[%s4 + $0x4c] sm:$0xf]
      %v1552 = vld [vmem:[%s4 + $0x50] sm:$0xf]
      %v1553 = vld [vmem:[%s4 + $0x54] sm:$0xf]
      %v1554 = vld [vmem:[%s4 + $0x58] sm:$0xf]
      %v1555 = vld [vmem:[%s4 + $0x5c] sm:$0xf]
      %v1556 = vld [vmem:[%s4 + $0x60] sm:$0xf]
      %v1557 = vld [vmem:[%s4 + $0x64] sm:$0xf]
      %v1558 = vld [vmem:[%s4 + $0x68] sm:$0xf]
      %v1559 = vld [vmem:[%s4 + $0x6c] sm:$0xf]
      %v1560 = vld [vmem:[%s4 + $0x70] sm:$0xf]
      %v1561 = vld [vmem:[%s4 + $0x74] sm:$0xf]
      %v1562 = vld [vmem:[%s4 + $0x78] sm:$0xf]
      %v1563 = vld [vmem:[%s4 + $0x7c] sm:$0xf]
      %v1564 = vld [vmem:[%s4 + $0x80] sm:$0xf]
      %v1565 = vld [vmem:[%s4 + $0x84] sm:$0xf]
      %v1566 = vld [vmem:[%s4 + $0x88] sm:$0xf]
      %v1567 = vld [vmem:[%s4 + $0x8c] sm:$0xf]
      %v1568 = vld [vmem:[%s4 + $0x90] sm:$0xf]
      %v1569 = vld [vmem:[%s4 + $0x94] sm:$0xf]
      %v1570 = vld [vmem:[%s4 + $0x98] sm:$0xf]
      %v1571 = vld [vmem:[%s4 + $0x9c] sm:$0xf]
      %v1572 = vld [vmem:[%s4 + $0xa0] sm:$0xf]
      %v1573 = vld [vmem:[%s4 + $0xa4] sm:$0xf]
      %v1574 = vld [vmem:[%s4 + $0xa8] sm:$0xf]
      %v1575 = vld [vmem:[%s4 + $0xac] sm:$0xf]
      %v1576 = vld [vmem:[%s4 + $0xb0] sm:$0xf]
      %v1577 = vld [vmem:[%s4 + $0xb4] sm:$0xf]
      %v1578 = vld [vmem:[%s4 + $0xb8] sm:$0xf]
      %v1579 = vld [vmem:[%s4 + $0xbc] sm:$0xf]
      %v1580 = vld [vmem:[%s5] sm:$0x1]
      %v1582 = vlaneseq
      %v1583 = vshrl.u32 %v1582, 7
      %v1584 = vsub.s32 0, %v1583
      %v1585 = vrot.slane %v1580, %v1584
      %v1635 = vunpack.c.l.b16 %v1532
      %v1636 = vunpack.c.l.b16 %v1533
      %v1637 = vunpack.c.l.b16 %v1534
      %v1638 = vunpack.c.l.b16 %v1535
      %v1639 = vunpack.c.l.b16 %v1536
      %v1640 = vunpack.c.l.b16 %v1537
      %v1641 = vunpack.c.l.b16 %v1538
      %v1642 = vunpack.c.l.b16 %v1539
      %v1643 = vunpack.c.l.b16 %v1540
      %v1644 = vunpack.c.l.b16 %v1541
      %v1645 = vunpack.c.l.b16 %v1542
      %v1646 = vunpack.c.l.b16 %v1543
      %v1647 = vunpack.c.l.b16 %v1544
      %v1648 = vunpack.c.l.b16 %v1545
      %v1649 = vunpack.c.l.b16 %v1546
      %v1650 = vunpack.c.l.b16 %v1547
      %v1651 = vunpack.c.l.b16 %v1548
      %v1652 = vunpack.c.l.b16 %v1549
      %v1653 = vunpack.c.l.b16 %v1550
      %v1654 = vunpack.c.l.b16 %v1551
      %v1655 = vunpack.c.l.b16 %v1552
      %v1656 = vunpack.c.l.b16 %v1553
      %v1657 = vunpack.c.l.b16 %v1554
      %v1658 = vunpack.c.l.b16 %v1555
      %v1659 = vunpack.c.l.b16 %v1556
      %v1660 = vunpack.c.l.b16 %v1557
      %v1661 = vunpack.c.l.b16 %v1558
      %v1662 = vunpack.c.l.b16 %v1559
      %v1663 = vunpack.c.l.b16 %v1560
      %v1664 = vunpack.c.l.b16 %v1561
      %v1665 = vunpack.c.l.b16 %v1562
      %v1666 = vunpack.c.l.b16 %v1563
      %v1667 = vunpack.c.l.b16 %v1564
      %v1668 = vunpack.c.l.b16 %v1565
      %v1669 = vunpack.c.l.b16 %v1566
      %v1670 = vunpack.c.l.b16 %v1567
      %v1671 = vunpack.c.l.b16 %v1568
      %v1672 = vunpack.c.l.b16 %v1569
      %v1673 = vunpack.c.l.b16 %v1570
      %v1674 = vunpack.c.l.b16 %v1571
      %v1675 = vunpack.c.l.b16 %v1572
      %v1676 = vunpack.c.l.b16 %v1573
      %v1677 = vunpack.c.l.b16 %v1574
      %v1678 = vunpack.c.l.b16 %v1575
      %v1679 = vunpack.c.l.b16 %v1576
      %v1680 = vunpack.c.l.b16 %v1577
      %v1681 = vunpack.c.l.b16 %v1578
      %v1682 = vunpack.c.l.b16 %v1579
      %v1683 = vpack.c.b16 %v1636, %v1635
      %v1684 = vpack.c.b16 %v1638, %v1637
      %v1685 = vpack.c.b16 %v1640, %v1639
      %v1686 = vpack.c.b16 %v1642, %v1641
      %v1687 = vpack.c.b16 %v1644, %v1643
      %v1688 = vpack.c.b16 %v1646, %v1645
      %v1689 = vpack.c.b16 %v1648, %v1647
      %v1690 = vpack.c.b16 %v1650, %v1649
      %v1691 = vpack.c.b16 %v1652, %v1651
      %v1692 = vpack.c.b16 %v1654, %v1653
      %v1693 = vpack.c.b16 %v1656, %v1655
      %v1694 = vpack.c.b16 %v1658, %v1657
      %v1695 = vpack.c.b16 %v1660, %v1659
      %v1696 = vpack.c.b16 %v1662, %v1661
      %v1697 = vpack.c.b16 %v1664, %v1663
      %v1698 = vpack.c.b16 %v1666, %v1665
      %v1699 = vpack.c.b16 %v1668, %v1667
      %v1700 = vpack.c.b16 %v1670, %v1669
      %v1701 = vpack.c.b16 %v1672, %v1671
      %v1702 = vpack.c.b16 %v1674, %v1673
      %v1703 = vpack.c.b16 %v1676, %v1675
      %v1704 = vpack.c.b16 %v1678, %v1677
      %v1705 = vpack.c.b16 %v1680, %v1679
      %v1706 = vpack.c.b16 %v1682, %v1681
      %1731 = vmatprep.subr.bf16.mxu0 0
      %1732 = vmatpush1.bf16.msra.mxu0 %v1690
      %1733 = vmatprep.subr.bf16.mxu0 0
      %1734 = vmatpush1.bf16.msra.mxu0 %v1689
      %1735 = vmatprep.subr.bf16.mxu0 0
      %1736 = vmatpush1.bf16.msra.mxu0 %v1688
      %1737 = vmatprep.subr.bf16.mxu0 0
      %1738 = vmatpush1.bf16.msra.mxu0 %v1687
      %1739 = vmatprep.subr.bf16.mxu0 0
      %1740 = vmatpush1.bf16.msra.mxu0 %v1686
      %1741 = vmatprep.subr.bf16.mxu0 0
      %1742 = vmatpush1.bf16.msra.mxu0 %v1685
      %1743 = vmatprep.subr.bf16.mxu0 0
      %1744 = vmatpush1.bf16.msra.mxu0 %v1684
      %1745 = vmatprep.subr.bf16.mxu0 0
      %1746 = vmatpush1.bf16.msra.mxu0 %v1683
      %1747 = vmatprep.subr.bf16.mxu0 0
      %1748 = vmatpush2.bf16.msra.mxu0 %v1698
      %1749 = vmatprep.subr.bf16.mxu0 0
      %1750 = vmatpush2.bf16.msra.mxu0 %v1697
      %1751 = vmatprep.subr.bf16.mxu0 0
      %1752 = vmatpush2.bf16.msra.mxu0 %v1696
      %1753 = vmatprep.subr.bf16.mxu0 0
      %1754 = vmatpush2.bf16.msra.mxu0 %v1695
      %1755 = vmatprep.subr.bf16.mxu0 0
      %1756 = vmatpush2.bf16.msra.mxu0 %v1694
      %1757 = vmatprep.subr.bf16.mxu0 0
      %1758 = vmatpush2.bf16.msra.mxu0 %v1693
      %1759 = vmatprep.subr.bf16.mxu0 0
      %1760 = vmatpush2.bf16.msra.mxu0 %v1692
      %1761 = vmatprep.subr.bf16.mxu0 0
      %1762 = vmatpush2.bf16.msra.mxu0 %v1691
      %1763 = vmatprep.mubr.bf16.mxu0 %v1521
      %1764 = vmatmul.mubr.bf16.gmra.mxu0 %v1520
      %v1765 = vpop.f32.mrf.mxu0
      %v1766 = vadd.f32 %v1585, %v1765
      %v1767 = vpop.f32.mrf.mxu0
      %v1768 = vpop.f32.mrf.mxu0
      %v1769 = vadd.f32 %v1585, %v1768
      %v1770 = vpop.f32.mrf.mxu0
      %1771 = vmatprep.mubr.bf16.mxu0 %v1524
      %1772 = vmatmul.mubr.bf16.gmra.mxu0 %v1523
      %v1773 = vpop.f32.mrf.mxu0
      %v1774 = vadd.f32 %v1585, %v1773
      %v1775 = vpop.f32.mrf.mxu0
      %v1776 = vpop.f32.mrf.mxu0
      %v1777 = vadd.f32 %v1585, %v1776
      %v1778 = vpop.f32.mrf.mxu0
      %1779 = vmatprep.mubr.bf16.mxu0 %v1527
      %1780 = vmatmul.mubr.bf16.gmra.mxu0 %v1526
      %v1781 = vpop.f32.mrf.mxu0
      %v1782 = vadd.f32 %v1585, %v1781
      %v1783 = vpop.f32.mrf.mxu0
      %v1784 = vpop.f32.mrf.mxu0
      %v1785 = vadd.f32 %v1585, %v1784
      %v1786 = vpop.f32.mrf.mxu0
      %1787 = vmatprep.mubr.bf16.mxu0 %v1530
      %1788 = vmatmul.mubr.bf16.gmra.mxu0 %v1529
      %v1789 = vpop.f32.mrf.mxu0
      %v1790 = vadd.f32 %v1585, %v1789
      %v1791 = vpop.f32.mrf.mxu0
      %v1792 = vpop.f32.mrf.mxu0
      %v1793 = vadd.f32 %v1585, %v1792
      %v1794 = vpop.f32.mrf.mxu0
      %1795 = vdwg.mxu0
      %1796 = vmatprep.subr.bf16.mxu0 0
      %1797 = vmatpush1.bf16.msra.mxu0 %v1706
      %1798 = vmatprep.subr.bf16.mxu0 0
      %1799 = vmatpush1.bf16.msra.mxu0 %v1705
      %1800 = vmatprep.subr.bf16.mxu0 0
      %1801 = vmatpush1.bf16.msra.mxu0 %v1704
      %1802 = vmatprep.subr.bf16.mxu0 0
      %1803 = vmatpush1.bf16.msra.mxu0 %v1703
      %1804 = vmatprep.subr.bf16.mxu0 0
      %1805 = vmatpush1.bf16.msra.mxu0 %v1702
      %1806 = vmatprep.subr.bf16.mxu0 0
      %1807 = vmatpush1.bf16.msra.mxu0 %v1701
      %1808 = vmatprep.subr.bf16.mxu0 0
      %1809 = vmatpush1.bf16.msra.mxu0 %v1700
      %1810 = vmatprep.subr.bf16.mxu0 0
      %1811 = vmatpush1.bf16.msra.mxu0 %v1699
      %1812 = vmatprep.subr.bf16.mxu0 0
      %1813 = vmatpush2.bf16.msra.mxu0 0
      %1814 = vmatprep.subr.bf16.mxu0 0
      %1815 = vmatpush2.bf16.msra.mxu0 0
      %1816 = vmatprep.subr.bf16.mxu0 0
      %1817 = vmatpush2.bf16.msra.mxu0 0
      %1818 = vmatprep.subr.bf16.mxu0 0
      %1819 = vmatpush2.bf16.msra.mxu0 0
      %1820 = vmatprep.subr.bf16.mxu0 0
      %1821 = vmatpush2.bf16.msra.mxu0 0
      %1822 = vmatprep.subr.bf16.mxu0 0
      %1823 = vmatpush2.bf16.msra.mxu0 0
      %1824 = vmatprep.subr.bf16.mxu0 0
      %1825 = vmatpush2.bf16.msra.mxu0 0
      %1826 = vmatprep.subr.bf16.mxu0 0
      %1827 = vmatpush2.bf16.msra.mxu0 0
      %1828 = vmatprep.mubr.bf16.mxu0 0
      %1829 = vmatmul.mubr.bf16.gmra.mxu0 %v1522
      %v1830 = vpop.f32.mrf.mxu0
      %v1831 = vadd.f32 %v1766, %v1830
      %v1832 = vpop.f32.mrf.mxu0
      %v1833 = vpop.f32.mrf.mxu0
      %v1834 = vadd.f32 %v1769, %v1833
      %v1835 = vpop.f32.mrf.mxu0
      %1836 = vmatprep.mubr.bf16.mxu0 0
      %1837 = vmatmul.mubr.bf16.gmra.mxu0 %v1525
      %v1838 = vpop.f32.mrf.mxu0
      %v1839 = vadd.f32 %v1774, %v1838
      %v1840 = vpop.f32.mrf.mxu0
      %v1841 = vpop.f32.mrf.mxu0
      %v1842 = vadd.f32 %v1777, %v1841
      %v1843 = vpop.f32.mrf.mxu0
      %1844 = vmatprep.mubr.bf16.mxu0 0
      %1845 = vmatmul.mubr.bf16.gmra.mxu0 %v1528
      %v1846 = vpop.f32.mrf.mxu0
      %v1847 = vadd.f32 %v1782, %v1846
      %v1848 = vpop.f32.mrf.mxu0
      %v1849 = vpop.f32.mrf.mxu0
      %v1850 = vadd.f32 %v1785, %v1849
      %v1851 = vpop.f32.mrf.mxu0
      %1852 = vmatprep.mubr.bf16.mxu0 0
      %1853 = vmatmul.mubr.bf16.gmra.mxu0 %v1531
      %v1854 = vpop.f32.mrf.mxu0
      %v1855 = vadd.f32 %v1790, %v1854
      %v1856 = vpop.f32.mrf.mxu0
      %v1857 = vpop.f32.mrf.mxu0
      %v1858 = vadd.f32 %v1793, %v1857
      %v1859 = vpop.f32.mrf.mxu0
      %1860 = vdwg.mxu0
      %v1861 = vmax.f32 %v1831, 0.0
      %v1862 = vmax.f32 %v1834, 0.0
      %v1863 = vmax.f32 %v1839, 0.0
      %v1864 = vmax.f32 %v1842, 0.0
      %v1865 = vmax.f32 %v1847, 0.0
      %v1866 = vmax.f32 %v1850, 0.0
      %v1867 = vmax.f32 %v1855, 0.0
      %v1868 = vmax.f32 %v1858, 0.0
      %v1869 = vpack.c.bf16 %v1862, %v1861
      %v1870 = vpack.c.bf16 %v1864, %v1863
      %v1871 = vpack.c.bf16 %v1866, %v1865
      %v1872 = vpack.c.bf16 %v1868, %v1867
      %v1877 = vunpack.c.l.b16 %v1869
      %v1878 = vunpack.c.h.b16 %v1869
      %v1879 = vunpack.c.l.b16 %v1870
      %v1880 = vunpack.c.h.b16 %v1870
      %v1881 = vunpack.c.l.b16 %v1871
      %v1882 = vunpack.c.h.b16 %v1871
      %v1883 = vunpack.c.l.b16 %v1872
      %v1884 = vunpack.c.h.b16 %v1872
      %v1885 = vpack.c.b16 %v1877, %v1877
      %v1886 = vpack.c.b16 %v1878, %v1878
      %v1887 = vpack.c.b16 %v1879, %v1879
      %v1888 = vpack.c.b16 %v1880, %v1880
      %v1889 = vpack.c.b16 %v1881, %v1881
      %v1890 = vpack.c.b16 %v1882, %v1882
      %v1891 = vpack.c.b16 %v1883, %v1883
      %v1892 = vpack.c.b16 %v1884, %v1884
      %vm1901 = vcmask 781312
      %1902 = vst.msk [vmem:[%s294] sm:$0xf] %vm1901, %v1885
      %1903 = vst.msk [vmem:[%s294 + $0x4] sm:$0xf] %vm1901, %v1886
      %1904 = vst.msk [vmem:[%s294 + $0x8] sm:$0xf] %vm1901, %v1887
      %1905 = vst.msk [vmem:[%s294 + $0xc] sm:$0xf] %vm1901, %v1888
      %1906 = vst.msk [vmem:[%s294 + $0x10] sm:$0xf] %vm1901, %v1889
      %1907 = vst.msk [vmem:[%s294 + $0x14] sm:$0xf] %vm1901, %v1890
      %1908 = vst.msk [vmem:[%s294 + $0x18] sm:$0xf] %vm1901, %v1891
      %1909 = vst.msk [vmem:[%s294 + $0x1c] sm:$0xf] %vm1901, %v1892
      %s1910 = smul.u32 8, %s19
      %p1911 = scmp.lt.s32.totalorder %s1910, 15
      %s1912 = scalar_select %p1911, %s1910, 15
      %s1913 = smul.addr %s1912, 2
      %s1914 = smul.addr %s1913, 4
      %s1915 = scalar_lea.vmem %s6, %s1914
      %s1916 = smul.u32 8, %s19
      %p1917 = scmp.lt.s32.totalorder %s1916, 15
      %s1918 = scalar_select %p1917, %s1916, 15
      %s1919 = smul.addr %s1918, 4
      %s1920 = scalar_lea.vmem %s7, %s1919
      // Predicated region
      $region45: #{inception_a_forward.3} parent=43 // pred_check
        %p1921 = pneg %p168
      $region46: #{inception_a_forward.3} parent=43 // pred_check_branch
        %1923 = sbr.rel (%p1921) target = $region48
      $region47: #{inception_a_forward.3} parent=43 // pred_region
        %s1924 = smul.u32 8, %s19
      $region48: #{inception_a_forward.3} parent=43 // pred_fallthru
        _
      // Predicated region
      $region49: #{inception_a_forward.3} parent=43 // pred_check
        %p1925 = pneg %p194
      $region50: #{inception_a_forward.3} parent=43 // pred_check_branch
        %1927 = sbr.rel (%p1925) target = $region52
      $region51: #{inception_a_forward.3} parent=43 // pred_region
        %s1928 = smul.u32 8, %s19
      $region52: #{inception_a_forward.3} parent=43 // pred_fallthru
        _
    $region44: #{inception_a_forward.3} parent=5 // pred_fallthru
      _
    %p1929 = scmp.le.s32.totalorder 2, %s14
    // Predicated region
    $region53: #{inception_a_forward.3} parent=5 // pred_check
      %p1930 = pneg %p1929
    $region54: #{inception_a_forward.3} parent=5 // pred_check_branch
      %1932 = sbr.rel (%p1930) target = $region56
    $region55: #{inception_a_forward.3} parent=5 // pred_region
      %s1933 = ssub.s32 %s14, 2
      // Predicated region
      $region57: #{inception_a_forward.3} parent=55 // pred_check
        %p1934 = pneg %p174
      $region58: #{inception_a_forward.3} parent=55 // pred_check_branch
        %1936 = sbr.rel (%p1934) target = $region60
      $region59: #{inception_a_forward.3} parent=55 // pred_region
        %s1937 = smul.u32 8, %s20
        %p1938 = scmp.lt.s32.totalorder %s1937, 15
        %s1939 = scalar_select %p1938, %s1937, 15
        %s1940 = smul.addr %s1939, 2
        %s1941 = smul.addr %s1940, 4
        %s1942 = scalar_lea.vmem %s6, %s1941
      $region60: #{inception_a_forward.3} parent=55 // pred_fallthru
        _
      // Predicated region
      $region61: #{inception_a_forward.3} parent=55 // pred_check
        %p1943 = pneg %p200
      $region62: #{inception_a_forward.3} parent=55 // pred_check_branch
        %1945 = sbr.rel (%p1943) target = $region64
      $region63: #{inception_a_forward.3} parent=55 // pred_region
        %s1946 = smul.u32 8, %s20
        %p1947 = scmp.lt.s32.totalorder %s1946, 15
        %s1948 = scalar_select %p1947, %s1946, 15
        %s1949 = smul.addr %s1948, 4
        %s1950 = scalar_lea.vmem %s7, %s1949
      $region64: #{inception_a_forward.3} parent=55 // pred_fallthru
        _
    $region56: #{inception_a_forward.3} parent=5 // pred_fallthru
      _
  $region6: #{inception_a_forward.3} parent=0 // loop_footer
    %s18 = sadd.s32 1, %s14
  $region7: #{inception_a_forward.3} parent=0 // loop_footer_branch
    %13 = sbr.rel target = $region3
  $region8: #{inception_a_forward.3} parent=0 // loop_exit
    _

</llo_original>
